<compile_context>
chip_gen: v7x
topology: tpu7x:2x2x1
jax: 0.10.0
libtpu: 0.0.40
codegen_flags: <defaults>
</compile_context>

<pallas_src>
import functools

import jax
import jax.numpy as jnp
from jax import lax
from jax.experimental import pallas as pl
from jax.experimental.pallas import tpu as pltpu


def _sigmoid(x):
    # explicit form (exp + divide) -> guaranteed EUP/VPU lowering, stays f32
    return 1.0 / (1.0 + jnp.exp(-x))


# ---------------------------------------------------------------------------
# Kernel 1: fused conv(1x3) + bias + ReLU + maxpool(1x2), single grid step.
#   patches rows are ordered (w, t, b)  ->  pooling partners are two adjacent
#   contiguous row blocks of size T*B; pooled features are packed lane-wise.
# ---------------------------------------------------------------------------
def conv_relu_pool_kernel(x_ref, w_ref, b_ref, o_ref, *, W, TB, Cout):
    y = jnp.dot(x_ref[...].astype(jnp.bfloat16), w_ref[...],
                preferred_element_type=jnp.float32)          # (W*TB, Cout)
    y = jnp.maximum(y + b_ref[...], 0.0)                     # bias + ReLU (f32)
    pooled = []
    for p in range(W // 2):                                  # static tiny loop
        y0 = y[(2 * p) * TB:(2 * p + 1) * TB, :]             # width 2p
        y1 = y[(2 * p + 1) * TB:(2 * p + 2) * TB, :]         # width 2p+1
        pooled.append(jnp.maximum(y0, y1))                   # maxpool(1,2)
    o_ref[...] = jnp.concatenate(pooled, axis=-1)            # one dense store


def conv_relu_pool(patches, w_bf16, b_row, *, W, TB, Cout):
    Wout = W // 2
    return pl.pallas_call(
        functools.partial(conv_relu_pool_kernel, W=W, TB=TB, Cout=Cout),
        out_shape=jax.ShapeDtypeStruct((TB, Wout * Cout), jnp.float32),
    )(patches, w_bf16, b_row)


# ---------------------------------------------------------------------------
# Kernel 2: one bidirectional LSTM layer in a single pallas_call.
#   grid=(2,) over direction; whole time recurrence inside the kernel.
# ---------------------------------------------------------------------------
def bilstm_layer_kernel(*refs, n_x, T, B, H):
    x_refs = refs[:n_x]                 # each (T*B, F_i) f32, time-major rows
    wih_refs = refs[n_x:2 * n_x]        # each (F_i, 4H) bf16 (this direction)
    whh_ref = refs[2 * n_x]             # (H, 4H)  bf16
    b_ref = refs[2 * n_x + 1]           # (1, 4H)  f32  (b_ih + b_hh)
    out_ref = refs[2 * n_x + 2]         # (T, B, H) f32  (this direction)
    xg_scr = refs[2 * n_x + 3]          # (T*B, 4H) f32 scratch

    d = pl.program_id(0)                # 0 = forward, 1 = backward
    whh = whh_ref[...]
    bias = b_ref[...]

    # One big-M matmul per input part: input projection for ALL timesteps.
    xg = bias
    for x_ref, wih_ref in zip(x_refs, wih_refs):
        xg = xg + jnp.dot(x_ref[...].astype(jnp.bfloat16), wih_ref[...],
                          preferred_element_type=jnp.float32)
    xg_scr[...] = xg

    def step(t, carry):
        h, c = carry                                   # (B, H) f32 each
        t_idx = d * (T - 1 - 2 * t) + t                # fwd: t   bwd: T-1-t
        g = xg_scr[pl.ds(t_idx * B, B), :] + jnp.dot(
            h.astype(jnp.bfloat16), whh, preferred_element_type=jnp.float32)
        i_g = _sigmoid(g[:, :H])                       # gate math stays f32
        f_g = _sigmoid(g[:, H:2 * H])
        g_g = jnp.tanh(g[:, 2 * H:3 * H])
        o_g = _sigmoid(g[:, 3 * H:])
        c_new = f_g * c + i_g * g_g
        h_new = o_g * jnp.tanh(c_new)
        out_ref[t_idx] = h_new
        return h_new, c_new

    zeros = jnp.zeros((B, H), jnp.float32)
    lax.fori_loop(0, T, step, (zeros, zeros), unroll=True)


def bilstm_layer(x_parts, wih_parts, whh, b, *, T, B, H):
    n_x = len(x_parts)
    in_specs = (
        [pl.BlockSpec(x.shape, lambda d: (0, 0)) for x in x_parts]
        + [pl.BlockSpec((None,) + w.shape[1:], lambda d: (d, 0, 0))
           for w in wih_parts]
        + [pl.BlockSpec((None, H, 4 * H), lambda d: (d, 0, 0)),
           pl.BlockSpec((None, 1, 4 * H), lambda d: (d, 0, 0))]
    )
    return pl.pallas_call(
        functools.partial(bilstm_layer_kernel, n_x=n_x, T=T, B=B, H=H),
        out_shape=jax.ShapeDtypeStruct((2, T, B, H), jnp.float32),
        grid=(2,),
        in_specs=in_specs,
        out_specs=pl.BlockSpec((None, T, B, H), lambda d: (d, 0, 0, 0)),
        scratch_shapes=[pltpu.VMEM((T * B, 4 * H), jnp.float32)],
        compiler_params=pltpu.CompilerParams(
            dimension_semantics=("parallel",)),   # independent fw/bw -> 2 TCs on v7x
    )(*x_parts, *wih_parts, whh, b)


# ---------------------------------------------------------------------------
# Kernel 3: final Linear, consuming the fw/bw halves directly (no concat).
# ---------------------------------------------------------------------------
def fc_kernel(x1_ref, x2_ref, w1_ref, w2_ref, b_ref, o_ref):
    o_ref[...] = (
        jnp.dot(x1_ref[...].astype(jnp.bfloat16), w1_ref[...],
                preferred_element_type=jnp.float32)
        + jnp.dot(x2_ref[...].astype(jnp.bfloat16), w2_ref[...],
                  preferred_element_type=jnp.float32)
        + b_ref[...])


def fc(h_fw, h_bw, w_fw, w_bw, b):
    N = h_fw.shape[0]
    O = w_fw.shape[-1]
    return pl.pallas_call(
        fc_kernel,
        out_shape=jax.ShapeDtypeStruct((N, O), jnp.float32),
    )(h_fw, h_bw, w_fw, w_bw, b)


# ---------------------------------------------------------------------------
# Full forward pass (cheap glue only in the wrapper).
# TODO(synk): for production-scale T*B / H, tile the conv & FC over rows and
# pad H / output_dim up to 128-lane multiples for fully dense stores.
# ---------------------------------------------------------------------------
def cnn_lstm_forward(articulatory_features, phoneme_embeddings, params):
    B, Cin, T, W = articulatory_features.shape
    Cout = params["conv_b"].shape[-1]
    H = params["lstm"][0]["whh"].shape[-1] // 4
    TB = T * B

    # ---- im2col glue: one transpose + pad + 3 shifted slices ----------------
    x = jnp.transpose(articulatory_features, (3, 2, 0, 1))    # (W, T, B, Cin)
    x = x.reshape(W, TB, Cin)
    xp = jnp.pad(x, ((1, 1), (0, 0), (0, 0)))                 # conv padding=1
    patches = jnp.concatenate([xp[k:k + W] for k in range(3)], axis=-1)
    patches = patches.reshape(W * TB, 3 * Cin)                # rows: (w, t, b)

    cnn_feat = conv_relu_pool(
        patches, params["conv_w"].astype(jnp.bfloat16), params["conv_b"],
        W=W, TB=TB, Cout=Cout)                                # (T*B, Wout*Cout)

    phon = jnp.transpose(phoneme_embeddings, (1, 0, 2)).reshape(TB, -1)

    # ---- 2-layer bidirectional LSTM -----------------------------------------
    # layer 0 inputs: [cnn features, phoneme embeddings] (concat fused away)
    # layer 1 inputs: [forward hidden, backward hidden]  (concat fused away)
    x_parts = [cnn_feat, phon]
    for layer in params["lstm"]:
        out = bilstm_layer(
            x_parts,
            [w.astype(jnp.bfloat16) for w in layer["wih"]],
            layer["whh"].astype(jnp.bfloat16),
            layer["b"],
            T=T, B=B, H=H)                                    # (2, T, B, H)
        x_parts = [out[0].reshape(TB, H), out[1].reshape(TB, H)]

    # ---- final Linear --------------------------------------------------------
    y = fc(x_parts[0], x_parts[1],
           params["fc_w_fw"].astype(jnp.bfloat16),
           params["fc_w_bw"].astype(jnp.bfloat16),
           params["fc_b"])                                    # (T*B, O)
    y = y.reshape(T, B, -1)
    return jnp.transpose(y, (1, 0, 2))                        # (B, T, O)


# ---------------------------------------------------------------------------
# Deterministic parameter construction
# ---------------------------------------------------------------------------
def make_params(key, in_channels, cnn_channels, lstm_hidden, output_dim,
                embed_dim, wout):
    keys = jax.random.split(key, 32)
    k = iter(keys)
    scale = 0.1

    def rnd(shape):
        return scale * jax.random.normal(next(k), shape, dtype=jnp.float32)

    H = lstm_hidden
    params = {
        "conv_w": rnd((3 * in_channels, cnn_channels)),   # (k*Cin+ci, Cout)
        "conv_b": rnd((1, cnn_channels)),
        "lstm": [],
        "fc_w_fw": rnd((H, output_dim)),                  # fc weight, fw half
        "fc_w_bw": rnd((H, output_dim)),                  # fc weight, bw half
        "fc_b": rnd((1, output_dim)),
    }
    # layer 0 input parts: [cnn features (width-major), phoneme embeddings]
    # layer 1 input parts: [forward hidden, backward hidden]
    part_sizes = [(cnn_channels * wout, embed_dim), (H, H)]
    for sizes in part_sizes:
        params["lstm"].append({
            # leading dim 2 = (forward, backward); gate columns = [i|f|g|o]*H
            "wih": [rnd((2, f, 4 * H)) for f in sizes],
            "whh": rnd((2, H, 4 * H)),
            "b": rnd((2, 1, 4 * H)),                      # b_ih + b_hh combined
        })
    return params


if __name__ == "__main__":
    # Module constraint: lstm_input_size = cnn_channels*3 + embed_dim
    #   => pooled width must be 3  =>  input width W = 6.
    B, Cin, T, W = 2, 4, 8, 6
    cnn_channels = 8
    lstm_hidden = 16
    output_dim = 5
    embed_dim = 10

    root = jax.random.PRNGKey(0)
    k_art, k_phon, k_params = jax.random.split(root, 3)

    articulatory_features = jax.random.normal(
        k_art, (B, Cin, T, W), dtype=jnp.float32)
    phoneme_embeddings = jax.random.normal(
        k_phon, (B, T, embed_dim), dtype=jnp.float32)

    params = make_params(k_params, Cin, cnn_channels, lstm_hidden,
                         output_dim, embed_dim, W // 2)

    fwd = jax.jit(functools.partial(cnn_lstm_forward, params=params))
    out = jax.block_until_ready(fwd(articulatory_features, phoneme_embeddings))

    assert out.shape == (B, T, output_dim), out.shape
    assert out.dtype == jnp.float32
    assert bool(jnp.all(jnp.isfinite(out)))
    print("KERNEL_OK")
</pallas_src>

<mosaic_0001>
module attributes {stable_mosaic.version = 11 : i64} {
  func.func @conv_relu_pool_kernel(%arg0: memref<96x12xf32, #tpu.memory_space<vmem>>, %arg1: memref<12x8xbf16, #tpu.memory_space<vmem>>, %arg2: memref<1x8xf32, #tpu.memory_space<vmem>>, %arg3: memref<16x24xf32, #tpu.memory_space<vmem>>) attributes {dimension_semantics = [], scalar_prefetch = 0 : i64, scratch_operands = 0 : i64, tpu.core_type = #tpu.core_type<tc>} {
    %c0 = arith.constant 0 : index
    %c0_0 = arith.constant 0 : index
    %0 = vector.load %arg0[%c0, %c0_0] : memref<96x12xf32, #tpu.memory_space<vmem>>, vector<96x12xf32>
    %1 = arith.truncf %0 : vector<96x12xf32> to vector<96x12xbf16>
    %c0_1 = arith.constant 0 : index
    %c0_2 = arith.constant 0 : index
    %2 = vector.load %arg1[%c0_1, %c0_2] : memref<12x8xbf16, #tpu.memory_space<vmem>>, vector<12x8xbf16>
    %cst = arith.constant dense<0.000000e+00> : vector<96x8xf32>
    %3 = tpu.matmul %1, %2, %cst {dimension_numbers = #tpu.dot_dimension_numbers<[1], [0], [0], [1], [0, 0, 1, 1], [], []>} : vector<96x12xbf16>, vector<12x8xbf16>, vector<96x8xf32> -> vector<96x8xf32>
    %c0_3 = arith.constant 0 : index
    %c0_4 = arith.constant 0 : index
    %4 = vector.load %arg2[%c0_3, %c0_4] : memref<1x8xf32, #tpu.memory_space<vmem>>, vector<1x8xf32>
    %5 = vector.broadcast %4 : vector<1x8xf32> to vector<96x8xf32>
    %6 = arith.addf %3, %5 : vector<96x8xf32>
    %cst_5 = arith.constant 0.000000e+00 : f32
    %7 = vector.broadcast %cst_5 : f32 to vector<96x8xf32>
    %8 = arith.maximumf %6, %7 : vector<96x8xf32>
    %9 = vector.extract_strided_slice %8 {offsets = [0, 0], sizes = [16, 8], strides = [1, 1]} : vector<96x8xf32> to vector<16x8xf32>
    %10 = vector.extract_strided_slice %8 {offsets = [16, 0], sizes = [16, 8], strides = [1, 1]} : vector<96x8xf32> to vector<16x8xf32>
    %11 = arith.maximumf %9, %10 : vector<16x8xf32>
    %12 = vector.extract_strided_slice %8 {offsets = [32, 0], sizes = [16, 8], strides = [1, 1]} : vector<96x8xf32> to vector<16x8xf32>
    %13 = vector.extract_strided_slice %8 {offsets = [48, 0], sizes = [16, 8], strides = [1, 1]} : vector<96x8xf32> to vector<16x8xf32>
    %14 = arith.maximumf %12, %13 : vector<16x8xf32>
    %15 = vector.extract_strided_slice %8 {offsets = [64, 0], sizes = [16, 8], strides = [1, 1]} : vector<96x8xf32> to vector<16x8xf32>
    %16 = vector.extract_strided_slice %8 {offsets = [80, 0], sizes = [16, 8], strides = [1, 1]} : vector<96x8xf32> to vector<16x8xf32>
    %17 = arith.maximumf %15, %16 : vector<16x8xf32>
    %18 = tpu.concatenate %11, %14, %17 in 1 : vector<16x8xf32>, vector<16x8xf32>, vector<16x8xf32> -> vector<16x24xf32>
    %c0_6 = arith.constant 0 : index
    %c0_7 = arith.constant 0 : index
    %19 = vector.load %arg3[%c0_6, %c0_7] : memref<16x24xf32, #tpu.memory_space<vmem>>, vector<16x24xf32>
    tpu.vector_store %arg3[%c0_6, %c0_7], %18 {strides = array<i32>} : memref<16x24xf32, #tpu.memory_space<vmem>>, vector<16x24xf32>,
    return
  }
}

module attributes {stable_mosaic.version = 11 : i64} {
  func.func @bilstm_layer_kernel(%arg0: i32, %arg1: memref<16x24xf32, #tpu.memory_space<vmem>>, %arg2: memref<16x10xf32, #tpu.memory_space<vmem>>, %arg3: memref<1x24x64xbf16, #tpu.memory_space<vmem>>, %arg4: memref<1x10x64xbf16, #tpu.memory_space<vmem>>, %arg5: memref<1x16x64xbf16, #tpu.memory_space<vmem>>, %arg6: memref<1x1x64xf32, #tpu.memory_space<vmem>>, %arg7: memref<1x8x2x16xf32, #tpu.memory_space<vmem>>, %arg8: memref<16x64xf32, #tpu.memory_space<vmem>>) attributes {dimension_semantics = [#tpu.dimension_semantics<parallel>], iteration_bounds = array<i64: 2>, scalar_prefetch = 0 : i64, scratch_operands = 1 : i64, tpu.core_type = #tpu.core_type<tc>, window_params = [{pipeline_mode = #tpu.pipeline_mode<synchronous>, transform_indices = @transform_0, window_bounds = array<i64: 16, 24>}, {pipeline_mode = #tpu.pipeline_mode<synchronous>, transform_indices = @transform_1, window_bounds = array<i64: 16, 10>}, {transform_indices = @transform_2, window_bounds = array<i64: 1, 24, 64>}, {transform_indices = @transform_3, window_bounds = array<i64: 1, 10, 64>}, {transform_indices = @transform_4, window_bounds = array<i64: 1, 16, 64>}, {transform_indices = @transform_5, window_bounds = array<i64: 1, 1, 64>}, {transform_indices = @transform_6, window_bounds = array<i64: 1, 8, 2, 16>}]} {
    %c0 = arith.constant 0 : index
    %c0_0 = arith.constant 0 : index
    %c0_1 = arith.constant 0 : index
    %0 = vector.load %arg5[%c0, %c0_0, %c0_1] : memref<1x16x64xbf16, #tpu.memory_space<vmem>>, vector<1x16x64xbf16>
    %1 = vector.shape_cast %0 : vector<1x16x64xbf16> to vector<16x64xbf16>
    %c0_2 = arith.constant 0 : index
    %c0_3 = arith.constant 0 : index
    %c0_4 = arith.constant 0 : index
    %2 = vector.load %arg6[%c0_2, %c0_3, %c0_4] : memref<1x1x64xf32, #tpu.memory_space<vmem>>, vector<1x1x64xf32>
    %3 = vector.shape_cast %2 : vector<1x1x64xf32> to vector<1x64xf32>
    %c0_5 = arith.constant 0 : index
    %c0_6 = arith.constant 0 : index
    %4 = vector.load %arg1[%c0_5, %c0_6] : memref<16x24xf32, #tpu.memory_space<vmem>>, vector<16x24xf32>
    %5 = arith.truncf %4 : vector<16x24xf32> to vector<16x24xbf16>
    %c0_7 = arith.constant 0 : index
    %c0_8 = arith.constant 0 : index
    %c0_9 = arith.constant 0 : index
    %6 = vector.load %arg3[%c0_7, %c0_8, %c0_9] : memref<1x24x64xbf16, #tpu.memory_space<vmem>>, vector<1x24x64xbf16>
    %7 = vector.shape_cast %6 : vector<1x24x64xbf16> to vector<24x64xbf16>
    %cst = arith.constant dense<0.000000e+00> : vector<16x64xf32>
    %8 = tpu.matmul %5, %7, %cst {dimension_numbers = #tpu.dot_dimension_numbers<[1], [0], [0], [1], [0, 0, 1, 1], [], []>} : vector<16x24xbf16>, vector<24x64xbf16>, vector<16x64xf32> -> vector<16x64xf32>
    %9 = vector.broadcast %3 : vector<1x64xf32> to vector<16x64xf32>
    %10 = arith.addf %9, %8 : vector<16x64xf32>
    %c0_10 = arith.constant 0 : index
    %c0_11 = arith.constant 0 : index
    %11 = vector.load %arg2[%c0_10, %c0_11] : memref<16x10xf32, #tpu.memory_space<vmem>>, vector<16x10xf32>
    %12 = arith.truncf %11 : vector<16x10xf32> to vector<16x10xbf16>
    %c0_12 = arith.constant 0 : index
    %c0_13 = arith.constant 0 : index
    %c0_14 = arith.constant 0 : index
    %13 = vector.load %arg4[%c0_12, %c0_13, %c0_14] : memref<1x10x64xbf16, #tpu.memory_space<vmem>>, vector<1x10x64xbf16>
    %14 = vector.shape_cast %13 : vector<1x10x64xbf16> to vector<10x64xbf16>
    %cst_15 = arith.constant dense<0.000000e+00> : vector<16x64xf32>
    %15 = tpu.matmul %12, %14, %cst_15 {dimension_numbers = #tpu.dot_dimension_numbers<[1], [0], [0], [1], [0, 0, 1, 1], [], []>} : vector<16x10xbf16>, vector<10x64xbf16>, vector<16x64xf32> -> vector<16x64xf32>
    %16 = arith.addf %10, %15 : vector<16x64xf32>
    %c0_16 = arith.constant 0 : index
    %c0_17 = arith.constant 0 : index
    %17 = vector.load %arg8[%c0_16, %c0_17] : memref<16x64xf32, #tpu.memory_space<vmem>>, vector<16x64xf32>
    tpu.vector_store %arg8[%c0_16, %c0_17], %16 {strides = array<i32>} : memref<16x64xf32, #tpu.memory_space<vmem>>, vector<16x64xf32>,
    %cst_18 = arith.constant 0.000000e+00 : f32
    %18 = vector.broadcast %cst_18 : f32 to vector<2x16xf32>
    %c0_i32 = arith.constant 0 : i32
    %c2_i32 = arith.constant 2 : i32
    %19 = arith.muli %c2_i32, %c0_i32 : i32
    %c7_i32 = arith.constant 7 : i32
    %20 = arith.subi %c7_i32, %19 : i32
    %21 = arith.muli %arg0, %20 : i32
    %22 = arith.addi %21, %c0_i32 : i32
    %c2_i32_19 = arith.constant 2 : i32
    %23 = arith.muli %22, %c2_i32_19 : i32
    %24 = arith.index_cast %23 : i32 to index
    %c0_20 = arith.constant 0 : index
    %25 = vector.load %arg8[%24, %c0_20] : memref<16x64xf32, #tpu.memory_space<vmem>>, vector<2x64xf32>
    %26 = arith.truncf %18 : vector<2x16xf32> to vector<2x16xbf16>
    %cst_21 = arith.constant dense<0.000000e+00> : vector<2x64xf32>
    %27 = tpu.matmul %26, %1, %cst_21 {dimension_numbers = #tpu.dot_dimension_numbers<[1], [0], [0], [1], [0, 0, 1, 1], [], []>} : vector<2x16xbf16>, vector<16x64xbf16>, vector<2x64xf32> -> vector<2x64xf32>
    %28 = arith.addf %25, %27 : vector<2x64xf32>
    %29 = vector.extract_strided_slice %28 {offsets = [0, 0], sizes = [2, 16], strides = [1, 1]} : vector<2x64xf32> to vector<2x16xf32>
    %cst_22 = arith.constant 0.000000e+00 : f32
    %30 = vector.broadcast %cst_22 : f32 to vector<2x16xf32>
    %31 = arith.subf %30, %29 : vector<2x16xf32>
    %32 = math.exp %31 : vector<2x16xf32>
    %cst_23 = arith.constant 1.000000e+00 : f32
    %33 = vector.broadcast %cst_23 : f32 to vector<2x16xf32>
    %34 = arith.addf %33, %32 : vector<2x16xf32>
    %cst_24 = arith.constant 1.000000e+00 : f32
    %35 = vector.broadcast %cst_24 : f32 to vector<2x16xf32>
    %36 = arith.divf %35, %34 : vector<2x16xf32>
    %37 = vector.extract_strided_slice %28 {offsets = [0, 16], sizes = [2, 16], strides = [1, 1]} : vector<2x64xf32> to vector<2x16xf32>
    %cst_25 = arith.constant 0.000000e+00 : f32
    %38 = vector.broadcast %cst_25 : f32 to vector<2x16xf32>
    %39 = arith.subf %38, %37 : vector<2x16xf32>
    %40 = math.exp %39 : vector<2x16xf32>
    %cst_26 = arith.constant 1.000000e+00 : f32
    %41 = vector.broadcast %cst_26 : f32 to vector<2x16xf32>
    %42 = arith.addf %41, %40 : vector<2x16xf32>
    %cst_27 = arith.constant 1.000000e+00 : f32
    %43 = vector.broadcast %cst_27 : f32 to vector<2x16xf32>
    %44 = arith.divf %43, %42 : vector<2x16xf32>
    %45 = vector.extract_strided_slice %28 {offsets = [0, 32], sizes = [2, 16], strides = [1, 1]} : vector<2x64xf32> to vector<2x16xf32>
    %46 = math.tanh %45 : vector<2x16xf32>
    %47 = vector.extract_strided_slice %28 {offsets = [0, 48], sizes = [2, 16], strides = [1, 1]} : vector<2x64xf32> to vector<2x16xf32>
    %cst_28 = arith.constant 0.000000e+00 : f32
    %48 = vector.broadcast %cst_28 : f32 to vector<2x16xf32>
    %49 = arith.subf %48, %47 : vector<2x16xf32>
    %50 = math.exp %49 : vector<2x16xf32>
    %cst_29 = arith.constant 1.000000e+00 : f32
    %51 = vector.broadcast %cst_29 : f32 to vector<2x16xf32>
    %52 = arith.addf %51, %50 : vector<2x16xf32>
    %cst_30 = arith.constant 1.000000e+00 : f32
    %53 = vector.broadcast %cst_30 : f32 to vector<2x16xf32>
    %54 = arith.divf %53, %52 : vector<2x16xf32>
    %55 = arith.mulf %44, %18 : vector<2x16xf32>
    %56 = arith.mulf %36, %46 : vector<2x16xf32>
    %57 = arith.addf %55, %56 : vector<2x16xf32>
    %58 = math.tanh %57 : vector<2x16xf32>
    %59 = arith.mulf %54, %58 : vector<2x16xf32>
    %c0_31 = arith.constant 0 : index
    %60 = arith.index_cast %22 : i32 to index
    %c0_32 = arith.constant 0 : index
    %c0_33 = arith.constant 0 : index
    %61 = vector.load %arg7[%c0_31, %60, %c0_32, %c0_33] : memref<1x8x2x16xf32, #tpu.memory_space<vmem>>, vector<1x1x2x16xf32>
    %62 = vector.shape_cast %61 : vector<1x1x2x16xf32> to vector<2x16xf32>
    %63 = vector.shape_cast %59 : vector<2x16xf32> to vector<1x1x2x16xf32>
    tpu.vector_store %arg7[%c0_31, %60, %c0_32, %c0_33], %63 {strides = array<i32>} : memref<1x8x2x16xf32, #tpu.memory_space<vmem>>, vector<1x1x2x16xf32>,
    %c1_i32 = arith.constant 1 : i32
    %c2_i32_34 = arith.constant 2 : i32
    %64 = arith.muli %c2_i32_34, %c1_i32 : i32
    %c7_i32_35 = arith.constant 7 : i32
    %65 = arith.subi %c7_i32_35, %64 : i32
    %66 = arith.muli %arg0, %65 : i32
    %67 = arith.addi %66, %c1_i32 : i32
    %c2_i32_36 = arith.constant 2 : i32
    %68 = arith.muli %67, %c2_i32_36 : i32
    %69 = arith.index_cast %68 : i32 to index
    %c0_37 = arith.constant 0 : index
    %70 = vector.load %arg8[%69, %c0_37] : memref<16x64xf32, #tpu.memory_space<vmem>>, vector<2x64xf32>
    %71 = arith.truncf %59 : vector<2x16xf32> to vector<2x16xbf16>
    %cst_38 = arith.constant dense<0.000000e+00> : vector<2x64xf32>
    %72 = tpu.matmul %71, %1, %cst_38 {dimension_numbers = #tpu.dot_dimension_numbers<[1], [0], [0], [1], [0, 0, 1, 1], [], []>} : vector<2x16xbf16>, vector<16x64xbf16>, vector<2x64xf32> -> vector<2x64xf32>
    %73 = arith.addf %70, %72 : vector<2x64xf32>
    %74 = vector.extract_strided_slice %73 {offsets = [0, 0], sizes = [2, 16], strides = [1, 1]} : vector<2x64xf32> to vector<2x16xf32>
    %cst_39 = arith.constant 0.000000e+00 : f32
    %75 = vector.broadcast %cst_39 : f32 to vector<2x16xf32>
    %76 = arith.subf %75, %74 : vector<2x16xf32>
    %77 = math.exp %76 : vector<2x16xf32>
    %cst_40 = arith.constant 1.000000e+00 : f32
    %78 = vector.broadcast %cst_40 : f32 to vector<2x16xf32>
    %79 = arith.addf %78, %77 : vector<2x16xf32>
    %cst_41 = arith.constant 1.000000e+00 : f32
    %80 = vector.broadcast %cst_41 : f32 to vector<2x16xf32>
    %81 = arith.divf %80, %79 : vector<2x16xf32>
    %82 = vector.extract_strided_slice %73 {offsets = [0, 16], sizes = [2, 16], strides = [1, 1]} : vector<2x64xf32> to vector<2x16xf32>
    %cst_42 = arith.constant 0.000000e+00 : f32
    %83 = vector.broadcast %cst_42 : f32 to vector<2x16xf32>
    %84 = arith.subf %83, %82 : vector<2x16xf32>
    %85 = math.exp %84 : vector<2x16xf32>
    %cst_43 = arith.constant 1.000000e+00 : f32
    %86 = vector.broadcast %cst_43 : f32 to vector<2x16xf32>
    %87 = arith.addf %86, %85 : vector<2x16xf32>
    %cst_44 = arith.constant 1.000000e+00 : f32
    %88 = vector.broadcast %cst_44 : f32 to vector<2x16xf32>
    %89 = arith.divf %88, %87 : vector<2x16xf32>
    %90 = vector.extract_strided_slice %73 {offsets = [0, 32], sizes = [2, 16], strides = [1, 1]} : vector<2x64xf32> to vector<2x16xf32>
    %91 = math.tanh %90 : vector<2x16xf32>
    %92 = vector.extract_strided_slice %73 {offsets = [0, 48], sizes = [2, 16], strides = [1, 1]} : vector<2x64xf32> to vector<2x16xf32>
    %cst_45 = arith.constant 0.000000e+00 : f32
    %93 = vector.broadcast %cst_45 : f32 to vector<2x16xf32>
    %94 = arith.subf %93, %92 : vector<2x16xf32>
    %95 = math.exp %94 : vector<2x16xf32>
    %cst_46 = arith.constant 1.000000e+00 : f32
    %96 = vector.broadcast %cst_46 : f32 to vector<2x16xf32>
    %97 = arith.addf %96, %95 : vector<2x16xf32>
    %cst_47 = arith.constant 1.000000e+00 : f32
    %98 = vector.broadcast %cst_47 : f32 to vector<2x16xf32>
    %99 = arith.divf %98, %97 : vector<2x16xf32>
    %100 = arith.mulf %89, %57 : vector<2x16xf32>
    %101 = arith.mulf %81, %91 : vector<2x16xf32>
    %102 = arith.addf %100, %101 : vector<2x16xf32>
    %103 = math.tanh %102 : vector<2x16xf32>
    %104 = arith.mulf %99, %103 : vector<2x16xf32>
    %c0_48 = arith.constant 0 : index
    %105 = arith.index_cast %67 : i32 to index
    %c0_49 = arith.constant 0 : index
    %c0_50 = arith.constant 0 : index
    %106 = vector.load %arg7[%c0_48, %105, %c0_49, %c0_50] : memref<1x8x2x16xf32, #tpu.memory_space<vmem>>, vector<1x1x2x16xf32>
    %107 = vector.shape_cast %106 : vector<1x1x2x16xf32> to vector<2x16xf32>
    %108 = vector.shape_cast %104 : vector<2x16xf32> to vector<1x1x2x16xf32>
    tpu.vector_store %arg7[%c0_48, %105, %c0_49, %c0_50], %108 {strides = array<i32>} : memref<1x8x2x16xf32, #tpu.memory_space<vmem>>, vector<1x1x2x16xf32>,
    %c2_i32_51 = arith.constant 2 : i32
    %c2_i32_52 = arith.constant 2 : i32
    %109 = arith.muli %c2_i32_52, %c2_i32_51 : i32
    %c7_i32_53 = arith.constant 7 : i32
    %110 = arith.subi %c7_i32_53, %109 : i32
    %111 = arith.muli %arg0, %110 : i32
    %112 = arith.addi %111, %c2_i32_51 : i32
    %c2_i32_54 = arith.constant 2 : i32
    %113 = arith.muli %112, %c2_i32_54 : i32
    %114 = arith.index_cast %113 : i32 to index
    %c0_55 = arith.constant 0 : index
    %115 = vector.load %arg8[%114, %c0_55] : memref<16x64xf32, #tpu.memory_space<vmem>>, vector<2x64xf32>
    %116 = arith.truncf %104 : vector<2x16xf32> to vector<2x16xbf16>
    %cst_56 = arith.constant dense<0.000000e+00> : vector<2x64xf32>
    %117 = tpu.matmul %116, %1, %cst_56 {dimension_numbers = #tpu.dot_dimension_numbers<[1], [0], [0], [1], [0, 0, 1, 1], [], []>} : vector<2x16xbf16>, vector<16x64xbf16>, vector<2x64xf32> -> vector<2x64xf32>
    %118 = arith.addf %115, %117 : vector<2x64xf32>
    %119 = vector.extract_strided_slice %118 {offsets = [0, 0], sizes = [2, 16], strides = [1, 1]} : vector<2x64xf32> to vector<2x16xf32>
    %cst_57 = arith.constant 0.000000e+00 : f32
    %120 = vector.broadcast %cst_57 : f32 to vector<2x16xf32>
    %121 = arith.subf %120, %119 : vector<2x16xf32>
    %122 = math.exp %121 : vector<2x16xf32>
    %cst_58 = arith.constant 1.000000e+00 : f32
    %123 = vector.broadcast %cst_58 : f32 to vector<2x16xf32>
    %124 = arith.addf %123, %122 : vector<2x16xf32>
    %cst_59 = arith.constant 1.000000e+00 : f32
    %125 = vector.broadcast %cst_59 : f32 to vector<2x16xf32>
    %126 = arith.divf %125, %124 : vector<2x16xf32>
    %127 = vector.extract_strided_slice %118 {offsets = [0, 16], sizes = [2, 16], strides = [1, 1]} : vector<2x64xf32> to vector<2x16xf32>
    %cst_60 = arith.constant 0.000000e+00 : f32
    %128 = vector.broadcast %cst_60 : f32 to vector<2x16xf32>
    %129 = arith.subf %128, %127 : vector<2x16xf32>
    %130 = math.exp %129 : vector<2x16xf32>
    %cst_61 = arith.constant 1.000000e+00 : f32
    %131 = vector.broadcast %cst_61 : f32 to vector<2x16xf32>
    %132 = arith.addf %131, %130 : vector<2x16xf32>
    %cst_62 = arith.constant 1.000000e+00 : f32
    %133 = vector.broadcast %cst_62 : f32 to vector<2x16xf32>
    %134 = arith.divf %133, %132 : vector<2x16xf32>
    %135 = vector.extract_strided_slice %118 {offsets = [0, 32], sizes = [2, 16], strides = [1, 1]} : vector<2x64xf32> to vector<2x16xf32>
    %136 = math.tanh %135 : vector<2x16xf32>
    %137 = vector.extract_strided_slice %118 {offsets = [0, 48], sizes = [2, 16], strides = [1, 1]} : vector<2x64xf32> to vector<2x16xf32>
    %cst_63 = arith.constant 0.000000e+00 : f32
    %138 = vector.broadcast %cst_63 : f32 to vector<2x16xf32>
    %139 = arith.subf %138, %137 : vector<2x16xf32>
    %140 = math.exp %139 : vector<2x16xf32>
    %cst_64 = arith.constant 1.000000e+00 : f32
    %141 = vector.broadcast %cst_64 : f32 to vector<2x16xf32>
    %142 = arith.addf %141, %140 : vector<2x16xf32>
    %cst_65 = arith.constant 1.000000e+00 : f32
    %143 = vector.broadcast %cst_65 : f32 to vector<2x16xf32>
    %144 = arith.divf %143, %142 : vector<2x16xf32>
    %145 = arith.mulf %134, %102 : vector<2x16xf32>
    %146 = arith.mulf %126, %136 : vector<2x16xf32>
    %147 = arith.addf %145, %146 : vector<2x16xf32>
    %148 = math.tanh %147 : vector<2x16xf32>
    %149 = arith.mulf %144, %148 : vector<2x16xf32>
    %c0_66 = arith.constant 0 : index
    %150 = arith.index_cast %112 : i32 to index
    %c0_67 = arith.constant 0 : index
    %c0_68 = arith.constant 0 : index
    %151 = vector.load %arg7[%c0_66, %150, %c0_67, %c0_68] : memref<1x8x2x16xf32, #tpu.memory_space<vmem>>, vector<1x1x2x16xf32>
    %152 = vector.shape_cast %151 : vector<1x1x2x16xf32> to vector<2x16xf32>
    %153 = vector.shape_cast %149 : vector<2x16xf32> to vector<1x1x2x16xf32>
    tpu.vector_store %arg7[%c0_66, %150, %c0_67, %c0_68], %153 {strides = array<i32>} : memref<1x8x2x16xf32, #tpu.memory_space<vmem>>, vector<1x1x2x16xf32>,
    %c3_i32 = arith.constant 3 : i32
    %c2_i32_69 = arith.constant 2 : i32
    %154 = arith.muli %c2_i32_69, %c3_i32 : i32
    %c7_i32_70 = arith.constant 7 : i32
    %155 = arith.subi %c7_i32_70, %154 : i32
    %156 = arith.muli %arg0, %155 : i32
    %157 = arith.addi %156, %c3_i32 : i32
    %c2_i32_71 = arith.constant 2 : i32
    %158 = arith.muli %157, %c2_i32_71 : i32
    %159 = arith.index_cast %158 : i32 to index
    %c0_72 = arith.constant 0 : index
    %160 = vector.load %arg8[%159, %c0_72] : memref<16x64xf32, #tpu.memory_space<vmem>>, vector<2x64xf32>
    %161 = arith.truncf %149 : vector<2x16xf32> to vector<2x16xbf16>
    %cst_73 = arith.constant dense<0.000000e+00> : vector<2x64xf32>
    %162 = tpu.matmul %161, %1, %cst_73 {dimension_numbers = #tpu.dot_dimension_numbers<[1], [0], [0], [1], [0, 0, 1, 1], [], []>} : vector<2x16xbf16>, vector<16x64xbf16>, vector<2x64xf32> -> vector<2x64xf32>
    %163 = arith.addf %160, %162 : vector<2x64xf32>
    %164 = vector.extract_strided_slice %163 {offsets = [0, 0], sizes = [2, 16], strides = [1, 1]} : vector<2x64xf32> to vector<2x16xf32>
    %cst_74 = arith.constant 0.000000e+00 : f32
    %165 = vector.broadcast %cst_74 : f32 to vector<2x16xf32>
    %166 = arith.subf %165, %164 : vector<2x16xf32>
    %167 = math.exp %166 : vector<2x16xf32>
    %cst_75 = arith.constant 1.000000e+00 : f32
    %168 = vector.broadcast %cst_75 : f32 to vector<2x16xf32>
    %169 = arith.addf %168, %167 : vector<2x16xf32>
    %cst_76 = arith.constant 1.000000e+00 : f32
    %170 = vector.broadcast %cst_76 : f32 to vector<2x16xf32>
    %171 = arith.divf %170, %169 : vector<2x16xf32>
    %172 = vector.extract_strided_slice %163 {offsets = [0, 16], sizes = [2, 16], strides = [1, 1]} : vector<2x64xf32> to vector<2x16xf32>
    %cst_77 = arith.constant 0.000000e+00 : f32
    %173 = vector.broadcast %cst_77 : f32 to vector<2x16xf32>
    %174 = arith.subf %173, %172 : vector<2x16xf32>
    %175 = math.exp %174 : vector<2x16xf32>
    %cst_78 = arith.constant 1.000000e+00 : f32
    %176 = vector.broadcast %cst_78 : f32 to vector<2x16xf32>
    %177 = arith.addf %176, %175 : vector<2x16xf32>
    %cst_79 = arith.constant 1.000000e+00 : f32
    %178 = vector.broadcast %cst_79 : f32 to vector<2x16xf32>
    %179 = arith.divf %178, %177 : vector<2x16xf32>
    %180 = vector.extract_strided_slice %163 {offsets = [0, 32], sizes = [2, 16], strides = [1, 1]} : vector<2x64xf32> to vector<2x16xf32>
    %181 = math.tanh %180 : vector<2x16xf32>
    %182 = vector.extract_strided_slice %163 {offsets = [0, 48], sizes = [2, 16], strides = [1, 1]} : vector<2x64xf32> to vector<2x16xf32>
    %cst_80 = arith.constant 0.000000e+00 : f32
    %183 = vector.broadcast %cst_80 : f32 to vector<2x16xf32>
    %184 = arith.subf %183, %182 : vector<2x16xf32>
    %185 = math.exp %184 : vector<2x16xf32>
    %cst_81 = arith.constant 1.000000e+00 : f32
    %186 = vector.broadcast %cst_81 : f32 to vector<2x16xf32>
    %187 = arith.addf %186, %185 : vector<2x16xf32>
    %cst_82 = arith.constant 1.000000e+00 : f32
    %188 = vector.broadcast %cst_82 : f32 to vector<2x16xf32>
    %189 = arith.divf %188, %187 : vector<2x16xf32>
    %190 = arith.mulf %179, %147 : vector<2x16xf32>
    %191 = arith.mulf %171, %181 : vector<2x16xf32>
    %192 = arith.addf %190, %191 : vector<2x16xf32>
    %193 = math.tanh %192 : vector<2x16xf32>
    %194 = arith.mulf %189, %193 : vector<2x16xf32>
    %c0_83 = arith.constant 0 : index
    %195 = arith.index_cast %157 : i32 to index
    %c0_84 = arith.constant 0 : index
    %c0_85 = arith.constant 0 : index
    %196 = vector.load %arg7[%c0_83, %195, %c0_84, %c0_85] : memref<1x8x2x16xf32, #tpu.memory_space<vmem>>, vector<1x1x2x16xf32>
    %197 = vector.shape_cast %196 : vector<1x1x2x16xf32> to vector<2x16xf32>
    %198 = vector.shape_cast %194 : vector<2x16xf32> to vector<1x1x2x16xf32>
    tpu.vector_store %arg7[%c0_83, %195, %c0_84, %c0_85], %198 {strides = array<i32>} : memref<1x8x2x16xf32, #tpu.memory_space<vmem>>, vector<1x1x2x16xf32>,
    %c4_i32 = arith.constant 4 : i32
    %c2_i32_86 = arith.constant 2 : i32
    %199 = arith.muli %c2_i32_86, %c4_i32 : i32
    %c7_i32_87 = arith.constant 7 : i32
    %200 = arith.subi %c7_i32_87, %199 : i32
    %201 = arith.muli %arg0, %200 : i32
    %202 = arith.addi %201, %c4_i32 : i32
    %c2_i32_88 = arith.constant 2 : i32
    %203 = arith.muli %202, %c2_i32_88 : i32
    %204 = arith.index_cast %203 : i32 to index
    %c0_89 = arith.constant 0 : index
    %205 = vector.load %arg8[%204, %c0_89] : memref<16x64xf32, #tpu.memory_space<vmem>>, vector<2x64xf32>
    %206 = arith.truncf %194 : vector<2x16xf32> to vector<2x16xbf16>
    %cst_90 = arith.constant dense<0.000000e+00> : vector<2x64xf32>
    %207 = tpu.matmul %206, %1, %cst_90 {dimension_numbers = #tpu.dot_dimension_numbers<[1], [0], [0], [1], [0, 0, 1, 1], [], []>} : vector<2x16xbf16>, vector<16x64xbf16>, vector<2x64xf32> -> vector<2x64xf32>
    %208 = arith.addf %205, %207 : vector<2x64xf32>
    %209 = vector.extract_strided_slice %208 {offsets = [0, 0], sizes = [2, 16], strides = [1, 1]} : vector<2x64xf32> to vector<2x16xf32>
    %cst_91 = arith.constant 0.000000e+00 : f32
    %210 = vector.broadcast %cst_91 : f32 to vector<2x16xf32>
    %211 = arith.subf %210, %209 : vector<2x16xf32>
    %212 = math.exp %211 : vector<2x16xf32>
    %cst_92 = arith.constant 1.000000e+00 : f32
    %213 = vector.broadcast %cst_92 : f32 to vector<2x16xf32>
    %214 = arith.addf %213, %212 : vector<2x16xf32>
    %cst_93 = arith.constant 1.000000e+00 : f32
    %215 = vector.broadcast %cst_93 : f32 to vector<2x16xf32>
    %216 = arith.divf %215, %214 : vector<2x16xf32>
    %217 = vector.extract_strided_slice %208 {offsets = [0, 16], sizes = [2, 16], strides = [1, 1]} : vector<2x64xf32> to vector<2x16xf32>
    %cst_94 = arith.constant 0.000000e+00 : f32
    %218 = vector.broadcast %cst_94 : f32 to vector<2x16xf32>
    %219 = arith.subf %218, %217 : vector<2x16xf32>
    %220 = math.exp %219 : vector<2x16xf32>
    %cst_95 = arith.constant 1.000000e+00 : f32
    %221 = vector.broadcast %cst_95 : f32 to vector<2x16xf32>
    %222 = arith.addf %221, %220 : vector<2x16xf32>
    %cst_96 = arith.constant 1.000000e+00 : f32
    %223 = vector.broadcast %cst_96 : f32 to vector<2x16xf32>
    %224 = arith.divf %223, %222 : vector<2x16xf32>
    %225 = vector.extract_strided_slice %208 {offsets = [0, 32], sizes = [2, 16], strides = [1, 1]} : vector<2x64xf32> to vector<2x16xf32>
    %226 = math.tanh %225 : vector<2x16xf32>
    %227 = vector.extract_strided_slice %208 {offsets = [0, 48], sizes = [2, 16], strides = [1, 1]} : vector<2x64xf32> to vector<2x16xf32>
    %cst_97 = arith.constant 0.000000e+00 : f32
    %228 = vector.broadcast %cst_97 : f32 to vector<2x16xf32>
    %229 = arith.subf %228, %227 : vector<2x16xf32>
    %230 = math.exp %229 : vector<2x16xf32>
    %cst_98 = arith.constant 1.000000e+00 : f32
    %231 = vector.broadcast %cst_98 : f32 to vector<2x16xf32>
    %232 = arith.addf %231, %230 : vector<2x16xf32>
    %cst_99 = arith.constant 1.000000e+00 : f32
    %233 = vector.broadcast %cst_99 : f32 to vector<2x16xf32>
    %234 = arith.divf %233, %232 : vector<2x16xf32>
    %235 = arith.mulf %224, %192 : vector<2x16xf32>
    %236 = arith.mulf %216, %226 : vector<2x16xf32>
    %237 = arith.addf %235, %236 : vector<2x16xf32>
    %238 = math.tanh %237 : vector<2x16xf32>
    %239 = arith.mulf %234, %238 : vector<2x16xf32>
    %c0_100 = arith.constant 0 : index
    %240 = arith.index_cast %202 : i32 to index
    %c0_101 = arith.constant 0 : index
    %c0_102 = arith.constant 0 : index
    %241 = vector.load %arg7[%c0_100, %240, %c0_101, %c0_102] : memref<1x8x2x16xf32, #tpu.memory_space<vmem>>, vector<1x1x2x16xf32>
    %242 = vector.shape_cast %241 : vector<1x1x2x16xf32> to vector<2x16xf32>
    %243 = vector.shape_cast %239 : vector<2x16xf32> to vector<1x1x2x16xf32>
    tpu.vector_store %arg7[%c0_100, %240, %c0_101, %c0_102], %243 {strides = array<i32>} : memref<1x8x2x16xf32, #tpu.memory_space<vmem>>, vector<1x1x2x16xf32>,
    %c5_i32 = arith.constant 5 : i32
    %c2_i32_103 = arith.constant 2 : i32
    %244 = arith.muli %c2_i32_103, %c5_i32 : i32
    %c7_i32_104 = arith.constant 7 : i32
    %245 = arith.subi %c7_i32_104, %244 : i32
    %246 = arith.muli %arg0, %245 : i32
    %247 = arith.addi %246, %c5_i32 : i32
    %c2_i32_105 = arith.constant 2 : i32
    %248 = arith.muli %247, %c2_i32_105 : i32
    %249 = arith.index_cast %248 : i32 to index
    %c0_106 = arith.constant 0 : index
    %250 = vector.load %arg8[%249, %c0_106] : memref<16x64xf32, #tpu.memory_space<vmem>>, vector<2x64xf32>
    %251 = arith.truncf %239 : vector<2x16xf32> to vector<2x16xbf16>
    %cst_107 = arith.constant dense<0.000000e+00> : vector<2x64xf32>
    %252 = tpu.matmul %251, %1, %cst_107 {dimension_numbers = #tpu.dot_dimension_numbers<[1], [0], [0], [1], [0, 0, 1, 1], [], []>} : vector<2x16xbf16>, vector<16x64xbf16>, vector<2x64xf32> -> vector<2x64xf32>
    %253 = arith.addf %250, %252 : vector<2x64xf32>
    %254 = vector.extract_strided_slice %253 {offsets = [0, 0], sizes = [2, 16], strides = [1, 1]} : vector<2x64xf32> to vector<2x16xf32>
    %cst_108 = arith.constant 0.000000e+00 : f32
    %255 = vector.broadcast %cst_108 : f32 to vector<2x16xf32>
    %256 = arith.subf %255, %254 : vector<2x16xf32>
    %257 = math.exp %256 : vector<2x16xf32>
    %cst_109 = arith.constant 1.000000e+00 : f32
    %258 = vector.broadcast %cst_109 : f32 to vector<2x16xf32>
    %259 = arith.addf %258, %257 : vector<2x16xf32>
    %cst_110 = arith.constant 1.000000e+00 : f32
    %260 = vector.broadcast %cst_110 : f32 to vector<2x16xf32>
    %261 = arith.divf %260, %259 : vector<2x16xf32>
    %262 = vector.extract_strided_slice %253 {offsets = [0, 16], sizes = [2, 16], strides = [1, 1]} : vector<2x64xf32> to vector<2x16xf32>
    %cst_111 = arith.constant 0.000000e+00 : f32
    %263 = vector.broadcast %cst_111 : f32 to vector<2x16xf32>
    %264 = arith.subf %263, %262 : vector<2x16xf32>
    %265 = math.exp %264 : vector<2x16xf32>
    %cst_112 = arith.constant 1.000000e+00 : f32
    %266 = vector.broadcast %cst_112 : f32 to vector<2x16xf32>
    %267 = arith.addf %266, %265 : vector<2x16xf32>
    %cst_113 = arith.constant 1.000000e+00 : f32
    %268 = vector.broadcast %cst_113 : f32 to vector<2x16xf32>
    %269 = arith.divf %268, %267 : vector<2x16xf32>
    %270 = vector.extract_strided_slice %253 {offsets = [0, 32], sizes = [2, 16], strides = [1, 1]} : vector<2x64xf32> to vector<2x16xf32>
    %271 = math.tanh %270 : vector<2x16xf32>
    %272 = vector.extract_strided_slice %253 {offsets = [0, 48], sizes = [2, 16], strides = [1, 1]} : vector<2x64xf32> to vector<2x16xf32>
    %cst_114 = arith.constant 0.000000e+00 : f32
    %273 = vector.broadcast %cst_114 : f32 to vector<2x16xf32>
    %274 = arith.subf %273, %272 : vector<2x16xf32>
    %275 = math.exp %274 : vector<2x16xf32>
    %cst_115 = arith.constant 1.000000e+00 : f32
    %276 = vector.broadcast %cst_115 : f32 to vector<2x16xf32>
    %277 = arith.addf %276, %275 : vector<2x16xf32>
    %cst_116 = arith.constant 1.000000e+00 : f32
    %278 = vector.broadcast %cst_116 : f32 to vector<2x16xf32>
    %279 = arith.divf %278, %277 : vector<2x16xf32>
    %280 = arith.mulf %269, %237 : vector<2x16xf32>
    %281 = arith.mulf %261, %271 : vector<2x16xf32>
    %282 = arith.addf %280, %281 : vector<2x16xf32>
    %283 = math.tanh %282 : vector<2x16xf32>
    %284 = arith.mulf %279, %283 : vector<2x16xf32>
    %c0_117 = arith.constant 0 : index
    %285 = arith.index_cast %247 : i32 to index
    %c0_118 = arith.constant 0 : index
    %c0_119 = arith.constant 0 : index
    %286 = vector.load %arg7[%c0_117, %285, %c0_118, %c0_119] : memref<1x8x2x16xf32, #tpu.memory_space<vmem>>, vector<1x1x2x16xf32>
    %287 = vector.shape_cast %286 : vector<1x1x2x16xf32> to vector<2x16xf32>
    %288 = vector.shape_cast %284 : vector<2x16xf32> to vector<1x1x2x16xf32>
    tpu.vector_store %arg7[%c0_117, %285, %c0_118, %c0_119], %288 {strides = array<i32>} : memref<1x8x2x16xf32, #tpu.memory_space<vmem>>, vector<1x1x2x16xf32>,
    %c6_i32 = arith.constant 6 : i32
    %c2_i32_120 = arith.constant 2 : i32
    %289 = arith.muli %c2_i32_120, %c6_i32 : i32
    %c7_i32_121 = arith.constant 7 : i32
    %290 = arith.subi %c7_i32_121, %289 : i32
    %291 = arith.muli %arg0, %290 : i32
    %292 = arith.addi %291, %c6_i32 : i32
    %c2_i32_122 = arith.constant 2 : i32
    %293 = arith.muli %292, %c2_i32_122 : i32
    %294 = arith.index_cast %293 : i32 to index
    %c0_123 = arith.constant 0 : index
    %295 = vector.load %arg8[%294, %c0_123] : memref<16x64xf32, #tpu.memory_space<vmem>>, vector<2x64xf32>
    %296 = arith.truncf %284 : vector<2x16xf32> to vector<2x16xbf16>
    %cst_124 = arith.constant dense<0.000000e+00> : vector<2x64xf32>
    %297 = tpu.matmul %296, %1, %cst_124 {dimension_numbers = #tpu.dot_dimension_numbers<[1], [0], [0], [1], [0, 0, 1, 1], [], []>} : vector<2x16xbf16>, vector<16x64xbf16>, vector<2x64xf32> -> vector<2x64xf32>
    %298 = arith.addf %295, %297 : vector<2x64xf32>
    %299 = vector.extract_strided_slice %298 {offsets = [0, 0], sizes = [2, 16], strides = [1, 1]} : vector<2x64xf32> to vector<2x16xf32>
    %cst_125 = arith.constant 0.000000e+00 : f32
    %300 = vector.broadcast %cst_125 : f32 to vector<2x16xf32>
    %301 = arith.subf %300, %299 : vector<2x16xf32>
    %302 = math.exp %301 : vector<2x16xf32>
    %cst_126 = arith.constant 1.000000e+00 : f32
    %303 = vector.broadcast %cst_126 : f32 to vector<2x16xf32>
    %304 = arith.addf %303, %302 : vector<2x16xf32>
    %cst_127 = arith.constant 1.000000e+00 : f32
    %305 = vector.broadcast %cst_127 : f32 to vector<2x16xf32>
    %306 = arith.divf %305, %304 : vector<2x16xf32>
    %307 = vector.extract_strided_slice %298 {offsets = [0, 16], sizes = [2, 16], strides = [1, 1]} : vector<2x64xf32> to vector<2x16xf32>
    %cst_128 = arith.constant 0.000000e+00 : f32
    %308 = vector.broadcast %cst_128 : f32 to vector<2x16xf32>
    %309 = arith.subf %308, %307 : vector<2x16xf32>
    %310 = math.exp %309 : vector<2x16xf32>
    %cst_129 = arith.constant 1.000000e+00 : f32
    %311 = vector.broadcast %cst_129 : f32 to vector<2x16xf32>
    %312 = arith.addf %311, %310 : vector<2x16xf32>
    %cst_130 = arith.constant 1.000000e+00 : f32
    %313 = vector.broadcast %cst_130 : f32 to vector<2x16xf32>
    %314 = arith.divf %313, %312 : vector<2x16xf32>
    %315 = vector.extract_strided_slice %298 {offsets = [0, 32], sizes = [2, 16], strides = [1, 1]} : vector<2x64xf32> to vector<2x16xf32>
    %316 = math.tanh %315 : vector<2x16xf32>
    %317 = vector.extract_strided_slice %298 {offsets = [0, 48], sizes = [2, 16], strides = [1, 1]} : vector<2x64xf32> to vector<2x16xf32>
    %cst_131 = arith.constant 0.000000e+00 : f32
    %318 = vector.broadcast %cst_131 : f32 to vector<2x16xf32>
    %319 = arith.subf %318, %317 : vector<2x16xf32>
    %320 = math.exp %319 : vector<2x16xf32>
    %cst_132 = arith.constant 1.000000e+00 : f32
    %321 = vector.broadcast %cst_132 : f32 to vector<2x16xf32>
    %322 = arith.addf %321, %320 : vector<2x16xf32>
    %cst_133 = arith.constant 1.000000e+00 : f32
    %323 = vector.broadcast %cst_133 : f32 to vector<2x16xf32>
    %324 = arith.divf %323, %322 : vector<2x16xf32>
    %325 = arith.mulf %314, %282 : vector<2x16xf32>
    %326 = arith.mulf %306, %316 : vector<2x16xf32>
    %327 = arith.addf %325, %326 : vector<2x16xf32>
    %328 = math.tanh %327 : vector<2x16xf32>
    %329 = arith.mulf %324, %328 : vector<2x16xf32>
    %c0_134 = arith.constant 0 : index
    %330 = arith.index_cast %292 : i32 to index
    %c0_135 = arith.constant 0 : index
    %c0_136 = arith.constant 0 : index
    %331 = vector.load %arg7[%c0_134, %330, %c0_135, %c0_136] : memref<1x8x2x16xf32, #tpu.memory_space<vmem>>, vector<1x1x2x16xf32>
    %332 = vector.shape_cast %331 : vector<1x1x2x16xf32> to vector<2x16xf32>
    %333 = vector.shape_cast %329 : vector<2x16xf32> to vector<1x1x2x16xf32>
    tpu.vector_store %arg7[%c0_134, %330, %c0_135, %c0_136], %333 {strides = array<i32>} : memref<1x8x2x16xf32, #tpu.memory_space<vmem>>, vector<1x1x2x16xf32>,
    %c7_i32_137 = arith.constant 7 : i32
    %c2_i32_138 = arith.constant 2 : i32
    %334 = arith.muli %c2_i32_138, %c7_i32_137 : i32
    %c7_i32_139 = arith.constant 7 : i32
    %335 = arith.subi %c7_i32_139, %334 : i32
    %336 = arith.muli %arg0, %335 : i32
    %337 = arith.addi %336, %c7_i32_137 : i32
    %c2_i32_140 = arith.constant 2 : i32
    %338 = arith.muli %337, %c2_i32_140 : i32
    %339 = arith.index_cast %338 : i32 to index
    %c0_141 = arith.constant 0 : index
    %340 = vector.load %arg8[%339, %c0_141] : memref<16x64xf32, #tpu.memory_space<vmem>>, vector<2x64xf32>
    %341 = arith.truncf %329 : vector<2x16xf32> to vector<2x16xbf16>
    %cst_142 = arith.constant dense<0.000000e+00> : vector<2x64xf32>
    %342 = tpu.matmul %341, %1, %cst_142 {dimension_numbers = #tpu.dot_dimension_numbers<[1], [0], [0], [1], [0, 0, 1, 1], [], []>} : vector<2x16xbf16>, vector<16x64xbf16>, vector<2x64xf32> -> vector<2x64xf32>
    %343 = arith.addf %340, %342 : vector<2x64xf32>
    %344 = vector.extract_strided_slice %343 {offsets = [0, 0], sizes = [2, 16], strides = [1, 1]} : vector<2x64xf32> to vector<2x16xf32>
    %cst_143 = arith.constant 0.000000e+00 : f32
    %345 = vector.broadcast %cst_143 : f32 to vector<2x16xf32>
    %346 = arith.subf %345, %344 : vector<2x16xf32>
    %347 = math.exp %346 : vector<2x16xf32>
    %cst_144 = arith.constant 1.000000e+00 : f32
    %348 = vector.broadcast %cst_144 : f32 to vector<2x16xf32>
    %349 = arith.addf %348, %347 : vector<2x16xf32>
    %cst_145 = arith.constant 1.000000e+00 : f32
    %350 = vector.broadcast %cst_145 : f32 to vector<2x16xf32>
    %351 = arith.divf %350, %349 : vector<2x16xf32>
    %352 = vector.extract_strided_slice %343 {offsets = [0, 16], sizes = [2, 16], strides = [1, 1]} : vector<2x64xf32> to vector<2x16xf32>
    %cst_146 = arith.constant 0.000000e+00 : f32
    %353 = vector.broadcast %cst_146 : f32 to vector<2x16xf32>
    %354 = arith.subf %353, %352 : vector<2x16xf32>
    %355 = math.exp %354 : vector<2x16xf32>
    %cst_147 = arith.constant 1.000000e+00 : f32
    %356 = vector.broadcast %cst_147 : f32 to vector<2x16xf32>
    %357 = arith.addf %356, %355 : vector<2x16xf32>
    %cst_148 = arith.constant 1.000000e+00 : f32
    %358 = vector.broadcast %cst_148 : f32 to vector<2x16xf32>
    %359 = arith.divf %358, %357 : vector<2x16xf32>
    %360 = vector.extract_strided_slice %343 {offsets = [0, 32], sizes = [2, 16], strides = [1, 1]} : vector<2x64xf32> to vector<2x16xf32>
    %361 = math.tanh %360 : vector<2x16xf32>
    %362 = vector.extract_strided_slice %343 {offsets = [0, 48], sizes = [2, 16], strides = [1, 1]} : vector<2x64xf32> to vector<2x16xf32>
    %cst_149 = arith.constant 0.000000e+00 : f32
    %363 = vector.broadcast %cst_149 : f32 to vector<2x16xf32>
    %364 = arith.subf %363, %362 : vector<2x16xf32>
    %365 = math.exp %364 : vector<2x16xf32>
    %cst_150 = arith.constant 1.000000e+00 : f32
    %366 = vector.broadcast %cst_150 : f32 to vector<2x16xf32>
    %367 = arith.addf %366, %365 : vector<2x16xf32>
    %cst_151 = arith.constant 1.000000e+00 : f32
    %368 = vector.broadcast %cst_151 : f32 to vector<2x16xf32>
    %369 = arith.divf %368, %367 : vector<2x16xf32>
    %370 = arith.mulf %359, %327 : vector<2x16xf32>
    %371 = arith.mulf %351, %361 : vector<2x16xf32>
    %372 = arith.addf %370, %371 : vector<2x16xf32>
    %373 = math.tanh %372 : vector<2x16xf32>
    %374 = arith.mulf %369, %373 : vector<2x16xf32>
    %c0_152 = arith.constant 0 : index
    %375 = arith.index_cast %337 : i32 to index
    %c0_153 = arith.constant 0 : index
    %c0_154 = arith.constant 0 : index
    %376 = vector.load %arg7[%c0_152, %375, %c0_153, %c0_154] : memref<1x8x2x16xf32, #tpu.memory_space<vmem>>, vector<1x1x2x16xf32>
    %377 = vector.shape_cast %376 : vector<1x1x2x16xf32> to vector<2x16xf32>
    %378 = vector.shape_cast %374 : vector<2x16xf32> to vector<1x1x2x16xf32>
    tpu.vector_store %arg7[%c0_152, %375, %c0_153, %c0_154], %378 {strides = array<i32>} : memref<1x8x2x16xf32, #tpu.memory_space<vmem>>, vector<1x1x2x16xf32>,
    %c8_i32 = arith.constant 8 : i32
    return
  }
  func.func @transform_0(%arg0: i32) -> (i32, i32) {
    %c0_i32 = arith.constant 0 : i32
    %c0_i32_0 = arith.constant 0 : i32
    %c0_i32_1 = arith.constant 0 : i32
    return %c0_i32, %c0_i32_0 : i32, i32
  }
  func.func @transform_1(%arg0: i32) -> (i32, i32) {
    %c0_i32 = arith.constant 0 : i32
    %c0_i32_0 = arith.constant 0 : i32
    %c0_i32_1 = arith.constant 0 : i32
    return %c0_i32, %c0_i32_0 : i32, i32
  }
  func.func @transform_2(%arg0: i32) -> (i32, i32, i32) {
    %c0_i32 = arith.constant 0 : i32
    %c0_i32_0 = arith.constant 0 : i32
    %c0_i32_1 = arith.constant 0 : i32
    return %arg0, %c0_i32, %c0_i32_0 : i32, i32, i32
  }
  func.func @transform_3(%arg0: i32) -> (i32, i32, i32) {
    %c0_i32 = arith.constant 0 : i32
    %c0_i32_0 = arith.constant 0 : i32
    %c0_i32_1 = arith.constant 0 : i32
    return %arg0, %c0_i32, %c0_i32_0 : i32, i32, i32
  }
  func.func @transform_4(%arg0: i32) -> (i32, i32, i32) {
    %c0_i32 = arith.constant 0 : i32
    %c0_i32_0 = arith.constant 0 : i32
    %c0_i32_1 = arith.constant 0 : i32
    return %arg0, %c0_i32, %c0_i32_0 : i32, i32, i32
  }
  func.func @transform_5(%arg0: i32) -> (i32, i32, i32) {
    %c0_i32 = arith.constant 0 : i32
    %c0_i32_0 = arith.constant 0 : i32
    %c0_i32_1 = arith.constant 0 : i32
    return %arg0, %c0_i32, %c0_i32_0 : i32, i32, i32
  }
  func.func @transform_6(%arg0: i32) -> (i32, i32, i32, i32) {
    %c0_i32 = arith.constant 0 : i32
    %c0_i32_0 = arith.constant 0 : i32
    %c0_i32_1 = arith.constant 0 : i32
    %c0_i32_2 = arith.constant 0 : i32
    return %arg0, %c0_i32, %c0_i32_0, %c0_i32_1 : i32, i32, i32, i32
  }
}

module attributes {stable_mosaic.version = 11 : i64} {
  func.func @fc_kernel(%arg0: memref<16x16xf32, #tpu.memory_space<vmem>>, %arg1: memref<16x16xf32, #tpu.memory_space<vmem>>, %arg2: memref<16x5xbf16, #tpu.memory_space<vmem>>, %arg3: memref<16x5xbf16, #tpu.memory_space<vmem>>, %arg4: memref<1x5xf32, #tpu.memory_space<vmem>>, %arg5: memref<16x5xf32, #tpu.memory_space<vmem>>) attributes {dimension_semantics = [], scalar_prefetch = 0 : i64, scratch_operands = 0 : i64, tpu.core_type = #tpu.core_type<tc>} {
    %c0 = arith.constant 0 : index
    %c0_0 = arith.constant 0 : index
    %0 = vector.load %arg0[%c0, %c0_0] : memref<16x16xf32, #tpu.memory_space<vmem>>, vector<16x16xf32>
    %1 = arith.truncf %0 : vector<16x16xf32> to vector<16x16xbf16>
    %c0_1 = arith.constant 0 : index
    %c0_2 = arith.constant 0 : index
    %2 = vector.load %arg2[%c0_1, %c0_2] : memref<16x5xbf16, #tpu.memory_space<vmem>>, vector<16x5xbf16>
    %cst = arith.constant dense<0.000000e+00> : vector<16x5xf32>
    %3 = tpu.matmul %1, %2, %cst {dimension_numbers = #tpu.dot_dimension_numbers<[1], [0], [0], [1], [0, 0, 1, 1], [], []>} : vector<16x16xbf16>, vector<16x5xbf16>, vector<16x5xf32> -> vector<16x5xf32>
    %c0_3 = arith.constant 0 : index
    %c0_4 = arith.constant 0 : index
    %4 = vector.load %arg1[%c0_3, %c0_4] : memref<16x16xf32, #tpu.memory_space<vmem>>, vector<16x16xf32>
    %5 = arith.truncf %4 : vector<16x16xf32> to vector<16x16xbf16>
    %c0_5 = arith.constant 0 : index
    %c0_6 = arith.constant 0 : index
    %6 = vector.load %arg3[%c0_5, %c0_6] : memref<16x5xbf16, #tpu.memory_space<vmem>>, vector<16x5xbf16>
    %cst_7 = arith.constant dense<0.000000e+00> : vector<16x5xf32>
    %7 = tpu.matmul %5, %6, %cst_7 {dimension_numbers = #tpu.dot_dimension_numbers<[1], [0], [0], [1], [0, 0, 1, 1], [], []>} : vector<16x16xbf16>, vector<16x5xbf16>, vector<16x5xf32> -> vector<16x5xf32>
    %8 = arith.addf %3, %7 : vector<16x5xf32>
    %c0_8 = arith.constant 0 : index
    %c0_9 = arith.constant 0 : index
    %9 = vector.load %arg4[%c0_8, %c0_9] : memref<1x5xf32, #tpu.memory_space<vmem>>, vector<1x5xf32>
    %10 = vector.broadcast %9 : vector<1x5xf32> to vector<16x5xf32>
    %11 = arith.addf %8, %10 : vector<16x5xf32>
    %c0_10 = arith.constant 0 : index
    %c0_11 = arith.constant 0 : index
    %12 = vector.load %arg5[%c0_10, %c0_11] : memref<16x5xf32, #tpu.memory_space<vmem>>, vector<16x5xf32>
    tpu.vector_store %arg5[%c0_10, %c0_11], %11 {strides = array<i32>} : memref<16x5xf32, #tpu.memory_space<vmem>>, vector<16x5xf32>,
    return
  }
}

module attributes {stable_mosaic.version = 11 : i64} {
  func.func @bilstm_layer_kernel(%arg0: i32, %arg1: memref<16x16xf32, #tpu.memory_space<vmem>>, %arg2: memref<16x16xf32, #tpu.memory_space<vmem>>, %arg3: memref<1x16x64xbf16, #tpu.memory_space<vmem>>, %arg4: memref<1x16x64xbf16, #tpu.memory_space<vmem>>, %arg5: memref<1x16x64xbf16, #tpu.memory_space<vmem>>, %arg6: memref<1x1x64xf32, #tpu.memory_space<vmem>>, %arg7: memref<1x8x2x16xf32, #tpu.memory_space<vmem>>, %arg8: memref<16x64xf32, #tpu.memory_space<vmem>>) attributes {dimension_semantics = [#tpu.dimension_semantics<parallel>], iteration_bounds = array<i64: 2>, scalar_prefetch = 0 : i64, scratch_operands = 1 : i64, tpu.core_type = #tpu.core_type<tc>, window_params = [{pipeline_mode = #tpu.pipeline_mode<synchronous>, transform_indices = @transform_0, window_bounds = array<i64: 16, 16>}, {pipeline_mode = #tpu.pipeline_mode<synchronous>, transform_indices = @transform_1, window_bounds = array<i64: 16, 16>}, {transform_indices = @transform_2, window_bounds = array<i64: 1, 16, 64>}, {transform_indices = @transform_3, window_bounds = array<i64: 1, 16, 64>}, {transform_indices = @transform_4, window_bounds = array<i64: 1, 16, 64>}, {transform_indices = @transform_5, window_bounds = array<i64: 1, 1, 64>}, {transform_indices = @transform_6, window_bounds = array<i64: 1, 8, 2, 16>}]} {
    %c0 = arith.constant 0 : index
    %c0_0 = arith.constant 0 : index
    %c0_1 = arith.constant 0 : index
    %0 = vector.load %arg5[%c0, %c0_0, %c0_1] : memref<1x16x64xbf16, #tpu.memory_space<vmem>>, vector<1x16x64xbf16>
    %1 = vector.shape_cast %0 : vector<1x16x64xbf16> to vector<16x64xbf16>
    %c0_2 = arith.constant 0 : index
    %c0_3 = arith.constant 0 : index
    %c0_4 = arith.constant 0 : index
    %2 = vector.load %arg6[%c0_2, %c0_3, %c0_4] : memref<1x1x64xf32, #tpu.memory_space<vmem>>, vector<1x1x64xf32>
    %3 = vector.shape_cast %2 : vector<1x1x64xf32> to vector<1x64xf32>
    %c0_5 = arith.constant 0 : index
    %c0_6 = arith.constant 0 : index
    %4 = vector.load %arg1[%c0_5, %c0_6] : memref<16x16xf32, #tpu.memory_space<vmem>>, vector<16x16xf32>
    %5 = arith.truncf %4 : vector<16x16xf32> to vector<16x16xbf16>
    %c0_7 = arith.constant 0 : index
    %c0_8 = arith.constant 0 : index
    %c0_9 = arith.constant 0 : index
    %6 = vector.load %arg3[%c0_7, %c0_8, %c0_9] : memref<1x16x64xbf16, #tpu.memory_space<vmem>>, vector<1x16x64xbf16>
    %7 = vector.shape_cast %6 : vector<1x16x64xbf16> to vector<16x64xbf16>
    %cst = arith.constant dense<0.000000e+00> : vector<16x64xf32>
    %8 = tpu.matmul %5, %7, %cst {dimension_numbers = #tpu.dot_dimension_numbers<[1], [0], [0], [1], [0, 0, 1, 1], [], []>} : vector<16x16xbf16>, vector<16x64xbf16>, vector<16x64xf32> -> vector<16x64xf32>
    %9 = vector.broadcast %3 : vector<1x64xf32> to vector<16x64xf32>
    %10 = arith.addf %9, %8 : vector<16x64xf32>
    %c0_10 = arith.constant 0 : index
    %c0_11 = arith.constant 0 : index
    %11 = vector.load %arg2[%c0_10, %c0_11] : memref<16x16xf32, #tpu.memory_space<vmem>>, vector<16x16xf32>
    %12 = arith.truncf %11 : vector<16x16xf32> to vector<16x16xbf16>
    %c0_12 = arith.constant 0 : index
    %c0_13 = arith.constant 0 : index
    %c0_14 = arith.constant 0 : index
    %13 = vector.load %arg4[%c0_12, %c0_13, %c0_14] : memref<1x16x64xbf16, #tpu.memory_space<vmem>>, vector<1x16x64xbf16>
    %14 = vector.shape_cast %13 : vector<1x16x64xbf16> to vector<16x64xbf16>
    %cst_15 = arith.constant dense<0.000000e+00> : vector<16x64xf32>
    %15 = tpu.matmul %12, %14, %cst_15 {dimension_numbers = #tpu.dot_dimension_numbers<[1], [0], [0], [1], [0, 0, 1, 1], [], []>} : vector<16x16xbf16>, vector<16x64xbf16>, vector<16x64xf32> -> vector<16x64xf32>
    %16 = arith.addf %10, %15 : vector<16x64xf32>
    %c0_16 = arith.constant 0 : index
    %c0_17 = arith.constant 0 : index
    %17 = vector.load %arg8[%c0_16, %c0_17] : memref<16x64xf32, #tpu.memory_space<vmem>>, vector<16x64xf32>
    tpu.vector_store %arg8[%c0_16, %c0_17], %16 {strides = array<i32>} : memref<16x64xf32, #tpu.memory_space<vmem>>, vector<16x64xf32>,
    %cst_18 = arith.constant 0.000000e+00 : f32
    %18 = vector.broadcast %cst_18 : f32 to vector<2x16xf32>
    %c0_i32 = arith.constant 0 : i32
    %c2_i32 = arith.constant 2 : i32
    %19 = arith.muli %c2_i32, %c0_i32 : i32
    %c7_i32 = arith.constant 7 : i32
    %20 = arith.subi %c7_i32, %19 : i32
    %21 = arith.muli %arg0, %20 : i32
    %22 = arith.addi %21, %c0_i32 : i32
    %c2_i32_19 = arith.constant 2 : i32
    %23 = arith.muli %22, %c2_i32_19 : i32
    %24 = arith.index_cast %23 : i32 to index
    %c0_20 = arith.constant 0 : index
    %25 = vector.load %arg8[%24, %c0_20] : memref<16x64xf32, #tpu.memory_space<vmem>>, vector<2x64xf32>
    %26 = arith.truncf %18 : vector<2x16xf32> to vector<2x16xbf16>
    %cst_21 = arith.constant dense<0.000000e+00> : vector<2x64xf32>
    %27 = tpu.matmul %26, %1, %cst_21 {dimension_numbers = #tpu.dot_dimension_numbers<[1], [0], [0], [1], [0, 0, 1, 1], [], []>} : vector<2x16xbf16>, vector<16x64xbf16>, vector<2x64xf32> -> vector<2x64xf32>
    %28 = arith.addf %25, %27 : vector<2x64xf32>
    %29 = vector.extract_strided_slice %28 {offsets = [0, 0], sizes = [2, 16], strides = [1, 1]} : vector<2x64xf32> to vector<2x16xf32>
    %cst_22 = arith.constant 0.000000e+00 : f32
    %30 = vector.broadcast %cst_22 : f32 to vector<2x16xf32>
    %31 = arith.subf %30, %29 : vector<2x16xf32>
    %32 = math.exp %31 : vector<2x16xf32>
    %cst_23 = arith.constant 1.000000e+00 : f32
    %33 = vector.broadcast %cst_23 : f32 to vector<2x16xf32>
    %34 = arith.addf %33, %32 : vector<2x16xf32>
    %cst_24 = arith.constant 1.000000e+00 : f32
    %35 = vector.broadcast %cst_24 : f32 to vector<2x16xf32>
    %36 = arith.divf %35, %34 : vector<2x16xf32>
    %37 = vector.extract_strided_slice %28 {offsets = [0, 16], sizes = [2, 16], strides = [1, 1]} : vector<2x64xf32> to vector<2x16xf32>
    %cst_25 = arith.constant 0.000000e+00 : f32
    %38 = vector.broadcast %cst_25 : f32 to vector<2x16xf32>
    %39 = arith.subf %38, %37 : vector<2x16xf32>
    %40 = math.exp %39 : vector<2x16xf32>
    %cst_26 = arith.constant 1.000000e+00 : f32
    %41 = vector.broadcast %cst_26 : f32 to vector<2x16xf32>
    %42 = arith.addf %41, %40 : vector<2x16xf32>
    %cst_27 = arith.constant 1.000000e+00 : f32
    %43 = vector.broadcast %cst_27 : f32 to vector<2x16xf32>
    %44 = arith.divf %43, %42 : vector<2x16xf32>
    %45 = vector.extract_strided_slice %28 {offsets = [0, 32], sizes = [2, 16], strides = [1, 1]} : vector<2x64xf32> to vector<2x16xf32>
    %46 = math.tanh %45 : vector<2x16xf32>
    %47 = vector.extract_strided_slice %28 {offsets = [0, 48], sizes = [2, 16], strides = [1, 1]} : vector<2x64xf32> to vector<2x16xf32>
    %cst_28 = arith.constant 0.000000e+00 : f32
    %48 = vector.broadcast %cst_28 : f32 to vector<2x16xf32>
    %49 = arith.subf %48, %47 : vector<2x16xf32>
    %50 = math.exp %49 : vector<2x16xf32>
    %cst_29 = arith.constant 1.000000e+00 : f32
    %51 = vector.broadcast %cst_29 : f32 to vector<2x16xf32>
    %52 = arith.addf %51, %50 : vector<2x16xf32>
    %cst_30 = arith.constant 1.000000e+00 : f32
    %53 = vector.broadcast %cst_30 : f32 to vector<2x16xf32>
    %54 = arith.divf %53, %52 : vector<2x16xf32>
    %55 = arith.mulf %44, %18 : vector<2x16xf32>
    %56 = arith.mulf %36, %46 : vector<2x16xf32>
    %57 = arith.addf %55, %56 : vector<2x16xf32>
    %58 = math.tanh %57 : vector<2x16xf32>
    %59 = arith.mulf %54, %58 : vector<2x16xf32>
    %c0_31 = arith.constant 0 : index
    %60 = arith.index_cast %22 : i32 to index
    %c0_32 = arith.constant 0 : index
    %c0_33 = arith.constant 0 : index
    %61 = vector.load %arg7[%c0_31, %60, %c0_32, %c0_33] : memref<1x8x2x16xf32, #tpu.memory_space<vmem>>, vector<1x1x2x16xf32>
    %62 = vector.shape_cast %61 : vector<1x1x2x16xf32> to vector<2x16xf32>
    %63 = vector.shape_cast %59 : vector<2x16xf32> to vector<1x1x2x16xf32>
    tpu.vector_store %arg7[%c0_31, %60, %c0_32, %c0_33], %63 {strides = array<i32>} : memref<1x8x2x16xf32, #tpu.memory_space<vmem>>, vector<1x1x2x16xf32>,
    %c1_i32 = arith.constant 1 : i32
    %c2_i32_34 = arith.constant 2 : i32
    %64 = arith.muli %c2_i32_34, %c1_i32 : i32
    %c7_i32_35 = arith.constant 7 : i32
    %65 = arith.subi %c7_i32_35, %64 : i32
    %66 = arith.muli %arg0, %65 : i32
    %67 = arith.addi %66, %c1_i32 : i32
    %c2_i32_36 = arith.constant 2 : i32
    %68 = arith.muli %67, %c2_i32_36 : i32
    %69 = arith.index_cast %68 : i32 to index
    %c0_37 = arith.constant 0 : index
    %70 = vector.load %arg8[%69, %c0_37] : memref<16x64xf32, #tpu.memory_space<vmem>>, vector<2x64xf32>
    %71 = arith.truncf %59 : vector<2x16xf32> to vector<2x16xbf16>
    %cst_38 = arith.constant dense<0.000000e+00> : vector<2x64xf32>
    %72 = tpu.matmul %71, %1, %cst_38 {dimension_numbers = #tpu.dot_dimension_numbers<[1], [0], [0], [1], [0, 0, 1, 1], [], []>} : vector<2x16xbf16>, vector<16x64xbf16>, vector<2x64xf32> -> vector<2x64xf32>
    %73 = arith.addf %70, %72 : vector<2x64xf32>
    %74 = vector.extract_strided_slice %73 {offsets = [0, 0], sizes = [2, 16], strides = [1, 1]} : vector<2x64xf32> to vector<2x16xf32>
    %cst_39 = arith.constant 0.000000e+00 : f32
    %75 = vector.broadcast %cst_39 : f32 to vector<2x16xf32>
    %76 = arith.subf %75, %74 : vector<2x16xf32>
    %77 = math.exp %76 : vector<2x16xf32>
    %cst_40 = arith.constant 1.000000e+00 : f32
    %78 = vector.broadcast %cst_40 : f32 to vector<2x16xf32>
    %79 = arith.addf %78, %77 : vector<2x16xf32>
    %cst_41 = arith.constant 1.000000e+00 : f32
    %80 = vector.broadcast %cst_41 : f32 to vector<2x16xf32>
    %81 = arith.divf %80, %79 : vector<2x16xf32>
    %82 = vector.extract_strided_slice %73 {offsets = [0, 16], sizes = [2, 16], strides = [1, 1]} : vector<2x64xf32> to vector<2x16xf32>
    %cst_42 = arith.constant 0.000000e+00 : f32
    %83 = vector.broadcast %cst_42 : f32 to vector<2x16xf32>
    %84 = arith.subf %83, %82 : vector<2x16xf32>
    %85 = math.exp %84 : vector<2x16xf32>
    %cst_43 = arith.constant 1.000000e+00 : f32
    %86 = vector.broadcast %cst_43 : f32 to vector<2x16xf32>
    %87 = arith.addf %86, %85 : vector<2x16xf32>
    %cst_44 = arith.constant 1.000000e+00 : f32
    %88 = vector.broadcast %cst_44 : f32 to vector<2x16xf32>
    %89 = arith.divf %88, %87 : vector<2x16xf32>
    %90 = vector.extract_strided_slice %73 {offsets = [0, 32], sizes = [2, 16], strides = [1, 1]} : vector<2x64xf32> to vector<2x16xf32>
    %91 = math.tanh %90 : vector<2x16xf32>
    %92 = vector.extract_strided_slice %73 {offsets = [0, 48], sizes = [2, 16], strides = [1, 1]} : vector<2x64xf32> to vector<2x16xf32>
    %cst_45 = arith.constant 0.000000e+00 : f32
    %93 = vector.broadcast %cst_45 : f32 to vector<2x16xf32>
    %94 = arith.subf %93, %92 : vector<2x16xf32>
    %95 = math.exp %94 : vector<2x16xf32>
    %cst_46 = arith.constant 1.000000e+00 : f32
    %96 = vector.broadcast %cst_46 : f32 to vector<2x16xf32>
    %97 = arith.addf %96, %95 : vector<2x16xf32>
    %cst_47 = arith.constant 1.000000e+00 : f32
    %98 = vector.broadcast %cst_47 : f32 to vector<2x16xf32>
    %99 = arith.divf %98, %97 : vector<2x16xf32>
    %100 = arith.mulf %89, %57 : vector<2x16xf32>
    %101 = arith.mulf %81, %91 : vector<2x16xf32>
    %102 = arith.addf %100, %101 : vector<2x16xf32>
    %103 = math.tanh %102 : vector<2x16xf32>
    %104 = arith.mulf %99, %103 : vector<2x16xf32>
    %c0_48 = arith.constant 0 : index
    %105 = arith.index_cast %67 : i32 to index
    %c0_49 = arith.constant 0 : index
    %c0_50 = arith.constant 0 : index
    %106 = vector.load %arg7[%c0_48, %105, %c0_49, %c0_50] : memref<1x8x2x16xf32, #tpu.memory_space<vmem>>, vector<1x1x2x16xf32>
    %107 = vector.shape_cast %106 : vector<1x1x2x16xf32> to vector<2x16xf32>
    %108 = vector.shape_cast %104 : vector<2x16xf32> to vector<1x1x2x16xf32>
    tpu.vector_store %arg7[%c0_48, %105, %c0_49, %c0_50], %108 {strides = array<i32>} : memref<1x8x2x16xf32, #tpu.memory_space<vmem>>, vector<1x1x2x16xf32>,
    %c2_i32_51 = arith.constant 2 : i32
    %c2_i32_52 = arith.constant 2 : i32
    %109 = arith.muli %c2_i32_52, %c2_i32_51 : i32
    %c7_i32_53 = arith.constant 7 : i32
    %110 = arith.subi %c7_i32_53, %109 : i32
    %111 = arith.muli %arg0, %110 : i32
    %112 = arith.addi %111, %c2_i32_51 : i32
    %c2_i32_54 = arith.constant 2 : i32
    %113 = arith.muli %112, %c2_i32_54 : i32
    %114 = arith.index_cast %113 : i32 to index
    %c0_55 = arith.constant 0 : index
    %115 = vector.load %arg8[%114, %c0_55] : memref<16x64xf32, #tpu.memory_space<vmem>>, vector<2x64xf32>
    %116 = arith.truncf %104 : vector<2x16xf32> to vector<2x16xbf16>
    %cst_56 = arith.constant dense<0.000000e+00> : vector<2x64xf32>
    %117 = tpu.matmul %116, %1, %cst_56 {dimension_numbers = #tpu.dot_dimension_numbers<[1], [0], [0], [1], [0, 0, 1, 1], [], []>} : vector<2x16xbf16>, vector<16x64xbf16>, vector<2x64xf32> -> vector<2x64xf32>
    %118 = arith.addf %115, %117 : vector<2x64xf32>
    %119 = vector.extract_strided_slice %118 {offsets = [0, 0], sizes = [2, 16], strides = [1, 1]} : vector<2x64xf32> to vector<2x16xf32>
    %cst_57 = arith.constant 0.000000e+00 : f32
    %120 = vector.broadcast %cst_57 : f32 to vector<2x16xf32>
    %121 = arith.subf %120, %119 : vector<2x16xf32>
    %122 = math.exp %121 : vector<2x16xf32>
    %cst_58 = arith.constant 1.000000e+00 : f32
    %123 = vector.broadcast %cst_58 : f32 to vector<2x16xf32>
    %124 = arith.addf %123, %122 : vector<2x16xf32>
    %cst_59 = arith.constant 1.000000e+00 : f32
    %125 = vector.broadcast %cst_59 : f32 to vector<2x16xf32>
    %126 = arith.divf %125, %124 : vector<2x16xf32>
    %127 = vector.extract_strided_slice %118 {offsets = [0, 16], sizes = [2, 16], strides = [1, 1]} : vector<2x64xf32> to vector<2x16xf32>
    %cst_60 = arith.constant 0.000000e+00 : f32
    %128 = vector.broadcast %cst_60 : f32 to vector<2x16xf32>
    %129 = arith.subf %128, %127 : vector<2x16xf32>
    %130 = math.exp %129 : vector<2x16xf32>
    %cst_61 = arith.constant 1.000000e+00 : f32
    %131 = vector.broadcast %cst_61 : f32 to vector<2x16xf32>
    %132 = arith.addf %131, %130 : vector<2x16xf32>
    %cst_62 = arith.constant 1.000000e+00 : f32
    %133 = vector.broadcast %cst_62 : f32 to vector<2x16xf32>
    %134 = arith.divf %133, %132 : vector<2x16xf32>
    %135 = vector.extract_strided_slice %118 {offsets = [0, 32], sizes = [2, 16], strides = [1, 1]} : vector<2x64xf32> to vector<2x16xf32>
    %136 = math.tanh %135 : vector<2x16xf32>
    %137 = vector.extract_strided_slice %118 {offsets = [0, 48], sizes = [2, 16], strides = [1, 1]} : vector<2x64xf32> to vector<2x16xf32>
    %cst_63 = arith.constant 0.000000e+00 : f32
    %138 = vector.broadcast %cst_63 : f32 to vector<2x16xf32>
    %139 = arith.subf %138, %137 : vector<2x16xf32>
    %140 = math.exp %139 : vector<2x16xf32>
    %cst_64 = arith.constant 1.000000e+00 : f32
    %141 = vector.broadcast %cst_64 : f32 to vector<2x16xf32>
    %142 = arith.addf %141, %140 : vector<2x16xf32>
    %cst_65 = arith.constant 1.000000e+00 : f32
    %143 = vector.broadcast %cst_65 : f32 to vector<2x16xf32>
    %144 = arith.divf %143, %142 : vector<2x16xf32>
    %145 = arith.mulf %134, %102 : vector<2x16xf32>
    %146 = arith.mulf %126, %136 : vector<2x16xf32>
    %147 = arith.addf %145, %146 : vector<2x16xf32>
    %148 = math.tanh %147 : vector<2x16xf32>
    %149 = arith.mulf %144, %148 : vector<2x16xf32>
    %c0_66 = arith.constant 0 : index
    %150 = arith.index_cast %112 : i32 to index
    %c0_67 = arith.constant 0 : index
    %c0_68 = arith.constant 0 : index
    %151 = vector.load %arg7[%c0_66, %150, %c0_67, %c0_68] : memref<1x8x2x16xf32, #tpu.memory_space<vmem>>, vector<1x1x2x16xf32>
    %152 = vector.shape_cast %151 : vector<1x1x2x16xf32> to vector<2x16xf32>
    %153 = vector.shape_cast %149 : vector<2x16xf32> to vector<1x1x2x16xf32>
    tpu.vector_store %arg7[%c0_66, %150, %c0_67, %c0_68], %153 {strides = array<i32>} : memref<1x8x2x16xf32, #tpu.memory_space<vmem>>, vector<1x1x2x16xf32>,
    %c3_i32 = arith.constant 3 : i32
    %c2_i32_69 = arith.constant 2 : i32
    %154 = arith.muli %c2_i32_69, %c3_i32 : i32
    %c7_i32_70 = arith.constant 7 : i32
    %155 = arith.subi %c7_i32_70, %154 : i32
    %156 = arith.muli %arg0, %155 : i32
    %157 = arith.addi %156, %c3_i32 : i32
    %c2_i32_71 = arith.constant 2 : i32
    %158 = arith.muli %157, %c2_i32_71 : i32
    %159 = arith.index_cast %158 : i32 to index
    %c0_72 = arith.constant 0 : index
    %160 = vector.load %arg8[%159, %c0_72] : memref<16x64xf32, #tpu.memory_space<vmem>>, vector<2x64xf32>
    %161 = arith.truncf %149 : vector<2x16xf32> to vector<2x16xbf16>
    %cst_73 = arith.constant dense<0.000000e+00> : vector<2x64xf32>
    %162 = tpu.matmul %161, %1, %cst_73 {dimension_numbers = #tpu.dot_dimension_numbers<[1], [0], [0], [1], [0, 0, 1, 1], [], []>} : vector<2x16xbf16>, vector<16x64xbf16>, vector<2x64xf32> -> vector<2x64xf32>
    %163 = arith.addf %160, %162 : vector<2x64xf32>
    %164 = vector.extract_strided_slice %163 {offsets = [0, 0], sizes = [2, 16], strides = [1, 1]} : vector<2x64xf32> to vector<2x16xf32>
    %cst_74 = arith.constant 0.000000e+00 : f32
    %165 = vector.broadcast %cst_74 : f32 to vector<2x16xf32>
    %166 = arith.subf %165, %164 : vector<2x16xf32>
    %167 = math.exp %166 : vector<2x16xf32>
    %cst_75 = arith.constant 1.000000e+00 : f32
    %168 = vector.broadcast %cst_75 : f32 to vector<2x16xf32>
    %169 = arith.addf %168, %167 : vector<2x16xf32>
    %cst_76 = arith.constant 1.000000e+00 : f32
    %170 = vector.broadcast %cst_76 : f32 to vector<2x16xf32>
    %171 = arith.divf %170, %169 : vector<2x16xf32>
    %172 = vector.extract_strided_slice %163 {offsets = [0, 16], sizes = [2, 16], strides = [1, 1]} : vector<2x64xf32> to vector<2x16xf32>
    %cst_77 = arith.constant 0.000000e+00 : f32
    %173 = vector.broadcast %cst_77 : f32 to vector<2x16xf32>
    %174 = arith.subf %173, %172 : vector<2x16xf32>
    %175 = math.exp %174 : vector<2x16xf32>
    %cst_78 = arith.constant 1.000000e+00 : f32
    %176 = vector.broadcast %cst_78 : f32 to vector<2x16xf32>
    %177 = arith.addf %176, %175 : vector<2x16xf32>
    %cst_79 = arith.constant 1.000000e+00 : f32
    %178 = vector.broadcast %cst_79 : f32 to vector<2x16xf32>
    %179 = arith.divf %178, %177 : vector<2x16xf32>
    %180 = vector.extract_strided_slice %163 {offsets = [0, 32], sizes = [2, 16], strides = [1, 1]} : vector<2x64xf32> to vector<2x16xf32>
    %181 = math.tanh %180 : vector<2x16xf32>
    %182 = vector.extract_strided_slice %163 {offsets = [0, 48], sizes = [2, 16], strides = [1, 1]} : vector<2x64xf32> to vector<2x16xf32>
    %cst_80 = arith.constant 0.000000e+00 : f32
    %183 = vector.broadcast %cst_80 : f32 to vector<2x16xf32>
    %184 = arith.subf %183, %182 : vector<2x16xf32>
    %185 = math.exp %184 : vector<2x16xf32>
    %cst_81 = arith.constant 1.000000e+00 : f32
    %186 = vector.broadcast %cst_81 : f32 to vector<2x16xf32>
    %187 = arith.addf %186, %185 : vector<2x16xf32>
    %cst_82 = arith.constant 1.000000e+00 : f32
    %188 = vector.broadcast %cst_82 : f32 to vector<2x16xf32>
    %189 = arith.divf %188, %187 : vector<2x16xf32>
    %190 = arith.mulf %179, %147 : vector<2x16xf32>
    %191 = arith.mulf %171, %181 : vector<2x16xf32>
    %192 = arith.addf %190, %191 : vector<2x16xf32>
    %193 = math.tanh %192 : vector<2x16xf32>
    %194 = arith.mulf %189, %193 : vector<2x16xf32>
    %c0_83 = arith.constant 0 : index
    %195 = arith.index_cast %157 : i32 to index
    %c0_84 = arith.constant 0 : index
    %c0_85 = arith.constant 0 : index
    %196 = vector.load %arg7[%c0_83, %195, %c0_84, %c0_85] : memref<1x8x2x16xf32, #tpu.memory_space<vmem>>, vector<1x1x2x16xf32>
    %197 = vector.shape_cast %196 : vector<1x1x2x16xf32> to vector<2x16xf32>
    %198 = vector.shape_cast %194 : vector<2x16xf32> to vector<1x1x2x16xf32>
    tpu.vector_store %arg7[%c0_83, %195, %c0_84, %c0_85], %198 {strides = array<i32>} : memref<1x8x2x16xf32, #tpu.memory_space<vmem>>, vector<1x1x2x16xf32>,
    %c4_i32 = arith.constant 4 : i32
    %c2_i32_86 = arith.constant 2 : i32
    %199 = arith.muli %c2_i32_86, %c4_i32 : i32
    %c7_i32_87 = arith.constant 7 : i32
    %200 = arith.subi %c7_i32_87, %199 : i32
    %201 = arith.muli %arg0, %200 : i32
    %202 = arith.addi %201, %c4_i32 : i32
    %c2_i32_88 = arith.constant 2 : i32
    %203 = arith.muli %202, %c2_i32_88 : i32
    %204 = arith.index_cast %203 : i32 to index
    %c0_89 = arith.constant 0 : index
    %205 = vector.load %arg8[%204, %c0_89] : memref<16x64xf32, #tpu.memory_space<vmem>>, vector<2x64xf32>
    %206 = arith.truncf %194 : vector<2x16xf32> to vector<2x16xbf16>
    %cst_90 = arith.constant dense<0.000000e+00> : vector<2x64xf32>
    %207 = tpu.matmul %206, %1, %cst_90 {dimension_numbers = #tpu.dot_dimension_numbers<[1], [0], [0], [1], [0, 0, 1, 1], [], []>} : vector<2x16xbf16>, vector<16x64xbf16>, vector<2x64xf32> -> vector<2x64xf32>
    %208 = arith.addf %205, %207 : vector<2x64xf32>
    %209 = vector.extract_strided_slice %208 {offsets = [0, 0], sizes = [2, 16], strides = [1, 1]} : vector<2x64xf32> to vector<2x16xf32>
    %cst_91 = arith.constant 0.000000e+00 : f32
    %210 = vector.broadcast %cst_91 : f32 to vector<2x16xf32>
    %211 = arith.subf %210, %209 : vector<2x16xf32>
    %212 = math.exp %211 : vector<2x16xf32>
    %cst_92 = arith.constant 1.000000e+00 : f32
    %213 = vector.broadcast %cst_92 : f32 to vector<2x16xf32>
    %214 = arith.addf %213, %212 : vector<2x16xf32>
    %cst_93 = arith.constant 1.000000e+00 : f32
    %215 = vector.broadcast %cst_93 : f32 to vector<2x16xf32>
    %216 = arith.divf %215, %214 : vector<2x16xf32>
    %217 = vector.extract_strided_slice %208 {offsets = [0, 16], sizes = [2, 16], strides = [1, 1]} : vector<2x64xf32> to vector<2x16xf32>
    %cst_94 = arith.constant 0.000000e+00 : f32
    %218 = vector.broadcast %cst_94 : f32 to vector<2x16xf32>
    %219 = arith.subf %218, %217 : vector<2x16xf32>
    %220 = math.exp %219 : vector<2x16xf32>
    %cst_95 = arith.constant 1.000000e+00 : f32
    %221 = vector.broadcast %cst_95 : f32 to vector<2x16xf32>
    %222 = arith.addf %221, %220 : vector<2x16xf32>
    %cst_96 = arith.constant 1.000000e+00 : f32
    %223 = vector.broadcast %cst_96 : f32 to vector<2x16xf32>
    %224 = arith.divf %223, %222 : vector<2x16xf32>
    %225 = vector.extract_strided_slice %208 {offsets = [0, 32], sizes = [2, 16], strides = [1, 1]} : vector<2x64xf32> to vector<2x16xf32>
    %226 = math.tanh %225 : vector<2x16xf32>
    %227 = vector.extract_strided_slice %208 {offsets = [0, 48], sizes = [2, 16], strides = [1, 1]} : vector<2x64xf32> to vector<2x16xf32>
    %cst_97 = arith.constant 0.000000e+00 : f32
    %228 = vector.broadcast %cst_97 : f32 to vector<2x16xf32>
    %229 = arith.subf %228, %227 : vector<2x16xf32>
    %230 = math.exp %229 : vector<2x16xf32>
    %cst_98 = arith.constant 1.000000e+00 : f32
    %231 = vector.broadcast %cst_98 : f32 to vector<2x16xf32>
    %232 = arith.addf %231, %230 : vector<2x16xf32>
    %cst_99 = arith.constant 1.000000e+00 : f32
    %233 = vector.broadcast %cst_99 : f32 to vector<2x16xf32>
    %234 = arith.divf %233, %232 : vector<2x16xf32>
    %235 = arith.mulf %224, %192 : vector<2x16xf32>
    %236 = arith.mulf %216, %226 : vector<2x16xf32>
    %237 = arith.addf %235, %236 : vector<2x16xf32>
    %238 = math.tanh %237 : vector<2x16xf32>
    %239 = arith.mulf %234, %238 : vector<2x16xf32>
    %c0_100 = arith.constant 0 : index
    %240 = arith.index_cast %202 : i32 to index
    %c0_101 = arith.constant 0 : index
    %c0_102 = arith.constant 0 : index
    %241 = vector.load %arg7[%c0_100, %240, %c0_101, %c0_102] : memref<1x8x2x16xf32, #tpu.memory_space<vmem>>, vector<1x1x2x16xf32>
    %242 = vector.shape_cast %241 : vector<1x1x2x16xf32> to vector<2x16xf32>
    %243 = vector.shape_cast %239 : vector<2x16xf32> to vector<1x1x2x16xf32>
    tpu.vector_store %arg7[%c0_100, %240, %c0_101, %c0_102], %243 {strides = array<i32>} : memref<1x8x2x16xf32, #tpu.memory_space<vmem>>, vector<1x1x2x16xf32>,
    %c5_i32 = arith.constant 5 : i32
    %c2_i32_103 = arith.constant 2 : i32
    %244 = arith.muli %c2_i32_103, %c5_i32 : i32
    %c7_i32_104 = arith.constant 7 : i32
    %245 = arith.subi %c7_i32_104, %244 : i32
    %246 = arith.muli %arg0, %245 : i32
    %247 = arith.addi %246, %c5_i32 : i32
    %c2_i32_105 = arith.constant 2 : i32
    %248 = arith.muli %247, %c2_i32_105 : i32
    %249 = arith.index_cast %248 : i32 to index
    %c0_106 = arith.constant 0 : index
    %250 = vector.load %arg8[%249, %c0_106] : memref<16x64xf32, #tpu.memory_space<vmem>>, vector<2x64xf32>
    %251 = arith.truncf %239 : vector<2x16xf32> to vector<2x16xbf16>
    %cst_107 = arith.constant dense<0.000000e+00> : vector<2x64xf32>
    %252 = tpu.matmul %251, %1, %cst_107 {dimension_numbers = #tpu.dot_dimension_numbers<[1], [0], [0], [1], [0, 0, 1, 1], [], []>} : vector<2x16xbf16>, vector<16x64xbf16>, vector<2x64xf32> -> vector<2x64xf32>
    %253 = arith.addf %250, %252 : vector<2x64xf32>
    %254 = vector.extract_strided_slice %253 {offsets = [0, 0], sizes = [2, 16], strides = [1, 1]} : vector<2x64xf32> to vector<2x16xf32>
    %cst_108 = arith.constant 0.000000e+00 : f32
    %255 = vector.broadcast %cst_108 : f32 to vector<2x16xf32>
    %256 = arith.subf %255, %254 : vector<2x16xf32>
    %257 = math.exp %256 : vector<2x16xf32>
    %cst_109 = arith.constant 1.000000e+00 : f32
    %258 = vector.broadcast %cst_109 : f32 to vector<2x16xf32>
    %259 = arith.addf %258, %257 : vector<2x16xf32>
    %cst_110 = arith.constant 1.000000e+00 : f32
    %260 = vector.broadcast %cst_110 : f32 to vector<2x16xf32>
    %261 = arith.divf %260, %259 : vector<2x16xf32>
    %262 = vector.extract_strided_slice %253 {offsets = [0, 16], sizes = [2, 16], strides = [1, 1]} : vector<2x64xf32> to vector<2x16xf32>
    %cst_111 = arith.constant 0.000000e+00 : f32
    %263 = vector.broadcast %cst_111 : f32 to vector<2x16xf32>
    %264 = arith.subf %263, %262 : vector<2x16xf32>
    %265 = math.exp %264 : vector<2x16xf32>
    %cst_112 = arith.constant 1.000000e+00 : f32
    %266 = vector.broadcast %cst_112 : f32 to vector<2x16xf32>
    %267 = arith.addf %266, %265 : vector<2x16xf32>
    %cst_113 = arith.constant 1.000000e+00 : f32
    %268 = vector.broadcast %cst_113 : f32 to vector<2x16xf32>
    %269 = arith.divf %268, %267 : vector<2x16xf32>
    %270 = vector.extract_strided_slice %253 {offsets = [0, 32], sizes = [2, 16], strides = [1, 1]} : vector<2x64xf32> to vector<2x16xf32>
    %271 = math.tanh %270 : vector<2x16xf32>
    %272 = vector.extract_strided_slice %253 {offsets = [0, 48], sizes = [2, 16], strides = [1, 1]} : vector<2x64xf32> to vector<2x16xf32>
    %cst_114 = arith.constant 0.000000e+00 : f32
    %273 = vector.broadcast %cst_114 : f32 to vector<2x16xf32>
    %274 = arith.subf %273, %272 : vector<2x16xf32>
    %275 = math.exp %274 : vector<2x16xf32>
    %cst_115 = arith.constant 1.000000e+00 : f32
    %276 = vector.broadcast %cst_115 : f32 to vector<2x16xf32>
    %277 = arith.addf %276, %275 : vector<2x16xf32>
    %cst_116 = arith.constant 1.000000e+00 : f32
    %278 = vector.broadcast %cst_116 : f32 to vector<2x16xf32>
    %279 = arith.divf %278, %277 : vector<2x16xf32>
    %280 = arith.mulf %269, %237 : vector<2x16xf32>
    %281 = arith.mulf %261, %271 : vector<2x16xf32>
    %282 = arith.addf %280, %281 : vector<2x16xf32>
    %283 = math.tanh %282 : vector<2x16xf32>
    %284 = arith.mulf %279, %283 : vector<2x16xf32>
    %c0_117 = arith.constant 0 : index
    %285 = arith.index_cast %247 : i32 to index
    %c0_118 = arith.constant 0 : index
    %c0_119 = arith.constant 0 : index
    %286 = vector.load %arg7[%c0_117, %285, %c0_118, %c0_119] : memref<1x8x2x16xf32, #tpu.memory_space<vmem>>, vector<1x1x2x16xf32>
    %287 = vector.shape_cast %286 : vector<1x1x2x16xf32> to vector<2x16xf32>
    %288 = vector.shape_cast %284 : vector<2x16xf32> to vector<1x1x2x16xf32>
    tpu.vector_store %arg7[%c0_117, %285, %c0_118, %c0_119], %288 {strides = array<i32>} : memref<1x8x2x16xf32, #tpu.memory_space<vmem>>, vector<1x1x2x16xf32>,
    %c6_i32 = arith.constant 6 : i32
    %c2_i32_120 = arith.constant 2 : i32
    %289 = arith.muli %c2_i32_120, %c6_i32 : i32
    %c7_i32_121 = arith.constant 7 : i32
    %290 = arith.subi %c7_i32_121, %289 : i32
    %291 = arith.muli %arg0, %290 : i32
    %292 = arith.addi %291, %c6_i32 : i32
    %c2_i32_122 = arith.constant 2 : i32
    %293 = arith.muli %292, %c2_i32_122 : i32
    %294 = arith.index_cast %293 : i32 to index
    %c0_123 = arith.constant 0 : index
    %295 = vector.load %arg8[%294, %c0_123] : memref<16x64xf32, #tpu.memory_space<vmem>>, vector<2x64xf32>
    %296 = arith.truncf %284 : vector<2x16xf32> to vector<2x16xbf16>
    %cst_124 = arith.constant dense<0.000000e+00> : vector<2x64xf32>
    %297 = tpu.matmul %296, %1, %cst_124 {dimension_numbers = #tpu.dot_dimension_numbers<[1], [0], [0], [1], [0, 0, 1, 1], [], []>} : vector<2x16xbf16>, vector<16x64xbf16>, vector<2x64xf32> -> vector<2x64xf32>
    %298 = arith.addf %295, %297 : vector<2x64xf32>
    %299 = vector.extract_strided_slice %298 {offsets = [0, 0], sizes = [2, 16], strides = [1, 1]} : vector<2x64xf32> to vector<2x16xf32>
    %cst_125 = arith.constant 0.000000e+00 : f32
    %300 = vector.broadcast %cst_125 : f32 to vector<2x16xf32>
    %301 = arith.subf %300, %299 : vector<2x16xf32>
    %302 = math.exp %301 : vector<2x16xf32>
    %cst_126 = arith.constant 1.000000e+00 : f32
    %303 = vector.broadcast %cst_126 : f32 to vector<2x16xf32>
    %304 = arith.addf %303, %302 : vector<2x16xf32>
    %cst_127 = arith.constant 1.000000e+00 : f32
    %305 = vector.broadcast %cst_127 : f32 to vector<2x16xf32>
    %306 = arith.divf %305, %304 : vector<2x16xf32>
    %307 = vector.extract_strided_slice %298 {offsets = [0, 16], sizes = [2, 16], strides = [1, 1]} : vector<2x64xf32> to vector<2x16xf32>
    %cst_128 = arith.constant 0.000000e+00 : f32
    %308 = vector.broadcast %cst_128 : f32 to vector<2x16xf32>
    %309 = arith.subf %308, %307 : vector<2x16xf32>
    %310 = math.exp %309 : vector<2x16xf32>
    %cst_129 = arith.constant 1.000000e+00 : f32
    %311 = vector.broadcast %cst_129 : f32 to vector<2x16xf32>
    %312 = arith.addf %311, %310 : vector<2x16xf32>
    %cst_130 = arith.constant 1.000000e+00 : f32
    %313 = vector.broadcast %cst_130 : f32 to vector<2x16xf32>
    %314 = arith.divf %313, %312 : vector<2x16xf32>
    %315 = vector.extract_strided_slice %298 {offsets = [0, 32], sizes = [2, 16], strides = [1, 1]} : vector<2x64xf32> to vector<2x16xf32>
    %316 = math.tanh %315 : vector<2x16xf32>
    %317 = vector.extract_strided_slice %298 {offsets = [0, 48], sizes = [2, 16], strides = [1, 1]} : vector<2x64xf32> to vector<2x16xf32>
    %cst_131 = arith.constant 0.000000e+00 : f32
    %318 = vector.broadcast %cst_131 : f32 to vector<2x16xf32>
    %319 = arith.subf %318, %317 : vector<2x16xf32>
    %320 = math.exp %319 : vector<2x16xf32>
    %cst_132 = arith.constant 1.000000e+00 : f32
    %321 = vector.broadcast %cst_132 : f32 to vector<2x16xf32>
    %322 = arith.addf %321, %320 : vector<2x16xf32>
    %cst_133 = arith.constant 1.000000e+00 : f32
    %323 = vector.broadcast %cst_133 : f32 to vector<2x16xf32>
    %324 = arith.divf %323, %322 : vector<2x16xf32>
    %325 = arith.mulf %314, %282 : vector<2x16xf32>
    %326 = arith.mulf %306, %316 : vector<2x16xf32>
    %327 = arith.addf %325, %326 : vector<2x16xf32>
    %328 = math.tanh %327 : vector<2x16xf32>
    %329 = arith.mulf %324, %328 : vector<2x16xf32>
    %c0_134 = arith.constant 0 : index
    %330 = arith.index_cast %292 : i32 to index
    %c0_135 = arith.constant 0 : index
    %c0_136 = arith.constant 0 : index
    %331 = vector.load %arg7[%c0_134, %330, %c0_135, %c0_136] : memref<1x8x2x16xf32, #tpu.memory_space<vmem>>, vector<1x1x2x16xf32>
    %332 = vector.shape_cast %331 : vector<1x1x2x16xf32> to vector<2x16xf32>
    %333 = vector.shape_cast %329 : vector<2x16xf32> to vector<1x1x2x16xf32>
    tpu.vector_store %arg7[%c0_134, %330, %c0_135, %c0_136], %333 {strides = array<i32>} : memref<1x8x2x16xf32, #tpu.memory_space<vmem>>, vector<1x1x2x16xf32>,
    %c7_i32_137 = arith.constant 7 : i32
    %c2_i32_138 = arith.constant 2 : i32
    %334 = arith.muli %c2_i32_138, %c7_i32_137 : i32
    %c7_i32_139 = arith.constant 7 : i32
    %335 = arith.subi %c7_i32_139, %334 : i32
    %336 = arith.muli %arg0, %335 : i32
    %337 = arith.addi %336, %c7_i32_137 : i32
    %c2_i32_140 = arith.constant 2 : i32
    %338 = arith.muli %337, %c2_i32_140 : i32
    %339 = arith.index_cast %338 : i32 to index
    %c0_141 = arith.constant 0 : index
    %340 = vector.load %arg8[%339, %c0_141] : memref<16x64xf32, #tpu.memory_space<vmem>>, vector<2x64xf32>
    %341 = arith.truncf %329 : vector<2x16xf32> to vector<2x16xbf16>
    %cst_142 = arith.constant dense<0.000000e+00> : vector<2x64xf32>
    %342 = tpu.matmul %341, %1, %cst_142 {dimension_numbers = #tpu.dot_dimension_numbers<[1], [0], [0], [1], [0, 0, 1, 1], [], []>} : vector<2x16xbf16>, vector<16x64xbf16>, vector<2x64xf32> -> vector<2x64xf32>
    %343 = arith.addf %340, %342 : vector<2x64xf32>
    %344 = vector.extract_strided_slice %343 {offsets = [0, 0], sizes = [2, 16], strides = [1, 1]} : vector<2x64xf32> to vector<2x16xf32>
    %cst_143 = arith.constant 0.000000e+00 : f32
    %345 = vector.broadcast %cst_143 : f32 to vector<2x16xf32>
    %346 = arith.subf %345, %344 : vector<2x16xf32>
    %347 = math.exp %346 : vector<2x16xf32>
    %cst_144 = arith.constant 1.000000e+00 : f32
    %348 = vector.broadcast %cst_144 : f32 to vector<2x16xf32>
    %349 = arith.addf %348, %347 : vector<2x16xf32>
    %cst_145 = arith.constant 1.000000e+00 : f32
    %350 = vector.broadcast %cst_145 : f32 to vector<2x16xf32>
    %351 = arith.divf %350, %349 : vector<2x16xf32>
    %352 = vector.extract_strided_slice %343 {offsets = [0, 16], sizes = [2, 16], strides = [1, 1]} : vector<2x64xf32> to vector<2x16xf32>
    %cst_146 = arith.constant 0.000000e+00 : f32
    %353 = vector.broadcast %cst_146 : f32 to vector<2x16xf32>
    %354 = arith.subf %353, %352 : vector<2x16xf32>
    %355 = math.exp %354 : vector<2x16xf32>
    %cst_147 = arith.constant 1.000000e+00 : f32
    %356 = vector.broadcast %cst_147 : f32 to vector<2x16xf32>
    %357 = arith.addf %356, %355 : vector<2x16xf32>
    %cst_148 = arith.constant 1.000000e+00 : f32
    %358 = vector.broadcast %cst_148 : f32 to vector<2x16xf32>
    %359 = arith.divf %358, %357 : vector<2x16xf32>
    %360 = vector.extract_strided_slice %343 {offsets = [0, 32], sizes = [2, 16], strides = [1, 1]} : vector<2x64xf32> to vector<2x16xf32>
    %361 = math.tanh %360 : vector<2x16xf32>
    %362 = vector.extract_strided_slice %343 {offsets = [0, 48], sizes = [2, 16], strides = [1, 1]} : vector<2x64xf32> to vector<2x16xf32>
    %cst_149 = arith.constant 0.000000e+00 : f32
    %363 = vector.broadcast %cst_149 : f32 to vector<2x16xf32>
    %364 = arith.subf %363, %362 : vector<2x16xf32>
    %365 = math.exp %364 : vector<2x16xf32>
    %cst_150 = arith.constant 1.000000e+00 : f32
    %366 = vector.broadcast %cst_150 : f32 to vector<2x16xf32>
    %367 = arith.addf %366, %365 : vector<2x16xf32>
    %cst_151 = arith.constant 1.000000e+00 : f32
    %368 = vector.broadcast %cst_151 : f32 to vector<2x16xf32>
    %369 = arith.divf %368, %367 : vector<2x16xf32>
    %370 = arith.mulf %359, %327 : vector<2x16xf32>
    %371 = arith.mulf %351, %361 : vector<2x16xf32>
    %372 = arith.addf %370, %371 : vector<2x16xf32>
    %373 = math.tanh %372 : vector<2x16xf32>
    %374 = arith.mulf %369, %373 : vector<2x16xf32>
    %c0_152 = arith.constant 0 : index
    %375 = arith.index_cast %337 : i32 to index
    %c0_153 = arith.constant 0 : index
    %c0_154 = arith.constant 0 : index
    %376 = vector.load %arg7[%c0_152, %375, %c0_153, %c0_154] : memref<1x8x2x16xf32, #tpu.memory_space<vmem>>, vector<1x1x2x16xf32>
    %377 = vector.shape_cast %376 : vector<1x1x2x16xf32> to vector<2x16xf32>
    %378 = vector.shape_cast %374 : vector<2x16xf32> to vector<1x1x2x16xf32>
    tpu.vector_store %arg7[%c0_152, %375, %c0_153, %c0_154], %378 {strides = array<i32>} : memref<1x8x2x16xf32, #tpu.memory_space<vmem>>, vector<1x1x2x16xf32>,
    %c8_i32 = arith.constant 8 : i32
    return
  }
  func.func @transform_0(%arg0: i32) -> (i32, i32) {
    %c0_i32 = arith.constant 0 : i32
    %c0_i32_0 = arith.constant 0 : i32
    %c0_i32_1 = arith.constant 0 : i32
    return %c0_i32, %c0_i32_0 : i32, i32
  }
  func.func @transform_1(%arg0: i32) -> (i32, i32) {
    %c0_i32 = arith.constant 0 : i32
    %c0_i32_0 = arith.constant 0 : i32
    %c0_i32_1 = arith.constant 0 : i32
    return %c0_i32, %c0_i32_0 : i32, i32
  }
  func.func @transform_2(%arg0: i32) -> (i32, i32, i32) {
    %c0_i32 = arith.constant 0 : i32
    %c0_i32_0 = arith.constant 0 : i32
    %c0_i32_1 = arith.constant 0 : i32
    return %arg0, %c0_i32, %c0_i32_0 : i32, i32, i32
  }
  func.func @transform_3(%arg0: i32) -> (i32, i32, i32) {
    %c0_i32 = arith.constant 0 : i32
    %c0_i32_0 = arith.constant 0 : i32
    %c0_i32_1 = arith.constant 0 : i32
    return %arg0, %c0_i32, %c0_i32_0 : i32, i32, i32
  }
  func.func @transform_4(%arg0: i32) -> (i32, i32, i32) {
    %c0_i32 = arith.constant 0 : i32
    %c0_i32_0 = arith.constant 0 : i32
    %c0_i32_1 = arith.constant 0 : i32
    return %arg0, %c0_i32, %c0_i32_0 : i32, i32, i32
  }
  func.func @transform_5(%arg0: i32) -> (i32, i32, i32) {
    %c0_i32 = arith.constant 0 : i32
    %c0_i32_0 = arith.constant 0 : i32
    %c0_i32_1 = arith.constant 0 : i32
    return %arg0, %c0_i32, %c0_i32_0 : i32, i32, i32
  }
  func.func @transform_6(%arg0: i32) -> (i32, i32, i32, i32) {
    %c0_i32 = arith.constant 0 : i32
    %c0_i32_0 = arith.constant 0 : i32
    %c0_i32_1 = arith.constant 0 : i32
    %c0_i32_2 = arith.constant 0 : i32
    return %arg0, %c0_i32, %c0_i32_0, %c0_i32_1 : i32, i32, i32, i32
  }
}

</mosaic_0001>

<llo_original>
// kernel: cnn_lstm_forward.7
$region0: #{cnn_lstm_forward.7}
  #allocation0 [shape = 'u32[]', space=smem, size = 0x4, offset = 0x4, fixed_abs, tag = 'smem constant byte address 0x4 - core index']
  #allocation1 [shape = 'u32[144,128]{1,0:T(1,128)}', space=vmem, size = 0x12000, scoped, tag = 'internal scratch']
  %s0 = inlined_call_operand.vmem [shape: f32[16,16], index: 0, kind: input, shape index: {}]
  %s1 = inlined_call_operand.vmem [shape: f32[16,16], index: 1, kind: input, shape index: {}]
  %s2 = inlined_call_operand.vmem [shape: bf16[16,5], index: 2, kind: input, shape index: {}]
  %s3 = inlined_call_operand.vmem [shape: bf16[16,5], index: 3, kind: input, shape index: {}]
  %s4 = inlined_call_operand.vmem [shape: f32[1,5], index: 4, kind: input, shape index: {}]
  %s5 = inlined_call_operand.vmem [shape: f32[16,5], index: 5, kind: output, shape index: {}]
  %s6 = sld [smem:[#allocation0]]
  $region30: #{cnn_lstm_forward.7} parent=0
    _
  %s8 = ssub.s32 1, %s6
  %s9 = scalar_select 0, %s8, %s6
  // Predicated region
  $region2: #{cnn_lstm_forward.7} parent=0 // pred_check
    _
  $region3: #{cnn_lstm_forward.7} parent=0 // pred_check_branch
    %11 = sbr.rel (0) target = $region5
  $region4: #{cnn_lstm_forward.7} parent=0 // pred_region
    _
  $region5: #{cnn_lstm_forward.7} parent=0 // pred_fallthru
    _
  // Predicated region
  $region6: #{cnn_lstm_forward.7} parent=0 // pred_check
    _
  $region7: #{cnn_lstm_forward.7} parent=0 // pred_check_branch
    %13 = sbr.rel (0) target = $region9
  $region8: #{cnn_lstm_forward.7} parent=0 // pred_region
    _
  $region9: #{cnn_lstm_forward.7} parent=0 // pred_fallthru
    _
  // Predicated region
  $region10: #{cnn_lstm_forward.7} parent=0 // pred_check
    _
  $region11: #{cnn_lstm_forward.7} parent=0 // pred_check_branch
    %15 = sbr.rel (0) target = $region13
  $region12: #{cnn_lstm_forward.7} parent=0 // pred_region
    _
  $region13: #{cnn_lstm_forward.7} parent=0 // pred_fallthru
    _
  // Predicated region
  $region14: #{cnn_lstm_forward.7} parent=0 // pred_check
    _
  $region15: #{cnn_lstm_forward.7} parent=0 // pred_check_branch
    %17 = sbr.rel (0) target = $region17
  $region16: #{cnn_lstm_forward.7} parent=0 // pred_region
    _
  $region17: #{cnn_lstm_forward.7} parent=0 // pred_fallthru
    _
  // Predicated region
  $region18: #{cnn_lstm_forward.7} parent=0 // pred_check
    _
  $region19: #{cnn_lstm_forward.7} parent=0 // pred_check_branch
    %19 = sbr.rel (0) target = $region21
  $region20: #{cnn_lstm_forward.7} parent=0 // pred_region
    _
  $region21: #{cnn_lstm_forward.7} parent=0 // pred_fallthru
    _
  %v21 = vld [vmem:[%s0] sm:$0xff]
  %v22 = vld [vmem:[%s0 + $0x8] sm:$0xff]
  %v23 = vpack.c.bf16 %v22, %v21
  %v24 = vld [vmem:[%s2] sm:$0xf]
  %v25 = vld [vmem:[%s2 + $0x4] sm:$0xf]
  %v26 = vld [vmem:[%s1] sm:$0xff]
  %v27 = vld [vmem:[%s1 + $0x8] sm:$0xff]
  %v28 = vpack.c.bf16 %v27, %v26
  %v29 = vld [vmem:[%s3] sm:$0xf]
  %v30 = vld [vmem:[%s3 + $0x4] sm:$0xf]
  %v33 = vunpack.c.l.b16 %v29
  %v34 = vunpack.c.l.b16 %v30
  %v35 = vpack.c.b16 %v34, %v33
  %vm37 = vcmask 130048
  %v39 = vsel %vm37, %v28, 0
  %41 = vmatprep.subr.bf16.mxu0 0
  %42 = vmatpush1.bf16.msra.mxu0 %v35
  %43 = vmatprep.subr.bf16.mxu0 0
  %44 = vmatpush1.bf16.msra.mxu0 0
  %45 = vmatprep.subr.bf16.mxu0 0
  %46 = vmatpush1.bf16.msra.mxu0 0
  %47 = vmatprep.subr.bf16.mxu0 0
  %48 = vmatpush1.bf16.msra.mxu0 0
  %49 = vmatprep.subr.bf16.mxu0 0
  %50 = vmatpush1.bf16.msra.mxu0 0
  %51 = vmatprep.subr.bf16.mxu0 0
  %52 = vmatpush1.bf16.msra.mxu0 0
  %53 = vmatprep.subr.bf16.mxu0 0
  %54 = vmatpush1.bf16.msra.mxu0 0
  %55 = vmatprep.subr.bf16.mxu0 0
  %56 = vmatpush1.bf16.msra.mxu0 0
  %57 = vmatprep.subr.bf16.mxu0 0
  %58 = vmatpush1.bf16.msra.mxu0 0
  %59 = vmatprep.subr.bf16.mxu0 0
  %60 = vmatpush1.bf16.msra.mxu0 0
  %61 = vmatprep.subr.bf16.mxu0 0
  %62 = vmatpush1.bf16.msra.mxu0 0
  %63 = vmatprep.subr.bf16.mxu0 0
  %64 = vmatpush1.bf16.msra.mxu0 0
  %65 = vmatprep.subr.bf16.mxu0 0
  %66 = vmatpush1.bf16.msra.mxu0 0
  %67 = vmatprep.subr.bf16.mxu0 0
  %68 = vmatpush1.bf16.msra.mxu0 0
  %69 = vmatprep.subr.bf16.mxu0 0
  %70 = vmatpush1.bf16.msra.mxu0 0
  %71 = vmatprep.subr.bf16.mxu0 0
  %72 = vmatpush1.bf16.msra.mxu0 0
  %73 = vmatprep.mubr.bf16.mxu0 0
  %74 = vmatmul.mubr.bf16.gmra.mrb[0].mxu0 %v39
  %v75 = vpop.f32.mrb[0].mxu0
  %v76 = vadd.f32 0.0, %v75
  %v77 = vpop.f32.mrb[0].mxu0
  %v78 = vpop.f32.mrb[0].mxu0
  %v79 = vadd.f32 0.0, %v78
  %v80 = vpop.f32.mrb[0].mxu0
  %81 = vdwg.mxu0
  %v84 = vunpack.c.l.b16 %v24
  %v85 = vunpack.c.l.b16 %v25
  %v86 = vpack.c.b16 %v85, %v84
  %v89 = vsel %vm37, %v23, 0
  %91 = vmatprep.subr.bf16.mxu0 0
  %92 = vmatpush1.bf16.msra.mxu0 %v86
  %93 = vmatprep.subr.bf16.mxu0 0
  %94 = vmatpush1.bf16.msra.mxu0 0
  %95 = vmatprep.subr.bf16.mxu0 0
  %96 = vmatpush1.bf16.msra.mxu0 0
  %97 = vmatprep.subr.bf16.mxu0 0
  %98 = vmatpush1.bf16.msra.mxu0 0
  %99 = vmatprep.subr.bf16.mxu0 0
  %100 = vmatpush1.bf16.msra.mxu0 0
  %101 = vmatprep.subr.bf16.mxu0 0
  %102 = vmatpush1.bf16.msra.mxu0 0
  %103 = vmatprep.subr.bf16.mxu0 0
  %104 = vmatpush1.bf16.msra.mxu0 0
  %105 = vmatprep.subr.bf16.mxu0 0
  %106 = vmatpush1.bf16.msra.mxu0 0
  %107 = vmatprep.subr.bf16.mxu0 0
  %108 = vmatpush1.bf16.msra.mxu0 0
  %109 = vmatprep.subr.bf16.mxu0 0
  %110 = vmatpush1.bf16.msra.mxu0 0
  %111 = vmatprep.subr.bf16.mxu0 0
  %112 = vmatpush1.bf16.msra.mxu0 0
  %113 = vmatprep.subr.bf16.mxu0 0
  %114 = vmatpush1.bf16.msra.mxu0 0
  %115 = vmatprep.subr.bf16.mxu0 0
  %116 = vmatpush1.bf16.msra.mxu0 0
  %117 = vmatprep.subr.bf16.mxu0 0
  %118 = vmatpush1.bf16.msra.mxu0 0
  %119 = vmatprep.subr.bf16.mxu0 0
  %120 = vmatpush1.bf16.msra.mxu0 0
  %121 = vmatprep.subr.bf16.mxu0 0
  %122 = vmatpush1.bf16.msra.mxu0 0
  %123 = vmatprep.mubr.bf16.mxu0 0
  %124 = vmatmul.mubr.bf16.gmra.mrb[0].mxu0 %v89
  %v125 = vpop.f32.mrb[0].mxu0
  %v126 = vadd.f32 %v76, %v125
  %v127 = vpop.f32.mrb[0].mxu0
  %v128 = vpop.f32.mrb[0].mxu0
  %v129 = vadd.f32 %v79, %v128
  %v130 = vpop.f32.mrb[0].mxu0
  %131 = vdwg.mxu0
  %v132 = vld [vmem:[%s4] sm:$0x1]
  %v134 = vlaneseq
  %v135 = vshrl.u32 %v134, 7
  %v136 = vsub.s32 0, %v135
  %v137 = vrot.slane %v132, %v136
  %v139 = vadd.f32 %v126, %v137
  %v140 = vadd.f32 %v129, %v137
  %vm141 = vcmask 39936
  %142 = vst.msk [vmem:[%s5] sm:$0xff] %vm141, %v139
  %143 = vst.msk [vmem:[%s5 + $0x8] sm:$0xff] %vm141, %v140
  // Predicated region
  $region22: #{cnn_lstm_forward.7} parent=0 // pred_check
    _
  $region23: #{cnn_lstm_forward.7} parent=0 // pred_check_branch
    %145 = sbr.rel (0) target = $region25
  $region24: #{cnn_lstm_forward.7} parent=0 // pred_region
    _
  $region25: #{cnn_lstm_forward.7} parent=0 // pred_fallthru
    _
  // Predicated region
  $region26: #{cnn_lstm_forward.7} parent=0 // pred_check
    _
  $region27: #{cnn_lstm_forward.7} parent=0 // pred_check_branch
    %147 = sbr.rel (0) target = $region29
  $region28: #{cnn_lstm_forward.7} parent=0 // pred_region
    _
  $region29: #{cnn_lstm_forward.7} parent=0 // pred_fallthru
    _

// kernel: cnn_lstm_forward.4
$region0: #{cnn_lstm_forward.4}
  #allocation0 [shape = 'u32[]', space=smem, size = 0x4, offset = 0x4, fixed_abs, tag = 'smem constant byte address 0x4 - core index']
  #allocation1 [shape = 'u32[144,128]{1,0:T(1,128)}', space=vmem, size = 0x12000, scoped, tag = 'internal scratch']
  %s0 = inlined_call_operand.vmem [shape: f32[96,12], index: 0, kind: input, shape index: {}]
  %s1 = inlined_call_operand.vmem [shape: bf16[12,8], index: 1, kind: input, shape index: {}]
  %s2 = inlined_call_operand.vmem [shape: f32[1,8], index: 2, kind: input, shape index: {}]
  %s3 = inlined_call_operand.vmem [shape: f32[16,24], index: 3, kind: output, shape index: {}]
  %s4 = sld [smem:[#allocation0]]
  $region22: #{cnn_lstm_forward.4} parent=0
    _
  %s6 = ssub.s32 1, %s4
  %s7 = scalar_select 0, %s6, %s4
  // Predicated region
  $region2: #{cnn_lstm_forward.4} parent=0 // pred_check
    _
  $region3: #{cnn_lstm_forward.4} parent=0 // pred_check_branch
    %9 = sbr.rel (0) target = $region5
  $region4: #{cnn_lstm_forward.4} parent=0 // pred_region
    _
  $region5: #{cnn_lstm_forward.4} parent=0 // pred_fallthru
    _
  // Predicated region
  $region6: #{cnn_lstm_forward.4} parent=0 // pred_check
    _
  $region7: #{cnn_lstm_forward.4} parent=0 // pred_check_branch
    %11 = sbr.rel (0) target = $region9
  $region8: #{cnn_lstm_forward.4} parent=0 // pred_region
    _
  $region9: #{cnn_lstm_forward.4} parent=0 // pred_fallthru
    _
  // Predicated region
  $region10: #{cnn_lstm_forward.4} parent=0 // pred_check
    _
  $region11: #{cnn_lstm_forward.4} parent=0 // pred_check_branch
    %13 = sbr.rel (0) target = $region13
  $region12: #{cnn_lstm_forward.4} parent=0 // pred_region
    _
  $region13: #{cnn_lstm_forward.4} parent=0 // pred_fallthru
    _
  %v15 = vld [vmem:[%s0] sm:$0xff]
  %v16 = vld [vmem:[%s0 + $0x8] sm:$0xff]
  %v17 = vld [vmem:[%s0 + $0x10] sm:$0xff]
  %v18 = vld [vmem:[%s0 + $0x18] sm:$0xff]
  %v19 = vld [vmem:[%s0 + $0x20] sm:$0xff]
  %v20 = vld [vmem:[%s0 + $0x28] sm:$0xff]
  %v21 = vld [vmem:[%s0 + $0x30] sm:$0xff]
  %v22 = vld [vmem:[%s0 + $0x38] sm:$0xff]
  %v23 = vld [vmem:[%s0 + $0x40] sm:$0xff]
  %v24 = vld [vmem:[%s0 + $0x48] sm:$0xff]
  %v25 = vld [vmem:[%s0 + $0x50] sm:$0xff]
  %v26 = vld [vmem:[%s0 + $0x58] sm:$0xff]
  %v27 = vpack.c.bf16 %v16, %v15
  %v28 = vpack.c.bf16 %v18, %v17
  %v29 = vpack.c.bf16 %v20, %v19
  %v30 = vpack.c.bf16 %v22, %v21
  %v31 = vpack.c.bf16 %v24, %v23
  %v32 = vpack.c.bf16 %v26, %v25
  %v33 = vld [vmem:[%s1] sm:$0xf]
  %v34 = vld [vmem:[%s1 + $0x4] sm:$0x3]
  %v35 = vld [vmem:[%s2] sm:$0x1]
  %v37 = vlaneseq
  %v38 = vshrl.u32 %v37, 7
  %v39 = vsub.s32 0, %v38
  %v40 = vrot.slane %v35, %v39
  %v44 = vunpack.c.l.b16 %v33
  %v45 = vunpack.c.l.b16 %v34
  %v46 = vpack.c.b16 %v45, %v44
  %vm47 = vcmask 97280
  %v49 = vsel %vm47, %v27, 0
  %v52 = vsel %vm47, %v28, 0
  %v55 = vsel %vm47, %v29, 0
  %v58 = vsel %vm47, %v30, 0
  %v61 = vsel %vm47, %v31, 0
  %v64 = vsel %vm47, %v32, 0
  %vm66 = vcmask 1045504
  %v68 = vsel %vm66, %v46, 0
  %70 = vmatprep.subr.bf16.mxu0 0
  %71 = vmatpush1.bf16.msra.mxu0 %v68
  %72 = vmatprep.subr.bf16.mxu0 0
  %73 = vmatpush1.bf16.msra.mxu0 0
  %74 = vmatprep.subr.bf16.mxu0 0
  %75 = vmatpush1.bf16.msra.mxu0 0
  %76 = vmatprep.subr.bf16.mxu0 0
  %77 = vmatpush1.bf16.msra.mxu0 0
  %78 = vmatprep.subr.bf16.mxu0 0
  %79 = vmatpush1.bf16.msra.mxu0 0
  %80 = vmatprep.subr.bf16.mxu0 0
  %81 = vmatpush1.bf16.msra.mxu0 0
  %82 = vmatprep.subr.bf16.mxu0 0
  %83 = vmatpush1.bf16.msra.mxu0 0
  %84 = vmatprep.subr.bf16.mxu0 0
  %85 = vmatpush1.bf16.msra.mxu0 0
  %86 = vmatprep.subr.bf16.mxu0 0
  %87 = vmatpush1.bf16.msra.mxu0 0
  %88 = vmatprep.subr.bf16.mxu0 0
  %89 = vmatpush1.bf16.msra.mxu0 0
  %90 = vmatprep.subr.bf16.mxu0 0
  %91 = vmatpush1.bf16.msra.mxu0 0
  %92 = vmatprep.subr.bf16.mxu0 0
  %93 = vmatpush1.bf16.msra.mxu0 0
  %94 = vmatprep.subr.bf16.mxu0 0
  %95 = vmatpush1.bf16.msra.mxu0 0
  %96 = vmatprep.subr.bf16.mxu0 0
  %97 = vmatpush1.bf16.msra.mxu0 0
  %98 = vmatprep.subr.bf16.mxu0 0
  %99 = vmatpush1.bf16.msra.mxu0 0
  %100 = vmatprep.subr.bf16.mxu0 0
  %101 = vmatpush1.bf16.msra.mxu0 0
  %102 = vmatprep.mubr.bf16.mxu0 0
  %103 = vmatmul.mubr.bf16.gmra.mrb[0].mxu0 %v49
  %v104 = vpop.f32.mrb[0].mxu0
  %v105 = vadd.f32 %v40, %v104
  %v106 = vpop.f32.mrb[0].mxu0
  %v107 = vpop.f32.mrb[0].mxu0
  %v108 = vadd.f32 %v40, %v107
  %v109 = vpop.f32.mrb[0].mxu0
  %110 = vmatprep.mubr.bf16.mxu0 0
  %111 = vmatmul.mubr.bf16.gmra.mrb[0].mxu0 %v52
  %v112 = vpop.f32.mrb[0].mxu0
  %v113 = vadd.f32 %v40, %v112
  %v114 = vpop.f32.mrb[0].mxu0
  %v115 = vpop.f32.mrb[0].mxu0
  %v116 = vadd.f32 %v40, %v115
  %v117 = vpop.f32.mrb[0].mxu0
  %118 = vmatprep.mubr.bf16.mxu0 0
  %119 = vmatmul.mubr.bf16.gmra.mrb[0].mxu0 %v55
  %v120 = vpop.f32.mrb[0].mxu0
  %v121 = vadd.f32 %v40, %v120
  %v122 = vpop.f32.mrb[0].mxu0
  %v123 = vpop.f32.mrb[0].mxu0
  %v124 = vadd.f32 %v40, %v123
  %v125 = vpop.f32.mrb[0].mxu0
  %126 = vmatprep.mubr.bf16.mxu0 0
  %127 = vmatmul.mubr.bf16.gmra.mrb[0].mxu0 %v58
  %v128 = vpop.f32.mrb[0].mxu0
  %v129 = vadd.f32 %v40, %v128
  %v130 = vpop.f32.mrb[0].mxu0
  %v131 = vpop.f32.mrb[0].mxu0
  %v132 = vadd.f32 %v40, %v131
  %v133 = vpop.f32.mrb[0].mxu0
  %134 = vmatprep.mubr.bf16.mxu0 0
  %135 = vmatmul.mubr.bf16.gmra.mrb[0].mxu0 %v61
  %v136 = vpop.f32.mrb[0].mxu0
  %v137 = vadd.f32 %v40, %v136
  %v138 = vpop.f32.mrb[0].mxu0
  %v139 = vpop.f32.mrb[0].mxu0
  %v140 = vadd.f32 %v40, %v139
  %v141 = vpop.f32.mrb[0].mxu0
  %142 = vmatprep.mubr.bf16.mxu0 0
  %143 = vmatmul.mubr.bf16.gmra.mrb[0].mxu0 %v64
  %v144 = vpop.f32.mrb[0].mxu0
  %v145 = vadd.f32 %v40, %v144
  %v146 = vpop.f32.mrb[0].mxu0
  %v147 = vpop.f32.mrb[0].mxu0
  %v148 = vadd.f32 %v40, %v147
  %v149 = vpop.f32.mrb[0].mxu0
  %150 = vdwg.mxu0
  %v151 = vmax.f32 %v105, 0.0
  %v152 = vmax.f32 %v108, 0.0
  %v153 = vmax.f32 %v113, 0.0
  %v154 = vmax.f32 %v116, 0.0
  %v155 = vmax.f32 %v121, 0.0
  %v156 = vmax.f32 %v124, 0.0
  %v157 = vmax.f32 %v129, 0.0
  %v158 = vmax.f32 %v132, 0.0
  %v159 = vmax.f32 %v137, 0.0
  %v160 = vmax.f32 %v140, 0.0
  %v161 = vmax.f32 %v145, 0.0
  %v162 = vmax.f32 %v148, 0.0
  %v163 = vmax.f32 %v151, %v153
  %v164 = vmax.f32 %v152, %v154
  %v165 = vmax.f32 %v155, %v157
  %v166 = vmax.f32 %v156, %v158
  %v167 = vmax.f32 %v159, %v161
  %v168 = vmax.f32 %v160, %v162
  %171 = vrot.lane.b32.xlu0 %v165, 8
  %v172 = vpop.permute.xlu0 %171
  %173 = vrot.lane.b32.xlu0 %v166, 8
  %v174 = vpop.permute.xlu0 %173
  %179 = vrot.lane.b32.xlu0 %v167, 16
  %v180 = vpop.permute.xlu0 %179
  %181 = vrot.lane.b32.xlu0 %v168, 16
  %v182 = vpop.permute.xlu0 %181
  %vm185 = vcmask 64512
  %v186 = vsel %vm185, %v163, %v172
  %v187 = vsel %vm185, %v164, %v174
  %vm188 = vcmask 130048
  %v189 = vsel %vm188, %v186, %v180
  %v190 = vsel %vm188, %v187, %v182
  %vm191 = vcmask 195584
  %192 = vst.msk [vmem:[%s3] sm:$0xff] %vm191, %v189
  %193 = vst.msk [vmem:[%s3 + $0x8] sm:$0xff] %vm191, %v190
  // Predicated region
  $region14: #{cnn_lstm_forward.4} parent=0 // pred_check
    _
  $region15: #{cnn_lstm_forward.4} parent=0 // pred_check_branch
    %195 = sbr.rel (0) target = $region17
  $region16: #{cnn_lstm_forward.4} parent=0 // pred_region
    _
  $region17: #{cnn_lstm_forward.4} parent=0 // pred_fallthru
    _
  // Predicated region
  $region18: #{cnn_lstm_forward.4} parent=0 // pred_check
    _
  $region19: #{cnn_lstm_forward.4} parent=0 // pred_check_branch
    %197 = sbr.rel (0) target = $region21
  $region20: #{cnn_lstm_forward.4} parent=0 // pred_region
    _
  $region21: #{cnn_lstm_forward.4} parent=0 // pred_fallthru
    _

// kernel: cnn_lstm_forward.5
$region0: #{cnn_lstm_forward.5}
  #allocation0 [shape = 'u32[]', space=smem, size = 0x4, offset = 0x4, fixed_abs, tag = 'smem constant byte address 0x4 - core index']
  #allocation1 [shape = 'u32[144,128]{1,0:T(1,128)}', space=vmem, size = 0x12000, scoped, tag = 'internal scratch']
  #allocation2 [shape = 'f32[16,64]{1,0:T(8,128)}', space=vmem, size = 0x2000, scoped, tag = 'scratch operand']
  %s0 = inlined_call_operand.vmem [shape: f32[16,24], index: 0, kind: input, shape index: {}]
  %s1 = inlined_call_operand.vmem [shape: f32[16,10], index: 1, kind: input, shape index: {}]
  %s2 = inlined_call_operand.vmem [shape: bf16[2,24,64], index: 2, kind: input, shape index: {}]
  %s3 = inlined_call_operand.vmem [shape: bf16[2,10,64], index: 3, kind: input, shape index: {}]
  %s4 = inlined_call_operand.vmem [shape: bf16[2,16,64], index: 4, kind: input, shape index: {}]
  %s5 = inlined_call_operand.vmem [shape: f32[2,1,64], index: 5, kind: input, shape index: {}]
  %s6 = inlined_call_operand.vmem [shape: f32[2,8,2,16], index: 6, kind: output, shape index: {}]
  %s7 = sld [smem:[#allocation0]]
  $region57: #{cnn_lstm_forward.5} parent=0
    _
  %s9 = ssub.s32 1, %s7
  %s10 = scalar_select 0, %s9, %s7
  loop: start=0, step=1, limit=4
  $region2: #{cnn_lstm_forward.5} parent=0 // loop_pre_header
    _
  $region3: #{cnn_lstm_forward.5} parent=0 // loop_header
    %s12 = sphi 0, %s16
    %p13 = scmp.ge.s32.totalorder %s12, 4
    %s20 = sphi 0, %s20
    %s22 = sphi 0, %s20
    %s23 = sphi 0, %s22
    %s37 = sphi 0, %s23
    %s41 = sphi 0, %s41
    %s43 = sphi 0, %s41
    %s44 = sphi 0, %s43
    %s58 = sphi 0, %s44
    %s64 = sphi 0, %s66
    %s67 = sphi 0, %s64
    %s68 = sphi 0, %s67
    %s84 = sphi 0, %s68
    %s90 = sphi 0, %s92
    %s93 = sphi 0, %s90
    %s94 = sphi 0, %s93
    %s110 = sphi 0, %s94
    %s116 = sphi 0, %s118
    %s119 = sphi 0, %s116
    %s120 = sphi 0, %s119
    %s136 = sphi 0, %s120
    %s142 = sphi 0, %s144
    %s145 = sphi 0, %s142
    %s146 = sphi 0, %s145
    %s162 = sphi 0, %s146
    %s168 = sphi 0, %s170
    %s171 = sphi 0, %s168
    %s172 = sphi 0, %s171
    %s188 = sphi 0, %s172
  $region4: #{cnn_lstm_forward.5} parent=0 // loop_header_branch
    %15 = sbr.rel (%p13) target = $region8
  $region5: #{cnn_lstm_forward.5} parent=0 // loop_body
    %s17 = ssub.s32 %s12, 1
    %s18 = ssub.s32 %s12, 2
    %s19 = sadd.s32 %s12, 1
    %s21 = sadd.s32 %s20, 1
    %p24 = scmp.eq.s32.totalorder %s12, 1
    %p25 = scmp.ne.s32.totalorder %s20, %s22
    %p26 = scmp.eq.s32.totalorder %s12, 0
    %p27 = por %p25, %p26
    %p28 = scmp.ne.s32.totalorder %s20, %s22
    %p29 = scmp.eq.s32.totalorder %s17, 1
    %p30 = por %p28, %p29
    %p31 = scmp.ne.s32.totalorder %s22, %s23
    %p32 = scmp.eq.s32.totalorder %s17, 0
    %p33 = por %p31, %p32
    %p34 = scmp.ne.s32.totalorder %s22, %s23
    %p35 = scmp.eq.s32.totalorder %s18, 1
    %p36 = por %p34, %p35
    %p38 = scmp.ne.s32.totalorder %s23, %s37
    %p39 = scmp.eq.s32.totalorder %s18, 0
    %p40 = por %p38, %p39
    %s42 = sadd.s32 %s41, 1
    %p45 = scmp.eq.s32.totalorder %s12, 1
    %p46 = scmp.ne.s32.totalorder %s41, %s43
    %p47 = scmp.eq.s32.totalorder %s12, 0
    %p48 = por %p46, %p47
    %p49 = scmp.ne.s32.totalorder %s41, %s43
    %p50 = scmp.eq.s32.totalorder %s17, 1
    %p51 = por %p49, %p50
    %p52 = scmp.ne.s32.totalorder %s43, %s44
    %p53 = scmp.eq.s32.totalorder %s17, 0
    %p54 = por %p52, %p53
    %p55 = scmp.ne.s32.totalorder %s43, %s44
    %p56 = scmp.eq.s32.totalorder %s18, 1
    %p57 = por %p55, %p56
    %p59 = scmp.ne.s32.totalorder %s44, %s58
    %p60 = scmp.eq.s32.totalorder %s18, 0
    %p61 = por %p59, %p60
    %s62 = ssub.s32 %s12, %s19
    %p63 = scmp.eq.s32.totalorder %s62, 0
    %s65 = sadd.s32 %s64, 1
    %s66 = scalar_select %p63, %s64, %s65
    %p69 = pneg %p63
    %p70 = scmp.eq.s32.totalorder %s12, 1
    %p71 = por %p69, %p70
    %p72 = scmp.ne.s32.totalorder %s64, %s67
    %p73 = scmp.eq.s32.totalorder %s12, 0
    %p74 = por %p72, %p73
    %p75 = scmp.ne.s32.totalorder %s64, %s67
    %p76 = scmp.eq.s32.totalorder %s17, 1
    %p77 = por %p75, %p76
    %p78 = scmp.ne.s32.totalorder %s67, %s68
    %p79 = scmp.eq.s32.totalorder %s17, 0
    %p80 = por %p78, %p79
    %p81 = scmp.ne.s32.totalorder %s67, %s68
    %p82 = scmp.eq.s32.totalorder %s18, 1
    %p83 = por %p81, %p82
    %p85 = scmp.ne.s32.totalorder %s68, %s84
    %p86 = scmp.eq.s32.totalorder %s18, 0
    %p87 = por %p85, %p86
    %s88 = ssub.s32 %s12, %s19
    %p89 = scmp.eq.s32.totalorder %s88, 0
    %s91 = sadd.s32 %s90, 1
    %s92 = scalar_select %p89, %s90, %s91
    %p95 = pneg %p89
    %p96 = scmp.eq.s32.totalorder %s12, 1
    %p97 = por %p95, %p96
    %p98 = scmp.ne.s32.totalorder %s90, %s93
    %p99 = scmp.eq.s32.totalorder %s12, 0
    %p100 = por %p98, %p99
    %p101 = scmp.ne.s32.totalorder %s90, %s93
    %p102 = scmp.eq.s32.totalorder %s17, 1
    %p103 = por %p101, %p102
    %p104 = scmp.ne.s32.totalorder %s93, %s94
    %p105 = scmp.eq.s32.totalorder %s17, 0
    %p106 = por %p104, %p105
    %p107 = scmp.ne.s32.totalorder %s93, %s94
    %p108 = scmp.eq.s32.totalorder %s18, 1
    %p109 = por %p107, %p108
    %p111 = scmp.ne.s32.totalorder %s94, %s110
    %p112 = scmp.eq.s32.totalorder %s18, 0
    %p113 = por %p111, %p112
    %s114 = ssub.s32 %s12, %s19
    %p115 = scmp.eq.s32.totalorder %s114, 0
    %s117 = sadd.s32 %s116, 1
    %s118 = scalar_select %p115, %s116, %s117
    %p121 = pneg %p115
    %p122 = scmp.eq.s32.totalorder %s12, 1
    %p123 = por %p121, %p122
    %p124 = scmp.ne.s32.totalorder %s116, %s119
    %p125 = scmp.eq.s32.totalorder %s12, 0
    %p126 = por %p124, %p125
    %p127 = scmp.ne.s32.totalorder %s116, %s119
    %p128 = scmp.eq.s32.totalorder %s17, 1
    %p129 = por %p127, %p128
    %p130 = scmp.ne.s32.totalorder %s119, %s120
    %p131 = scmp.eq.s32.totalorder %s17, 0
    %p132 = por %p130, %p131
    %p133 = scmp.ne.s32.totalorder %s119, %s120
    %p134 = scmp.eq.s32.totalorder %s18, 1
    %p135 = por %p133, %p134
    %p137 = scmp.ne.s32.totalorder %s120, %s136
    %p138 = scmp.eq.s32.totalorder %s18, 0
    %p139 = por %p137, %p138
    %s140 = ssub.s32 %s12, %s19
    %p141 = scmp.eq.s32.totalorder %s140, 0
    %s143 = sadd.s32 %s142, 1
    %s144 = scalar_select %p141, %s142, %s143
    %p147 = pneg %p141
    %p148 = scmp.eq.s32.totalorder %s12, 1
    %p149 = por %p147, %p148
    %p150 = scmp.ne.s32.totalorder %s142, %s145
    %p151 = scmp.eq.s32.totalorder %s12, 0
    %p152 = por %p150, %p151
    %p153 = scmp.ne.s32.totalorder %s142, %s145
    %p154 = scmp.eq.s32.totalorder %s17, 1
    %p155 = por %p153, %p154
    %p156 = scmp.ne.s32.totalorder %s145, %s146
    %p157 = scmp.eq.s32.totalorder %s17, 0
    %p158 = por %p156, %p157
    %p159 = scmp.ne.s32.totalorder %s145, %s146
    %p160 = scmp.eq.s32.totalorder %s18, 1
    %p161 = por %p159, %p160
    %p163 = scmp.ne.s32.totalorder %s146, %s162
    %p164 = scmp.eq.s32.totalorder %s18, 0
    %p165 = por %p163, %p164
    %s166 = ssub.s32 %s12, %s19
    %p167 = scmp.eq.s32.totalorder %s166, 0
    %s169 = sadd.s32 %s168, 1
    %s170 = scalar_select %p167, %s168, %s169
    %p173 = pneg %p167
    %p174 = scmp.eq.s32.totalorder %s12, 1
    %p175 = por %p173, %p174
    %p176 = scmp.ne.s32.totalorder %s168, %s171
    %p177 = scmp.eq.s32.totalorder %s12, 0
    %p178 = por %p176, %p177
    %p179 = scmp.ne.s32.totalorder %s168, %s171
    %p180 = scmp.eq.s32.totalorder %s17, 1
    %p181 = por %p179, %p180
    %p182 = scmp.ne.s32.totalorder %s171, %s172
    %p183 = scmp.eq.s32.totalorder %s17, 0
    %p184 = por %p182, %p183
    %p185 = scmp.ne.s32.totalorder %s171, %s172
    %p186 = scmp.eq.s32.totalorder %s18, 1
    %p187 = por %p185, %p186
    %p189 = scmp.ne.s32.totalorder %s172, %s188
    %p190 = scmp.eq.s32.totalorder %s18, 0
    %p191 = por %p189, %p190
    %p192 = scmp.le.s32.totalorder 1, %s12
    %p193 = scmp.lt.s32.totalorder %s12, 3
    %p194 = pnand %p192, %p193
    %p195 = pneg %p194
    // Predicated region
    $region9: #{cnn_lstm_forward.5} parent=5 // pred_check
      _
    $region10: #{cnn_lstm_forward.5} parent=5 // pred_check_branch
      %197 = sbr.rel (%p194) target = $region12
    $region11: #{cnn_lstm_forward.5} parent=5 // pred_region
      %s198 = ssub.s32 %s12, 1
      // Predicated region
      $region13: #{cnn_lstm_forward.5} parent=11 // pred_check
        %p199 = pneg %p33
      $region14: #{cnn_lstm_forward.5} parent=11 // pred_check_branch
        %201 = sbr.rel (%p199) target = $region16
      $region15: #{cnn_lstm_forward.5} parent=11 // pred_region
        _
      $region16: #{cnn_lstm_forward.5} parent=11 // pred_fallthru
        _
      // Predicated region
      $region17: #{cnn_lstm_forward.5} parent=11 // pred_check
        %p202 = pneg %p54
      $region18: #{cnn_lstm_forward.5} parent=11 // pred_check_branch
        %204 = sbr.rel (%p202) target = $region20
      $region19: #{cnn_lstm_forward.5} parent=11 // pred_region
        _
      $region20: #{cnn_lstm_forward.5} parent=11 // pred_fallthru
        _
    $region12: #{cnn_lstm_forward.5} parent=5 // pred_fallthru
      _
    %p205 = scmp.lt.s32.totalorder %s12, 2
    // Predicated region
    $region21: #{cnn_lstm_forward.5} parent=5 // pred_check
      %p206 = pneg %p205
    $region22: #{cnn_lstm_forward.5} parent=5 // pred_check_branch
      %208 = sbr.rel (%p206) target = $region24
    $region23: #{cnn_lstm_forward.5} parent=5 // pred_region
      // Predicated region
      $region25: #{cnn_lstm_forward.5} parent=23 // pred_check
        %p209 = pneg %p74
      $region26: #{cnn_lstm_forward.5} parent=23 // pred_check_branch
        %211 = sbr.rel (%p209) target = $region28
      $region27: #{cnn_lstm_forward.5} parent=23 // pred_region
        %p212 = scmp.lt.s32.totalorder %s12, 1
        %s213 = scalar_select %p212, %s12, 1
        %s214 = smul.addr %s213, 3
        %s215 = smul.addr %s214, 4
        %s216 = scalar_lea.vmem %s2, %s215
      $region28: #{cnn_lstm_forward.5} parent=23 // pred_fallthru
        _
      // Predicated region
      $region29: #{cnn_lstm_forward.5} parent=23 // pred_check
        %p217 = pneg %p100
      $region30: #{cnn_lstm_forward.5} parent=23 // pred_check_branch
        %219 = sbr.rel (%p217) target = $region32
      $region31: #{cnn_lstm_forward.5} parent=23 // pred_region
        %p220 = scmp.lt.s32.totalorder %s12, 1
        %s221 = scalar_select %p220, %s12, 1
        %s222 = smul.addr %s221, 2
        %s223 = smul.addr %s222, 4
        %s224 = scalar_lea.vmem %s3, %s223
      $region32: #{cnn_lstm_forward.5} parent=23 // pred_fallthru
        _
      // Predicated region
      $region33: #{cnn_lstm_forward.5} parent=23 // pred_check
        %p225 = pneg %p126
      $region34: #{cnn_lstm_forward.5} parent=23 // pred_check_branch
        %227 = sbr.rel (%p225) target = $region36
      $region35: #{cnn_lstm_forward.5} parent=23 // pred_region
        %p228 = scmp.lt.s32.totalorder %s12, 1
        %s229 = scalar_select %p228, %s12, 1
        %s230 = smul.addr %s229, 2
        %s231 = smul.addr %s230, 4
        %s232 = scalar_lea.vmem %s4, %s231
      $region36: #{cnn_lstm_forward.5} parent=23 // pred_fallthru
        _
      // Predicated region
      $region37: #{cnn_lstm_forward.5} parent=23 // pred_check
        %p233 = pneg %p152
      $region38: #{cnn_lstm_forward.5} parent=23 // pred_check_branch
        %235 = sbr.rel (%p233) target = $region40
      $region39: #{cnn_lstm_forward.5} parent=23 // pred_region
        %p236 = scmp.lt.s32.totalorder %s12, 1
        %s237 = scalar_select %p236, %s12, 1
        %s238 = scalar_lea.vmem %s5, %s237
      $region40: #{cnn_lstm_forward.5} parent=23 // pred_fallthru
        _
    $region24: #{cnn_lstm_forward.5} parent=5 // pred_fallthru
      _
    %p239 = scmp.le.s32.totalorder 1, %s12
    %p240 = scmp.lt.s32.totalorder %s12, 3
    %p241 = pnand %p239, %p240
    %p242 = pneg %p241
    // Predicated region
    $region41: #{cnn_lstm_forward.5} parent=5 // pred_check
      _
    $region42: #{cnn_lstm_forward.5} parent=5 // pred_check_branch
      %244 = sbr.rel (%p241) target = $region44
    $region43: #{cnn_lstm_forward.5} parent=5 // pred_region
      %s245 = ssub.s32 %s12, 1
      %p246 = pneg %p33
      %p247 = pneg %p30
      %p248 = pneg %p54
      %p249 = pneg %p51
      %p250 = scmp.lt.s32.totalorder %s17, 1
      %s251 = scalar_select %p250, %s17, 1
      %s252 = smul.addr %s251, 3
      %s253 = smul.addr %s252, 4
      %s254 = scalar_lea.vmem %s2, %s253
      %p255 = pneg %p80
      %p256 = pneg %p77
      %p257 = scmp.lt.s32.totalorder %s17, 1
      %s258 = scalar_select %p257, %s17, 1
      %s259 = smul.addr %s258, 2
      %s260 = smul.addr %s259, 4
      %s261 = scalar_lea.vmem %s3, %s260
      %p262 = pneg %p106
      %p263 = pneg %p103
      %p264 = scmp.lt.s32.totalorder %s17, 1
      %s265 = scalar_select %p264, %s17, 1
      %s266 = smul.addr %s265, 2
      %s267 = smul.addr %s266, 4
      %s268 = scalar_lea.vmem %s4, %s267
      %p269 = pneg %p132
      %p270 = pneg %p129
      %p271 = scmp.lt.s32.totalorder %s17, 1
      %s272 = scalar_select %p271, %s17, 1
      %s273 = scalar_lea.vmem %s5, %s272
      %p274 = pneg %p158
      %p275 = pneg %p155
      %p276 = pneg %p184
      %p277 = pneg %p181
      %p278 = scmp.lt.s32.totalorder %s17, 1
      %s279 = scalar_select %p278, %s17, 1
      %s280 = smul.addr %s279, 8
      %s281 = smul.addr %s280, 2
      %s282 = scalar_lea.vmem %s6, %s281
      %p283 = scmp.lt.s32.totalorder %s17, 1
      %s284 = scalar_select %p283, %s17, 1
      %s285 = smul.addr %s284, 3
      %s286 = smul.addr %s285, 4
      %s287 = scalar_lea.vmem %s2, %s286
      %p288 = scmp.lt.s32.totalorder %s17, 1
      %s289 = scalar_select %p288, %s17, 1
      %s290 = smul.addr %s289, 2
      %s291 = smul.addr %s290, 4
      %s292 = scalar_lea.vmem %s3, %s291
      %p293 = scmp.lt.s32.totalorder %s17, 1
      %s294 = scalar_select %p293, %s17, 1
      %s295 = smul.addr %s294, 2
      %s296 = smul.addr %s295, 4
      %s297 = scalar_lea.vmem %s4, %s296
      %p298 = scmp.lt.s32.totalorder %s17, 1
      %s299 = scalar_select %p298, %s17, 1
      %s300 = scalar_lea.vmem %s5, %s299
      %p301 = scmp.lt.s32.totalorder %s17, 1
      %s302 = scalar_select %p301, %s17, 1
      %s303 = smul.addr %s302, 8
      %s304 = smul.addr %s303, 2
      %s305 = scalar_lea.vmem %s6, %s304
      %v307 = vld [vmem:[%s297] sm:$0xf]
      %v308 = vld [vmem:[%s297 + $0x4] sm:$0xf]
      %v309 = vld [vmem:[%s300] sm:$0x1]
      %v310 = vld [vmem:[%s0] sm:$0xff]
      %v311 = vld [vmem:[%s0 + $0x8] sm:$0xff]
      %v312 = vpack.c.bf16 %v311, %v310
      %v313 = vld [vmem:[%s287] sm:$0xf]
      %v314 = vld [vmem:[%s287 + $0x4] sm:$0xf]
      %v315 = vld [vmem:[%s287 + $0x8] sm:$0xf]
      %v319 = vunpack.c.l.b16 %v313
      %v320 = vunpack.c.l.b16 %v314
      %v321 = vunpack.c.l.b16 %v315
      %v322 = vpack.c.b16 %v320, %v319
      %v323 = vpack.c.b16 %v321, %v321
      %vm325 = vcmask 195584
      %v327 = vsel %vm325, %v312, 0
      %vm329 = vcmask 1043456
      %v331 = vsel %vm329, %v323, 0
      %333 = vmatprep.subr.bf16.mxu0 0
      %334 = vmatpush1.bf16.msra.mxu0 %v322
      %335 = vmatprep.subr.bf16.mxu0 0
      %336 = vmatpush1.bf16.msra.mxu0 %v331
      %337 = vmatprep.subr.bf16.mxu0 0
      %338 = vmatpush1.bf16.msra.mxu0 0
      %339 = vmatprep.subr.bf16.mxu0 0
      %340 = vmatpush1.bf16.msra.mxu0 0
      %341 = vmatprep.subr.bf16.mxu0 0
      %342 = vmatpush1.bf16.msra.mxu0 0
      %343 = vmatprep.subr.bf16.mxu0 0
      %344 = vmatpush1.bf16.msra.mxu0 0
      %345 = vmatprep.subr.bf16.mxu0 0
      %346 = vmatpush1.bf16.msra.mxu0 0
      %347 = vmatprep.subr.bf16.mxu0 0
      %348 = vmatpush1.bf16.msra.mxu0 0
      %349 = vmatprep.subr.bf16.mxu0 0
      %350 = vmatpush1.bf16.msra.mxu0 0
      %351 = vmatprep.subr.bf16.mxu0 0
      %352 = vmatpush1.bf16.msra.mxu0 0
      %353 = vmatprep.subr.bf16.mxu0 0
      %354 = vmatpush1.bf16.msra.mxu0 0
      %355 = vmatprep.subr.bf16.mxu0 0
      %356 = vmatpush1.bf16.msra.mxu0 0
      %357 = vmatprep.subr.bf16.mxu0 0
      %358 = vmatpush1.bf16.msra.mxu0 0
      %359 = vmatprep.subr.bf16.mxu0 0
      %360 = vmatpush1.bf16.msra.mxu0 0
      %361 = vmatprep.subr.bf16.mxu0 0
      %362 = vmatpush1.bf16.msra.mxu0 0
      %363 = vmatprep.subr.bf16.mxu0 0
      %364 = vmatpush1.bf16.msra.mxu0 0
      %365 = vmatprep.mubr.bf16.mxu0 0
      %366 = vmatmul.mubr.bf16.gmra.mrb[0].mxu0 %v327
      %v367 = vpop.f32.mrb[0].mxu0
      %v368 = vadd.f32 0.0, %v367
      %v369 = vpop.f32.mrb[0].mxu0
      %v370 = vpop.f32.mrb[0].mxu0
      %v371 = vadd.f32 0.0, %v370
      %v372 = vpop.f32.mrb[0].mxu0
      %373 = vdwg.mxu0
      %v375 = vlaneseq
      %v376 = vshrl.u32 %v375, 7
      %v377 = vsub.s32 0, %v376
      %v378 = vrot.slane %v309, %v377
      %v380 = vadd.f32 %v378, %v368
      %v381 = vadd.f32 %v378, %v371
      %v382 = vld [vmem:[%s1] sm:$0xff]
      %v383 = vld [vmem:[%s1 + $0x8] sm:$0xff]
      %v384 = vpack.c.bf16 %v383, %v382
      %v385 = vld [vmem:[%s292] sm:$0xf]
      %v386 = vld [vmem:[%s292 + $0x4] sm:$0x1]
      %v389 = vunpack.c.l.b16 %v385
      %v390 = vunpack.c.l.b16 %v386
      %v391 = vpack.c.b16 %v390, %v389
      %vm392 = vcmask 80896
      %v394 = vsel %vm392, %v384, 0
      %vm396 = vcmask 1044480
      %v398 = vsel %vm396, %v391, 0
      %400 = vmatprep.subr.bf16.mxu0 0
      %401 = vmatpush1.bf16.msra.mxu0 %v398
      %402 = vmatprep.subr.bf16.mxu0 0
      %403 = vmatpush1.bf16.msra.mxu0 0
      %404 = vmatprep.subr.bf16.mxu0 0
      %405 = vmatpush1.bf16.msra.mxu0 0
      %406 = vmatprep.subr.bf16.mxu0 0
      %407 = vmatpush1.bf16.msra.mxu0 0
      %408 = vmatprep.subr.bf16.mxu0 0
      %409 = vmatpush1.bf16.msra.mxu0 0
      %410 = vmatprep.subr.bf16.mxu0 0
      %411 = vmatpush1.bf16.msra.mxu0 0
      %412 = vmatprep.subr.bf16.mxu0 0
      %413 = vmatpush1.bf16.msra.mxu0 0
      %414 = vmatprep.subr.bf16.mxu0 0
      %415 = vmatpush1.bf16.msra.mxu0 0
      %416 = vmatprep.subr.bf16.mxu0 0
      %417 = vmatpush1.bf16.msra.mxu0 0
      %418 = vmatprep.subr.bf16.mxu0 0
      %419 = vmatpush1.bf16.msra.mxu0 0
      %420 = vmatprep.subr.bf16.mxu0 0
      %421 = vmatpush1.bf16.msra.mxu0 0
      %422 = vmatprep.subr.bf16.mxu0 0
      %423 = vmatpush1.bf16.msra.mxu0 0
      %424 = vmatprep.subr.bf16.mxu0 0
      %425 = vmatpush1.bf16.msra.mxu0 0
      %426 = vmatprep.subr.bf16.mxu0 0
      %427 = vmatpush1.bf16.msra.mxu0 0
      %428 = vmatprep.subr.bf16.mxu0 0
      %429 = vmatpush1.bf16.msra.mxu0 0
      %430 = vmatprep.subr.bf16.mxu0 0
      %431 = vmatpush1.bf16.msra.mxu0 0
      %432 = vmatprep.mubr.bf16.mxu0 0
      %433 = vmatmul.mubr.bf16.gmra.mrb[0].mxu0 %v394
      %v434 = vpop.f32.mrb[0].mxu0
      %v435 = vadd.f32 0.0, %v434
      %v436 = vpop.f32.mrb[0].mxu0
      %v437 = vpop.f32.mrb[0].mxu0
      %v438 = vadd.f32 0.0, %v437
      %v439 = vpop.f32.mrb[0].mxu0
      %440 = vdwg.mxu0
      %v441 = vadd.f32 %v380, %v435
      %v442 = vadd.f32 %v381, %v438
      %vm443 = vcmask 523264
      %444 = vst.msk [vmem:[#allocation2] sm:$0xff] %vm443, %v441
      %445 = vst.msk [vmem:[#allocation2 + $0x8] sm:$0xff] %vm443, %v442
      %s446 = smul.u32 %s17, 7
      %s447 = smul.u32 %s17, 14
      %s448 = scalar_lea.vmem [#allocation2], %s447
      %v449 = vld [vmem:[%s448] sm:$0x3]
      %v452 = vunpack.c.l.b16 %v307
      %v453 = vunpack.c.l.b16 %v308
      %v454 = vpack.c.b16 %v453, %v452
      %vm456 = vcmask 130048
      %v458 = vsel %vm456, 0, 0
      %460 = vmatprep.subr.bf16.mxu0 0
      %461 = vmatpush1.bf16.msra.mxu0 %v454
      %462 = vmatprep.subr.bf16.mxu0 0
      %463 = vmatpush1.bf16.msra.mxu0 0
      %464 = vmatprep.subr.bf16.mxu0 0
      %465 = vmatpush1.bf16.msra.mxu0 0
      %466 = vmatprep.subr.bf16.mxu0 0
      %467 = vmatpush1.bf16.msra.mxu0 0
      %468 = vmatprep.subr.bf16.mxu0 0
      %469 = vmatpush1.bf16.msra.mxu0 0
      %470 = vmatprep.subr.bf16.mxu0 0
      %471 = vmatpush1.bf16.msra.mxu0 0
      %472 = vmatprep.subr.bf16.mxu0 0
      %473 = vmatpush1.bf16.msra.mxu0 0
      %474 = vmatprep.subr.bf16.mxu0 0
      %475 = vmatpush1.bf16.msra.mxu0 0
      %476 = vmatprep.subr.bf16.mxu0 0
      %477 = vmatpush1.bf16.msra.mxu0 0
      %478 = vmatprep.subr.bf16.mxu0 0
      %479 = vmatpush1.bf16.msra.mxu0 0
      %480 = vmatprep.subr.bf16.mxu0 0
      %481 = vmatpush1.bf16.msra.mxu0 0
      %482 = vmatprep.subr.bf16.mxu0 0
      %483 = vmatpush1.bf16.msra.mxu0 0
      %484 = vmatprep.subr.bf16.mxu0 0
      %485 = vmatpush1.bf16.msra.mxu0 0
      %486 = vmatprep.subr.bf16.mxu0 0
      %487 = vmatpush1.bf16.msra.mxu0 0
      %488 = vmatprep.subr.bf16.mxu0 0
      %489 = vmatpush1.bf16.msra.mxu0 0
      %490 = vmatprep.subr.bf16.mxu0 0
      %491 = vmatpush1.bf16.msra.mxu0 0
      %492 = vmatprep.mubr.bf16.mxu0 0
      %493 = vmatmul.mubr.bf16.gmra.mrb[0].mxu0 %v458
      %v494 = vpop.f32.mrb[0].mxu0
      %v495 = vadd.f32 0.0, %v494
      %v496 = vpop.f32.mrb[0].mxu0
      %v497 = vpop.f32.mrb[0].mxu0
      %v498 = vpop.f32.mrb[0].mxu0
      %499 = vdwg.mxu0
      %v500 = vadd.f32 %v449, %v495
      %v501 = vsub.f32 0.0, %v500
      %v502 = vmul.f32 %v501, 1.442695
      %v503 = vpow.pop %v502
      %v504 = vadd.f32 %v503, 1.0
      %v505 = vrcp.pop %v504
      %v506 = vmul.f32 1.0, %v505
      %v507 = vtanh.pop %v500
      %v508 = vmul.f32 %v506, 0.0
      %510 = vrot.lane.b32.xlu0 %v507, 96
      %v511 = vpop.permute.xlu0 %510
      %v513 = vmul.f32 %v506, %v511
      %515 = vrot.lane.b32.xlu0 %v513, 16
      %v516 = vpop.permute.xlu0 %515
      %v518 = vadd.f32 %v508, %v516
      %v519 = vtanh.pop %v518
      %521 = vrot.lane.b32.xlu0 %v519, 32
      %v522 = vpop.permute.xlu0 %521
      %v524 = vmul.f32 %v506, %v522
      %526 = vrot.lane.b32.xlu0 %v524, 80
      %v527 = vpop.permute.xlu0 %526
      %s529 = smul.u32 %s446, 2
      %s530 = scalar_lea.vmem %s305, %s529
      %vm531 = vcmask 123904
      %532 = vst.msk [vmem:[%s530] sm:$0x3] %vm531, %v527
      %s533 = smul.u32 %s17, 5
      %s534 = sadd.s32 %s533, 1
      %s535 = smul.u32 %s534, 2
      %s536 = scalar_lea.vmem [#allocation2], %s535
      %v537 = vld [vmem:[%s536] sm:$0x3]
      %v538 = vpack.c.bf16 %v524, %v524
      %540 = vrot.lane.b32.xlu0 %v538, 80
      %v541 = vpop.permute.xlu0 %540
      %v543 = vsel %vm456, %v541, 0
      %545 = vmatprep.subr.bf16.mxu0 0
      %546 = vmatpush1.bf16.msra.mxu0 %v454
      %547 = vmatprep.subr.bf16.mxu0 0
      %548 = vmatpush1.bf16.msra.mxu0 0
      %549 = vmatprep.subr.bf16.mxu0 0
      %550 = vmatpush1.bf16.msra.mxu0 0
      %551 = vmatprep.subr.bf16.mxu0 0
      %552 = vmatpush1.bf16.msra.mxu0 0
      %553 = vmatprep.subr.bf16.mxu0 0
      %554 = vmatpush1.bf16.msra.mxu0 0
      %555 = vmatprep.subr.bf16.mxu0 0
      %556 = vmatpush1.bf16.msra.mxu0 0
      %557 = vmatprep.subr.bf16.mxu0 0
      %558 = vmatpush1.bf16.msra.mxu0 0
      %559 = vmatprep.subr.bf16.mxu0 0
      %560 = vmatpush1.bf16.msra.mxu0 0
      %561 = vmatprep.subr.bf16.mxu0 0
      %562 = vmatpush1.bf16.msra.mxu0 0
      %563 = vmatprep.subr.bf16.mxu0 0
      %564 = vmatpush1.bf16.msra.mxu0 0
      %565 = vmatprep.subr.bf16.mxu0 0
      %566 = vmatpush1.bf16.msra.mxu0 0
      %567 = vmatprep.subr.bf16.mxu0 0
      %568 = vmatpush1.bf16.msra.mxu0 0
      %569 = vmatprep.subr.bf16.mxu0 0
      %570 = vmatpush1.bf16.msra.mxu0 0
      %571 = vmatprep.subr.bf16.mxu0 0
      %572 = vmatpush1.bf16.msra.mxu0 0
      %573 = vmatprep.subr.bf16.mxu0 0
      %574 = vmatpush1.bf16.msra.mxu0 0
      %575 = vmatprep.subr.bf16.mxu0 0
      %576 = vmatpush1.bf16.msra.mxu0 0
      %577 = vmatprep.mubr.bf16.mxu0 0
      %578 = vmatmul.mubr.bf16.gmra.mrb[0].mxu0 %v543
      %v579 = vpop.f32.mrb[0].mxu0
      %v580 = vadd.f32 0.0, %v579
      %v581 = vpop.f32.mrb[0].mxu0
      %v582 = vpop.f32.mrb[0].mxu0
      %v583 = vpop.f32.mrb[0].mxu0
      %584 = vdwg.mxu0
      %v585 = vadd.f32 %v537, %v580
      %v586 = vsub.f32 0.0, %v585
      %v587 = vmul.f32 %v586, 1.442695
      %v588 = vpow.pop %v587
      %v589 = vadd.f32 %v588, 1.0
      %v590 = vrcp.pop %v589
      %v591 = vmul.f32 1.0, %v590
      %v592 = vtanh.pop %v585
      %v593 = vmul.f32 %v591, %v518
      %595 = vrot.lane.b32.xlu0 %v592, 96
      %v596 = vpop.permute.xlu0 %595
      %v598 = vmul.f32 %v591, %v596
      %600 = vrot.lane.b32.xlu0 %v598, 16
      %v601 = vpop.permute.xlu0 %600
      %v603 = vadd.f32 %v593, %v601
      %v604 = vtanh.pop %v603
      %606 = vrot.lane.b32.xlu0 %v604, 32
      %v607 = vpop.permute.xlu0 %606
      %v609 = vmul.f32 %v591, %v607
      %611 = vrot.lane.b32.xlu0 %v609, 80
      %v612 = vpop.permute.xlu0 %611
      %s614 = scalar_lea.vmem %s305, %s535
      %615 = vst.msk [vmem:[%s614] sm:$0x3] %vm531, %v612
      %s616 = smul.u32 %s17, 3
      %s617 = sadd.s32 %s616, 2
      %s618 = smul.u32 %s617, 2
      %s619 = scalar_lea.vmem [#allocation2], %s618
      %v620 = vld [vmem:[%s619] sm:$0x3]
      %v621 = vpack.c.bf16 %v609, %v609
      %623 = vrot.lane.b32.xlu0 %v621, 80
      %v624 = vpop.permute.xlu0 %623
      %v626 = vsel %vm456, %v624, 0
      %628 = vmatprep.subr.bf16.mxu0 0
      %629 = vmatpush1.bf16.msra.mxu0 %v454
      %630 = vmatprep.subr.bf16.mxu0 0
      %631 = vmatpush1.bf16.msra.mxu0 0
      %632 = vmatprep.subr.bf16.mxu0 0
      %633 = vmatpush1.bf16.msra.mxu0 0
      %634 = vmatprep.subr.bf16.mxu0 0
      %635 = vmatpush1.bf16.msra.mxu0 0
      %636 = vmatprep.subr.bf16.mxu0 0
      %637 = vmatpush1.bf16.msra.mxu0 0
      %638 = vmatprep.subr.bf16.mxu0 0
      %639 = vmatpush1.bf16.msra.mxu0 0
      %640 = vmatprep.subr.bf16.mxu0 0
      %641 = vmatpush1.bf16.msra.mxu0 0
      %642 = vmatprep.subr.bf16.mxu0 0
      %643 = vmatpush1.bf16.msra.mxu0 0
      %644 = vmatprep.subr.bf16.mxu0 0
      %645 = vmatpush1.bf16.msra.mxu0 0
      %646 = vmatprep.subr.bf16.mxu0 0
      %647 = vmatpush1.bf16.msra.mxu0 0
      %648 = vmatprep.subr.bf16.mxu0 0
      %649 = vmatpush1.bf16.msra.mxu0 0
      %650 = vmatprep.subr.bf16.mxu0 0
      %651 = vmatpush1.bf16.msra.mxu0 0
      %652 = vmatprep.subr.bf16.mxu0 0
      %653 = vmatpush1.bf16.msra.mxu0 0
      %654 = vmatprep.subr.bf16.mxu0 0
      %655 = vmatpush1.bf16.msra.mxu0 0
      %656 = vmatprep.subr.bf16.mxu0 0
      %657 = vmatpush1.bf16.msra.mxu0 0
      %658 = vmatprep.subr.bf16.mxu0 0
      %659 = vmatpush1.bf16.msra.mxu0 0
      %660 = vmatprep.mubr.bf16.mxu0 0
      %661 = vmatmul.mubr.bf16.gmra.mrb[0].mxu0 %v626
      %v662 = vpop.f32.mrb[0].mxu0
      %v663 = vadd.f32 0.0, %v662
      %v664 = vpop.f32.mrb[0].mxu0
      %v665 = vpop.f32.mrb[0].mxu0
      %v666 = vpop.f32.mrb[0].mxu0
      %667 = vdwg.mxu0
      %v668 = vadd.f32 %v620, %v663
      %v669 = vsub.f32 0.0, %v668
      %v670 = vmul.f32 %v669, 1.442695
      %v671 = vpow.pop %v670
      %v672 = vadd.f32 %v671, 1.0
      %v673 = vrcp.pop %v672
      %v674 = vmul.f32 1.0, %v673
      %v675 = vtanh.pop %v668
      %v676 = vmul.f32 %v674, %v603
      %678 = vrot.lane.b32.xlu0 %v675, 96
      %v679 = vpop.permute.xlu0 %678
      %v681 = vmul.f32 %v674, %v679
      %683 = vrot.lane.b32.xlu0 %v681, 16
      %v684 = vpop.permute.xlu0 %683
      %v686 = vadd.f32 %v676, %v684
      %v687 = vtanh.pop %v686
      %689 = vrot.lane.b32.xlu0 %v687, 32
      %v690 = vpop.permute.xlu0 %689
      %v692 = vmul.f32 %v674, %v690
      %694 = vrot.lane.b32.xlu0 %v692, 80
      %v695 = vpop.permute.xlu0 %694
      %s697 = scalar_lea.vmem %s305, %s618
      %698 = vst.msk [vmem:[%s697] sm:$0x3] %vm531, %v695
      %s699 = sadd.s32 %s17, 3
      %s700 = smul.u32 %s699, 2
      %s701 = scalar_lea.vmem [#allocation2], %s700
      %v702 = vld [vmem:[%s701] sm:$0x3]
      %v703 = vpack.c.bf16 %v692, %v692
      %705 = vrot.lane.b32.xlu0 %v703, 80
      %v706 = vpop.permute.xlu0 %705
      %v708 = vsel %vm456, %v706, 0
      %710 = vmatprep.subr.bf16.mxu0 0
      %711 = vmatpush1.bf16.msra.mxu0 %v454
      %712 = vmatprep.subr.bf16.mxu0 0
      %713 = vmatpush1.bf16.msra.mxu0 0
      %714 = vmatprep.subr.bf16.mxu0 0
      %715 = vmatpush1.bf16.msra.mxu0 0
      %716 = vmatprep.subr.bf16.mxu0 0
      %717 = vmatpush1.bf16.msra.mxu0 0
      %718 = vmatprep.subr.bf16.mxu0 0
      %719 = vmatpush1.bf16.msra.mxu0 0
      %720 = vmatprep.subr.bf16.mxu0 0
      %721 = vmatpush1.bf16.msra.mxu0 0
      %722 = vmatprep.subr.bf16.mxu0 0
      %723 = vmatpush1.bf16.msra.mxu0 0
      %724 = vmatprep.subr.bf16.mxu0 0
      %725 = vmatpush1.bf16.msra.mxu0 0
      %726 = vmatprep.subr.bf16.mxu0 0
      %727 = vmatpush1.bf16.msra.mxu0 0
      %728 = vmatprep.subr.bf16.mxu0 0
      %729 = vmatpush1.bf16.msra.mxu0 0
      %730 = vmatprep.subr.bf16.mxu0 0
      %731 = vmatpush1.bf16.msra.mxu0 0
      %732 = vmatprep.subr.bf16.mxu0 0
      %733 = vmatpush1.bf16.msra.mxu0 0
      %734 = vmatprep.subr.bf16.mxu0 0
      %735 = vmatpush1.bf16.msra.mxu0 0
      %736 = vmatprep.subr.bf16.mxu0 0
      %737 = vmatpush1.bf16.msra.mxu0 0
      %738 = vmatprep.subr.bf16.mxu0 0
      %739 = vmatpush1.bf16.msra.mxu0 0
      %740 = vmatprep.subr.bf16.mxu0 0
      %741 = vmatpush1.bf16.msra.mxu0 0
      %742 = vmatprep.mubr.bf16.mxu0 0
      %743 = vmatmul.mubr.bf16.gmra.mrb[0].mxu0 %v708
      %v744 = vpop.f32.mrb[0].mxu0
      %v745 = vadd.f32 0.0, %v744
      %v746 = vpop.f32.mrb[0].mxu0
      %v747 = vpop.f32.mrb[0].mxu0
      %v748 = vpop.f32.mrb[0].mxu0
      %749 = vdwg.mxu0
      %v750 = vadd.f32 %v702, %v745
      %v751 = vsub.f32 0.0, %v750
      %v752 = vmul.f32 %v751, 1.442695
      %v753 = vpow.pop %v752
      %v754 = vadd.f32 %v753, 1.0
      %v755 = vrcp.pop %v754
      %v756 = vmul.f32 1.0, %v755
      %v757 = vtanh.pop %v750
      %v758 = vmul.f32 %v756, %v686
      %760 = vrot.lane.b32.xlu0 %v757, 96
      %v761 = vpop.permute.xlu0 %760
      %v763 = vmul.f32 %v756, %v761
      %765 = vrot.lane.b32.xlu0 %v763, 16
      %v766 = vpop.permute.xlu0 %765
      %v768 = vadd.f32 %v758, %v766
      %v769 = vtanh.pop %v768
      %771 = vrot.lane.b32.xlu0 %v769, 32
      %v772 = vpop.permute.xlu0 %771
      %v774 = vmul.f32 %v756, %v772
      %776 = vrot.lane.b32.xlu0 %v774, 80
      %v777 = vpop.permute.xlu0 %776
      %s779 = scalar_lea.vmem %s305, %s700
      %780 = vst.msk [vmem:[%s779] sm:$0x3] %vm531, %v777
      %s781 = ssub.s32 4, %s17
      %s782 = smul.u32 %s781, 2
      %s783 = scalar_lea.vmem [#allocation2], %s782
      %v784 = vld [vmem:[%s783] sm:$0x3]
      %v785 = vpack.c.bf16 %v774, %v774
      %787 = vrot.lane.b32.xlu0 %v785, 80
      %v788 = vpop.permute.xlu0 %787
      %v790 = vsel %vm456, %v788, 0
      %792 = vmatprep.subr.bf16.mxu0 0
      %793 = vmatpush1.bf16.msra.mxu0 %v454
      %794 = vmatprep.subr.bf16.mxu0 0
      %795 = vmatpush1.bf16.msra.mxu0 0
      %796 = vmatprep.subr.bf16.mxu0 0
      %797 = vmatpush1.bf16.msra.mxu0 0
      %798 = vmatprep.subr.bf16.mxu0 0
      %799 = vmatpush1.bf16.msra.mxu0 0
      %800 = vmatprep.subr.bf16.mxu0 0
      %801 = vmatpush1.bf16.msra.mxu0 0
      %802 = vmatprep.subr.bf16.mxu0 0
      %803 = vmatpush1.bf16.msra.mxu0 0
      %804 = vmatprep.subr.bf16.mxu0 0
      %805 = vmatpush1.bf16.msra.mxu0 0
      %806 = vmatprep.subr.bf16.mxu0 0
      %807 = vmatpush1.bf16.msra.mxu0 0
      %808 = vmatprep.subr.bf16.mxu0 0
      %809 = vmatpush1.bf16.msra.mxu0 0
      %810 = vmatprep.subr.bf16.mxu0 0
      %811 = vmatpush1.bf16.msra.mxu0 0
      %812 = vmatprep.subr.bf16.mxu0 0
      %813 = vmatpush1.bf16.msra.mxu0 0
      %814 = vmatprep.subr.bf16.mxu0 0
      %815 = vmatpush1.bf16.msra.mxu0 0
      %816 = vmatprep.subr.bf16.mxu0 0
      %817 = vmatpush1.bf16.msra.mxu0 0
      %818 = vmatprep.subr.bf16.mxu0 0
      %819 = vmatpush1.bf16.msra.mxu0 0
      %820 = vmatprep.subr.bf16.mxu0 0
      %821 = vmatpush1.bf16.msra.mxu0 0
      %822 = vmatprep.subr.bf16.mxu0 0
      %823 = vmatpush1.bf16.msra.mxu0 0
      %824 = vmatprep.mubr.bf16.mxu0 0
      %825 = vmatmul.mubr.bf16.gmra.mrb[0].mxu0 %v790
      %v826 = vpop.f32.mrb[0].mxu0
      %v827 = vadd.f32 0.0, %v826
      %v828 = vpop.f32.mrb[0].mxu0
      %v829 = vpop.f32.mrb[0].mxu0
      %v830 = vpop.f32.mrb[0].mxu0
      %831 = vdwg.mxu0
      %v832 = vadd.f32 %v784, %v827
      %v833 = vsub.f32 0.0, %v832
      %v834 = vmul.f32 %v833, 1.442695
      %v835 = vpow.pop %v834
      %v836 = vadd.f32 %v835, 1.0
      %v837 = vrcp.pop %v836
      %v838 = vmul.f32 1.0, %v837
      %v839 = vtanh.pop %v832
      %v840 = vmul.f32 %v838, %v768
      %842 = vrot.lane.b32.xlu0 %v839, 96
      %v843 = vpop.permute.xlu0 %842
      %v845 = vmul.f32 %v838, %v843
      %847 = vrot.lane.b32.xlu0 %v845, 16
      %v848 = vpop.permute.xlu0 %847
      %v850 = vadd.f32 %v840, %v848
      %v851 = vtanh.pop %v850
      %853 = vrot.lane.b32.xlu0 %v851, 32
      %v854 = vpop.permute.xlu0 %853
      %v856 = vmul.f32 %v838, %v854
      %858 = vrot.lane.b32.xlu0 %v856, 80
      %v859 = vpop.permute.xlu0 %858
      %s861 = scalar_lea.vmem %s305, %s782
      %862 = vst.msk [vmem:[%s861] sm:$0x3] %vm531, %v859
      %s863 = smul.u32 %s17, 4294967293
      %s864 = sadd.s32 %s863, 5
      %s865 = smul.u32 %s864, 2
      %s866 = scalar_lea.vmem [#allocation2], %s865
      %v867 = vld [vmem:[%s866] sm:$0x3]
      %v868 = vpack.c.bf16 %v856, %v856
      %870 = vrot.lane.b32.xlu0 %v868, 80
      %v871 = vpop.permute.xlu0 %870
      %v873 = vsel %vm456, %v871, 0
      %875 = vmatprep.subr.bf16.mxu0 0
      %876 = vmatpush1.bf16.msra.mxu0 %v454
      %877 = vmatprep.subr.bf16.mxu0 0
      %878 = vmatpush1.bf16.msra.mxu0 0
      %879 = vmatprep.subr.bf16.mxu0 0
      %880 = vmatpush1.bf16.msra.mxu0 0
      %881 = vmatprep.subr.bf16.mxu0 0
      %882 = vmatpush1.bf16.msra.mxu0 0
      %883 = vmatprep.subr.bf16.mxu0 0
      %884 = vmatpush1.bf16.msra.mxu0 0
      %885 = vmatprep.subr.bf16.mxu0 0
      %886 = vmatpush1.bf16.msra.mxu0 0
      %887 = vmatprep.subr.bf16.mxu0 0
      %888 = vmatpush1.bf16.msra.mxu0 0
      %889 = vmatprep.subr.bf16.mxu0 0
      %890 = vmatpush1.bf16.msra.mxu0 0
      %891 = vmatprep.subr.bf16.mxu0 0
      %892 = vmatpush1.bf16.msra.mxu0 0
      %893 = vmatprep.subr.bf16.mxu0 0
      %894 = vmatpush1.bf16.msra.mxu0 0
      %895 = vmatprep.subr.bf16.mxu0 0
      %896 = vmatpush1.bf16.msra.mxu0 0
      %897 = vmatprep.subr.bf16.mxu0 0
      %898 = vmatpush1.bf16.msra.mxu0 0
      %899 = vmatprep.subr.bf16.mxu0 0
      %900 = vmatpush1.bf16.msra.mxu0 0
      %901 = vmatprep.subr.bf16.mxu0 0
      %902 = vmatpush1.bf16.msra.mxu0 0
      %903 = vmatprep.subr.bf16.mxu0 0
      %904 = vmatpush1.bf16.msra.mxu0 0
      %905 = vmatprep.subr.bf16.mxu0 0
      %906 = vmatpush1.bf16.msra.mxu0 0
      %907 = vmatprep.mubr.bf16.mxu0 0
      %908 = vmatmul.mubr.bf16.gmra.mrb[0].mxu0 %v873
      %v909 = vpop.f32.mrb[0].mxu0
      %v910 = vadd.f32 0.0, %v909
      %v911 = vpop.f32.mrb[0].mxu0
      %v912 = vpop.f32.mrb[0].mxu0
      %v913 = vpop.f32.mrb[0].mxu0
      %914 = vdwg.mxu0
      %v915 = vadd.f32 %v867, %v910
      %v916 = vsub.f32 0.0, %v915
      %v917 = vmul.f32 %v916, 1.442695
      %v918 = vpow.pop %v917
      %v919 = vadd.f32 %v918, 1.0
      %v920 = vrcp.pop %v919
      %v921 = vmul.f32 1.0, %v920
      %v922 = vtanh.pop %v915
      %v923 = vmul.f32 %v921, %v850
      %925 = vrot.lane.b32.xlu0 %v922, 96
      %v926 = vpop.permute.xlu0 %925
      %v928 = vmul.f32 %v921, %v926
      %930 = vrot.lane.b32.xlu0 %v928, 16
      %v931 = vpop.permute.xlu0 %930
      %v933 = vadd.f32 %v923, %v931
      %v934 = vtanh.pop %v933
      %936 = vrot.lane.b32.xlu0 %v934, 32
      %v937 = vpop.permute.xlu0 %936
      %v939 = vmul.f32 %v921, %v937
      %941 = vrot.lane.b32.xlu0 %v939, 80
      %v942 = vpop.permute.xlu0 %941
      %s944 = scalar_lea.vmem %s305, %s865
      %945 = vst.msk [vmem:[%s944] sm:$0x3] %vm531, %v942
      %s946 = smul.u32 %s17, 4294967291
      %s947 = sadd.s32 %s946, 6
      %s948 = smul.u32 %s947, 2
      %s949 = scalar_lea.vmem [#allocation2], %s948
      %v950 = vld [vmem:[%s949] sm:$0x3]
      %v951 = vpack.c.bf16 %v939, %v939
      %953 = vrot.lane.b32.xlu0 %v951, 80
      %v954 = vpop.permute.xlu0 %953
      %v956 = vsel %vm456, %v954, 0
      %958 = vmatprep.subr.bf16.mxu0 0
      %959 = vmatpush1.bf16.msra.mxu0 %v454
      %960 = vmatprep.subr.bf16.mxu0 0
      %961 = vmatpush1.bf16.msra.mxu0 0
      %962 = vmatprep.subr.bf16.mxu0 0
      %963 = vmatpush1.bf16.msra.mxu0 0
      %964 = vmatprep.subr.bf16.mxu0 0
      %965 = vmatpush1.bf16.msra.mxu0 0
      %966 = vmatprep.subr.bf16.mxu0 0
      %967 = vmatpush1.bf16.msra.mxu0 0
      %968 = vmatprep.subr.bf16.mxu0 0
      %969 = vmatpush1.bf16.msra.mxu0 0
      %970 = vmatprep.subr.bf16.mxu0 0
      %971 = vmatpush1.bf16.msra.mxu0 0
      %972 = vmatprep.subr.bf16.mxu0 0
      %973 = vmatpush1.bf16.msra.mxu0 0
      %974 = vmatprep.subr.bf16.mxu0 0
      %975 = vmatpush1.bf16.msra.mxu0 0
      %976 = vmatprep.subr.bf16.mxu0 0
      %977 = vmatpush1.bf16.msra.mxu0 0
      %978 = vmatprep.subr.bf16.mxu0 0
      %979 = vmatpush1.bf16.msra.mxu0 0
      %980 = vmatprep.subr.bf16.mxu0 0
      %981 = vmatpush1.bf16.msra.mxu0 0
      %982 = vmatprep.subr.bf16.mxu0 0
      %983 = vmatpush1.bf16.msra.mxu0 0
      %984 = vmatprep.subr.bf16.mxu0 0
      %985 = vmatpush1.bf16.msra.mxu0 0
      %986 = vmatprep.subr.bf16.mxu0 0
      %987 = vmatpush1.bf16.msra.mxu0 0
      %988 = vmatprep.subr.bf16.mxu0 0
      %989 = vmatpush1.bf16.msra.mxu0 0
      %990 = vmatprep.mubr.bf16.mxu0 0
      %991 = vmatmul.mubr.bf16.gmra.mrb[0].mxu0 %v956
      %v992 = vpop.f32.mrb[0].mxu0
      %v993 = vadd.f32 0.0, %v992
      %v994 = vpop.f32.mrb[0].mxu0
      %v995 = vpop.f32.mrb[0].mxu0
      %v996 = vpop.f32.mrb[0].mxu0
      %997 = vdwg.mxu0
      %v998 = vadd.f32 %v950, %v993
      %v999 = vsub.f32 0.0, %v998
      %v1000 = vmul.f32 %v999, 1.442695
      %v1001 = vpow.pop %v1000
      %v1002 = vadd.f32 %v1001, 1.0
      %v1003 = vrcp.pop %v1002
      %v1004 = vmul.f32 1.0, %v1003
      %v1005 = vtanh.pop %v998
      %v1006 = vmul.f32 %v1004, %v933
      %1008 = vrot.lane.b32.xlu0 %v1005, 96
      %v1009 = vpop.permute.xlu0 %1008
      %v1011 = vmul.f32 %v1004, %v1009
      %1013 = vrot.lane.b32.xlu0 %v1011, 16
      %v1014 = vpop.permute.xlu0 %1013
      %v1016 = vadd.f32 %v1006, %v1014
      %v1017 = vtanh.pop %v1016
      %1019 = vrot.lane.b32.xlu0 %v1017, 32
      %v1020 = vpop.permute.xlu0 %1019
      %v1022 = vmul.f32 %v1004, %v1020
      %1024 = vrot.lane.b32.xlu0 %v1022, 80
      %v1025 = vpop.permute.xlu0 %1024
      %s1027 = scalar_lea.vmem %s305, %s948
      %1028 = vst.msk [vmem:[%s1027] sm:$0x3] %vm531, %v1025
      %s1029 = smul.u32 %s17, 4294967289
      %s1030 = sadd.s32 %s1029, 7
      %s1031 = smul.u32 %s1030, 2
      %s1032 = scalar_lea.vmem [#allocation2], %s1031
      %v1033 = vld [vmem:[%s1032] sm:$0x3]
      %v1034 = vpack.c.bf16 %v1022, %v1022
      %1036 = vrot.lane.b32.xlu0 %v1034, 80
      %v1037 = vpop.permute.xlu0 %1036
      %v1039 = vsel %vm456, %v1037, 0
      %1041 = vmatprep.subr.bf16.mxu0 0
      %1042 = vmatpush1.bf16.msra.mxu0 %v454
      %1043 = vmatprep.subr.bf16.mxu0 0
      %1044 = vmatpush1.bf16.msra.mxu0 0
      %1045 = vmatprep.subr.bf16.mxu0 0
      %1046 = vmatpush1.bf16.msra.mxu0 0
      %1047 = vmatprep.subr.bf16.mxu0 0
      %1048 = vmatpush1.bf16.msra.mxu0 0
      %1049 = vmatprep.subr.bf16.mxu0 0
      %1050 = vmatpush1.bf16.msra.mxu0 0
      %1051 = vmatprep.subr.bf16.mxu0 0
      %1052 = vmatpush1.bf16.msra.mxu0 0
      %1053 = vmatprep.subr.bf16.mxu0 0
      %1054 = vmatpush1.bf16.msra.mxu0 0
      %1055 = vmatprep.subr.bf16.mxu0 0
      %1056 = vmatpush1.bf16.msra.mxu0 0
      %1057 = vmatprep.subr.bf16.mxu0 0
      %1058 = vmatpush1.bf16.msra.mxu0 0
      %1059 = vmatprep.subr.bf16.mxu0 0
      %1060 = vmatpush1.bf16.msra.mxu0 0
      %1061 = vmatprep.subr.bf16.mxu0 0
      %1062 = vmatpush1.bf16.msra.mxu0 0
      %1063 = vmatprep.subr.bf16.mxu0 0
      %1064 = vmatpush1.bf16.msra.mxu0 0
      %1065 = vmatprep.subr.bf16.mxu0 0
      %1066 = vmatpush1.bf16.msra.mxu0 0
      %1067 = vmatprep.subr.bf16.mxu0 0
      %1068 = vmatpush1.bf16.msra.mxu0 0
      %1069 = vmatprep.subr.bf16.mxu0 0
      %1070 = vmatpush1.bf16.msra.mxu0 0
      %1071 = vmatprep.subr.bf16.mxu0 0
      %1072 = vmatpush1.bf16.msra.mxu0 0
      %1073 = vmatprep.mubr.bf16.mxu0 0
      %1074 = vmatmul.mubr.bf16.gmra.mrb[0].mxu0 %v1039
      %v1075 = vpop.f32.mrb[0].mxu0
      %v1076 = vadd.f32 0.0, %v1075
      %v1077 = vpop.f32.mrb[0].mxu0
      %v1078 = vpop.f32.mrb[0].mxu0
      %v1079 = vpop.f32.mrb[0].mxu0
      %1080 = vdwg.mxu0
      %v1081 = vadd.f32 %v1033, %v1076
      %v1082 = vsub.f32 0.0, %v1081
      %v1083 = vmul.f32 %v1082, 1.442695
      %v1084 = vpow.pop %v1083
      %v1085 = vadd.f32 %v1084, 1.0
      %v1086 = vrcp.pop %v1085
      %v1087 = vmul.f32 1.0, %v1086
      %v1088 = vtanh.pop %v1081
      %v1089 = vmul.f32 %v1087, %v1016
      %1091 = vrot.lane.b32.xlu0 %v1088, 96
      %v1092 = vpop.permute.xlu0 %1091
      %v1094 = vmul.f32 %v1087, %v1092
      %1096 = vrot.lane.b32.xlu0 %v1094, 16
      %v1097 = vpop.permute.xlu0 %1096
      %v1099 = vadd.f32 %v1089, %v1097
      %v1100 = vtanh.pop %v1099
      %1102 = vrot.lane.b32.xlu0 %v1100, 32
      %v1103 = vpop.permute.xlu0 %1102
      %v1105 = vmul.f32 %v1087, %v1103
      %1107 = vrot.lane.b32.xlu0 %v1105, 80
      %v1108 = vpop.permute.xlu0 %1107
      %s1110 = scalar_lea.vmem %s305, %s1031
      %1111 = vst.msk [vmem:[%s1110] sm:$0x3] %vm531, %v1108
      %p1112 = scmp.lt.s32.totalorder %s17, 1
      %s1113 = scalar_select %p1112, %s17, 1
      %s1114 = smul.addr %s1113, 8
      %s1115 = smul.addr %s1114, 2
      %s1116 = scalar_lea.vmem %s6, %s1115
      // Predicated region
      $region45: #{cnn_lstm_forward.5} parent=43 // pred_check
        %p1117 = pneg %p181
      $region46: #{cnn_lstm_forward.5} parent=43 // pred_check_branch
        %1119 = sbr.rel (%p1117) target = $region48
      $region47: #{cnn_lstm_forward.5} parent=43 // pred_region
        _
      $region48: #{cnn_lstm_forward.5} parent=43 // pred_fallthru
        _
    $region44: #{cnn_lstm_forward.5} parent=5 // pred_fallthru
      _
    %p1120 = scmp.le.s32.totalorder 2, %s12
    // Predicated region
    $region49: #{cnn_lstm_forward.5} parent=5 // pred_check
      %p1121 = pneg %p1120
    $region50: #{cnn_lstm_forward.5} parent=5 // pred_check_branch
      %1123 = sbr.rel (%p1121) target = $region52
    $region51: #{cnn_lstm_forward.5} parent=5 // pred_region
      %s1124 = ssub.s32 %s12, 2
      // Predicated region
      $region53: #{cnn_lstm_forward.5} parent=51 // pred_check
        %p1125 = pneg %p187
      $region54: #{cnn_lstm_forward.5} parent=51 // pred_check_branch
        %1127 = sbr.rel (%p1125) target = $region56
      $region55: #{cnn_lstm_forward.5} parent=51 // pred_region
        %p1128 = scmp.lt.s32.totalorder %s18, 1
        %s1129 = scalar_select %p1128, %s18, 1
        %s1130 = smul.addr %s1129, 8
        %s1131 = smul.addr %s1130, 2
        %s1132 = scalar_lea.vmem %s6, %s1131
      $region56: #{cnn_lstm_forward.5} parent=51 // pred_fallthru
        _
    $region52: #{cnn_lstm_forward.5} parent=5 // pred_fallthru
      _
  $region6: #{cnn_lstm_forward.5} parent=0 // loop_footer
    %s16 = sadd.s32 1, %s12
  $region7: #{cnn_lstm_forward.5} parent=0 // loop_footer_branch
    %11 = sbr.rel target = $region3
  $region8: #{cnn_lstm_forward.5} parent=0 // loop_exit
    _

// kernel: cnn_lstm_forward.6
$region0: #{cnn_lstm_forward.6}
  #allocation0 [shape = 'u32[]', space=smem, size = 0x4, offset = 0x4, fixed_abs, tag = 'smem constant byte address 0x4 - core index']
  #allocation1 [shape = 'u32[144,128]{1,0:T(1,128)}', space=vmem, size = 0x12000, scoped, tag = 'internal scratch']
  #allocation2 [shape = 'f32[16,64]{1,0:T(8,128)}', space=vmem, size = 0x2000, scoped, tag = 'scratch operand']
  %s0 = inlined_call_operand.vmem [shape: f32[16,16], index: 0, kind: input, shape index: {}]
  %s1 = inlined_call_operand.vmem [shape: f32[16,16], index: 1, kind: input, shape index: {}]
  %s2 = inlined_call_operand.vmem [shape: bf16[2,16,64], index: 2, kind: input, shape index: {}]
  %s3 = inlined_call_operand.vmem [shape: bf16[2,16,64], index: 3, kind: input, shape index: {}]
  %s4 = inlined_call_operand.vmem [shape: bf16[2,16,64], index: 4, kind: input, shape index: {}]
  %s5 = inlined_call_operand.vmem [shape: f32[2,1,64], index: 5, kind: input, shape index: {}]
  %s6 = inlined_call_operand.vmem [shape: f32[2,8,2,16], index: 6, kind: output, shape index: {}]
  %s7 = sld [smem:[#allocation0]]
  $region57: #{cnn_lstm_forward.6} parent=0
    _
  %s9 = ssub.s32 1, %s7
  %s10 = scalar_select 0, %s9, %s7
  loop: start=0, step=1, limit=4
  $region2: #{cnn_lstm_forward.6} parent=0 // loop_pre_header
    _
  $region3: #{cnn_lstm_forward.6} parent=0 // loop_header
    %s12 = sphi 0, %s16
    %p13 = scmp.ge.s32.totalorder %s12, 4
    %s20 = sphi 0, %s20
    %s22 = sphi 0, %s20
    %s23 = sphi 0, %s22
    %s37 = sphi 0, %s23
    %s41 = sphi 0, %s41
    %s43 = sphi 0, %s41
    %s44 = sphi 0, %s43
    %s58 = sphi 0, %s44
    %s64 = sphi 0, %s66
    %s67 = sphi 0, %s64
    %s68 = sphi 0, %s67
    %s84 = sphi 0, %s68
    %s90 = sphi 0, %s92
    %s93 = sphi 0, %s90
    %s94 = sphi 0, %s93
    %s110 = sphi 0, %s94
    %s116 = sphi 0, %s118
    %s119 = sphi 0, %s116
    %s120 = sphi 0, %s119
    %s136 = sphi 0, %s120
    %s142 = sphi 0, %s144
    %s145 = sphi 0, %s142
    %s146 = sphi 0, %s145
    %s162 = sphi 0, %s146
    %s168 = sphi 0, %s170
    %s171 = sphi 0, %s168
    %s172 = sphi 0, %s171
    %s188 = sphi 0, %s172
  $region4: #{cnn_lstm_forward.6} parent=0 // loop_header_branch
    %15 = sbr.rel (%p13) target = $region8
  $region5: #{cnn_lstm_forward.6} parent=0 // loop_body
    %s17 = ssub.s32 %s12, 1
    %s18 = ssub.s32 %s12, 2
    %s19 = sadd.s32 %s12, 1
    %s21 = sadd.s32 %s20, 1
    %p24 = scmp.eq.s32.totalorder %s12, 1
    %p25 = scmp.ne.s32.totalorder %s20, %s22
    %p26 = scmp.eq.s32.totalorder %s12, 0
    %p27 = por %p25, %p26
    %p28 = scmp.ne.s32.totalorder %s20, %s22
    %p29 = scmp.eq.s32.totalorder %s17, 1
    %p30 = por %p28, %p29
    %p31 = scmp.ne.s32.totalorder %s22, %s23
    %p32 = scmp.eq.s32.totalorder %s17, 0
    %p33 = por %p31, %p32
    %p34 = scmp.ne.s32.totalorder %s22, %s23
    %p35 = scmp.eq.s32.totalorder %s18, 1
    %p36 = por %p34, %p35
    %p38 = scmp.ne.s32.totalorder %s23, %s37
    %p39 = scmp.eq.s32.totalorder %s18, 0
    %p40 = por %p38, %p39
    %s42 = sadd.s32 %s41, 1
    %p45 = scmp.eq.s32.totalorder %s12, 1
    %p46 = scmp.ne.s32.totalorder %s41, %s43
    %p47 = scmp.eq.s32.totalorder %s12, 0
    %p48 = por %p46, %p47
    %p49 = scmp.ne.s32.totalorder %s41, %s43
    %p50 = scmp.eq.s32.totalorder %s17, 1
    %p51 = por %p49, %p50
    %p52 = scmp.ne.s32.totalorder %s43, %s44
    %p53 = scmp.eq.s32.totalorder %s17, 0
    %p54 = por %p52, %p53
    %p55 = scmp.ne.s32.totalorder %s43, %s44
    %p56 = scmp.eq.s32.totalorder %s18, 1
    %p57 = por %p55, %p56
    %p59 = scmp.ne.s32.totalorder %s44, %s58
    %p60 = scmp.eq.s32.totalorder %s18, 0
    %p61 = por %p59, %p60
    %s62 = ssub.s32 %s12, %s19
    %p63 = scmp.eq.s32.totalorder %s62, 0
    %s65 = sadd.s32 %s64, 1
    %s66 = scalar_select %p63, %s64, %s65
    %p69 = pneg %p63
    %p70 = scmp.eq.s32.totalorder %s12, 1
    %p71 = por %p69, %p70
    %p72 = scmp.ne.s32.totalorder %s64, %s67
    %p73 = scmp.eq.s32.totalorder %s12, 0
    %p74 = por %p72, %p73
    %p75 = scmp.ne.s32.totalorder %s64, %s67
    %p76 = scmp.eq.s32.totalorder %s17, 1
    %p77 = por %p75, %p76
    %p78 = scmp.ne.s32.totalorder %s67, %s68
    %p79 = scmp.eq.s32.totalorder %s17, 0
    %p80 = por %p78, %p79
    %p81 = scmp.ne.s32.totalorder %s67, %s68
    %p82 = scmp.eq.s32.totalorder %s18, 1
    %p83 = por %p81, %p82
    %p85 = scmp.ne.s32.totalorder %s68, %s84
    %p86 = scmp.eq.s32.totalorder %s18, 0
    %p87 = por %p85, %p86
    %s88 = ssub.s32 %s12, %s19
    %p89 = scmp.eq.s32.totalorder %s88, 0
    %s91 = sadd.s32 %s90, 1
    %s92 = scalar_select %p89, %s90, %s91
    %p95 = pneg %p89
    %p96 = scmp.eq.s32.totalorder %s12, 1
    %p97 = por %p95, %p96
    %p98 = scmp.ne.s32.totalorder %s90, %s93
    %p99 = scmp.eq.s32.totalorder %s12, 0
    %p100 = por %p98, %p99
    %p101 = scmp.ne.s32.totalorder %s90, %s93
    %p102 = scmp.eq.s32.totalorder %s17, 1
    %p103 = por %p101, %p102
    %p104 = scmp.ne.s32.totalorder %s93, %s94
    %p105 = scmp.eq.s32.totalorder %s17, 0
    %p106 = por %p104, %p105
    %p107 = scmp.ne.s32.totalorder %s93, %s94
    %p108 = scmp.eq.s32.totalorder %s18, 1
    %p109 = por %p107, %p108
    %p111 = scmp.ne.s32.totalorder %s94, %s110
    %p112 = scmp.eq.s32.totalorder %s18, 0
    %p113 = por %p111, %p112
    %s114 = ssub.s32 %s12, %s19
    %p115 = scmp.eq.s32.totalorder %s114, 0
    %s117 = sadd.s32 %s116, 1
    %s118 = scalar_select %p115, %s116, %s117
    %p121 = pneg %p115
    %p122 = scmp.eq.s32.totalorder %s12, 1
    %p123 = por %p121, %p122
    %p124 = scmp.ne.s32.totalorder %s116, %s119
    %p125 = scmp.eq.s32.totalorder %s12, 0
    %p126 = por %p124, %p125
    %p127 = scmp.ne.s32.totalorder %s116, %s119
    %p128 = scmp.eq.s32.totalorder %s17, 1
    %p129 = por %p127, %p128
    %p130 = scmp.ne.s32.totalorder %s119, %s120
    %p131 = scmp.eq.s32.totalorder %s17, 0
    %p132 = por %p130, %p131
    %p133 = scmp.ne.s32.totalorder %s119, %s120
    %p134 = scmp.eq.s32.totalorder %s18, 1
    %p135 = por %p133, %p134
    %p137 = scmp.ne.s32.totalorder %s120, %s136
    %p138 = scmp.eq.s32.totalorder %s18, 0
    %p139 = por %p137, %p138
    %s140 = ssub.s32 %s12, %s19
    %p141 = scmp.eq.s32.totalorder %s140, 0
    %s143 = sadd.s32 %s142, 1
    %s144 = scalar_select %p141, %s142, %s143
    %p147 = pneg %p141
    %p148 = scmp.eq.s32.totalorder %s12, 1
    %p149 = por %p147, %p148
    %p150 = scmp.ne.s32.totalorder %s142, %s145
    %p151 = scmp.eq.s32.totalorder %s12, 0
    %p152 = por %p150, %p151
    %p153 = scmp.ne.s32.totalorder %s142, %s145
    %p154 = scmp.eq.s32.totalorder %s17, 1
    %p155 = por %p153, %p154
    %p156 = scmp.ne.s32.totalorder %s145, %s146
    %p157 = scmp.eq.s32.totalorder %s17, 0
    %p158 = por %p156, %p157
    %p159 = scmp.ne.s32.totalorder %s145, %s146
    %p160 = scmp.eq.s32.totalorder %s18, 1
    %p161 = por %p159, %p160
    %p163 = scmp.ne.s32.totalorder %s146, %s162
    %p164 = scmp.eq.s32.totalorder %s18, 0
    %p165 = por %p163, %p164
    %s166 = ssub.s32 %s12, %s19
    %p167 = scmp.eq.s32.totalorder %s166, 0
    %s169 = sadd.s32 %s168, 1
    %s170 = scalar_select %p167, %s168, %s169
    %p173 = pneg %p167
    %p174 = scmp.eq.s32.totalorder %s12, 1
    %p175 = por %p173, %p174
    %p176 = scmp.ne.s32.totalorder %s168, %s171
    %p177 = scmp.eq.s32.totalorder %s12, 0
    %p178 = por %p176, %p177
    %p179 = scmp.ne.s32.totalorder %s168, %s171
    %p180 = scmp.eq.s32.totalorder %s17, 1
    %p181 = por %p179, %p180
    %p182 = scmp.ne.s32.totalorder %s171, %s172
    %p183 = scmp.eq.s32.totalorder %s17, 0
    %p184 = por %p182, %p183
    %p185 = scmp.ne.s32.totalorder %s171, %s172
    %p186 = scmp.eq.s32.totalorder %s18, 1
    %p187 = por %p185, %p186
    %p189 = scmp.ne.s32.totalorder %s172, %s188
    %p190 = scmp.eq.s32.totalorder %s18, 0
    %p191 = por %p189, %p190
    %p192 = scmp.le.s32.totalorder 1, %s12
    %p193 = scmp.lt.s32.totalorder %s12, 3
    %p194 = pnand %p192, %p193
    %p195 = pneg %p194
    // Predicated region
    $region9: #{cnn_lstm_forward.6} parent=5 // pred_check
      _
    $region10: #{cnn_lstm_forward.6} parent=5 // pred_check_branch
      %197 = sbr.rel (%p194) target = $region12
    $region11: #{cnn_lstm_forward.6} parent=5 // pred_region
      %s198 = ssub.s32 %s12, 1
      // Predicated region
      $region13: #{cnn_lstm_forward.6} parent=11 // pred_check
        %p199 = pneg %p33
      $region14: #{cnn_lstm_forward.6} parent=11 // pred_check_branch
        %201 = sbr.rel (%p199) target = $region16
      $region15: #{cnn_lstm_forward.6} parent=11 // pred_region
        _
      $region16: #{cnn_lstm_forward.6} parent=11 // pred_fallthru
        _
      // Predicated region
      $region17: #{cnn_lstm_forward.6} parent=11 // pred_check
        %p202 = pneg %p54
      $region18: #{cnn_lstm_forward.6} parent=11 // pred_check_branch
        %204 = sbr.rel (%p202) target = $region20
      $region19: #{cnn_lstm_forward.6} parent=11 // pred_region
        _
      $region20: #{cnn_lstm_forward.6} parent=11 // pred_fallthru
        _
    $region12: #{cnn_lstm_forward.6} parent=5 // pred_fallthru
      _
    %p205 = scmp.lt.s32.totalorder %s12, 2
    // Predicated region
    $region21: #{cnn_lstm_forward.6} parent=5 // pred_check
      %p206 = pneg %p205
    $region22: #{cnn_lstm_forward.6} parent=5 // pred_check_branch
      %208 = sbr.rel (%p206) target = $region24
    $region23: #{cnn_lstm_forward.6} parent=5 // pred_region
      // Predicated region
      $region25: #{cnn_lstm_forward.6} parent=23 // pred_check
        %p209 = pneg %p74
      $region26: #{cnn_lstm_forward.6} parent=23 // pred_check_branch
        %211 = sbr.rel (%p209) target = $region28
      $region27: #{cnn_lstm_forward.6} parent=23 // pred_region
        %p212 = scmp.lt.s32.totalorder %s12, 1
        %s213 = scalar_select %p212, %s12, 1
        %s214 = smul.addr %s213, 2
        %s215 = smul.addr %s214, 4
        %s216 = scalar_lea.vmem %s2, %s215
      $region28: #{cnn_lstm_forward.6} parent=23 // pred_fallthru
        _
      // Predicated region
      $region29: #{cnn_lstm_forward.6} parent=23 // pred_check
        %p217 = pneg %p100
      $region30: #{cnn_lstm_forward.6} parent=23 // pred_check_branch
        %219 = sbr.rel (%p217) target = $region32
      $region31: #{cnn_lstm_forward.6} parent=23 // pred_region
        %p220 = scmp.lt.s32.totalorder %s12, 1
        %s221 = scalar_select %p220, %s12, 1
        %s222 = smul.addr %s221, 2
        %s223 = smul.addr %s222, 4
        %s224 = scalar_lea.vmem %s3, %s223
      $region32: #{cnn_lstm_forward.6} parent=23 // pred_fallthru
        _
      // Predicated region
      $region33: #{cnn_lstm_forward.6} parent=23 // pred_check
        %p225 = pneg %p126
      $region34: #{cnn_lstm_forward.6} parent=23 // pred_check_branch
        %227 = sbr.rel (%p225) target = $region36
      $region35: #{cnn_lstm_forward.6} parent=23 // pred_region
        %p228 = scmp.lt.s32.totalorder %s12, 1
        %s229 = scalar_select %p228, %s12, 1
        %s230 = smul.addr %s229, 2
        %s231 = smul.addr %s230, 4
        %s232 = scalar_lea.vmem %s4, %s231
      $region36: #{cnn_lstm_forward.6} parent=23 // pred_fallthru
        _
      // Predicated region
      $region37: #{cnn_lstm_forward.6} parent=23 // pred_check
        %p233 = pneg %p152
      $region38: #{cnn_lstm_forward.6} parent=23 // pred_check_branch
        %235 = sbr.rel (%p233) target = $region40
      $region39: #{cnn_lstm_forward.6} parent=23 // pred_region
        %p236 = scmp.lt.s32.totalorder %s12, 1
        %s237 = scalar_select %p236, %s12, 1
        %s238 = scalar_lea.vmem %s5, %s237
      $region40: #{cnn_lstm_forward.6} parent=23 // pred_fallthru
        _
    $region24: #{cnn_lstm_forward.6} parent=5 // pred_fallthru
      _
    %p239 = scmp.le.s32.totalorder 1, %s12
    %p240 = scmp.lt.s32.totalorder %s12, 3
    %p241 = pnand %p239, %p240
    %p242 = pneg %p241
    // Predicated region
    $region41: #{cnn_lstm_forward.6} parent=5 // pred_check
      _
    $region42: #{cnn_lstm_forward.6} parent=5 // pred_check_branch
      %244 = sbr.rel (%p241) target = $region44
    $region43: #{cnn_lstm_forward.6} parent=5 // pred_region
      %s245 = ssub.s32 %s12, 1
      %p246 = pneg %p33
      %p247 = pneg %p30
      %p248 = pneg %p54
      %p249 = pneg %p51
      %p250 = scmp.lt.s32.totalorder %s17, 1
      %s251 = scalar_select %p250, %s17, 1
      %s252 = smul.addr %s251, 2
      %s253 = smul.addr %s252, 4
      %s254 = scalar_lea.vmem %s2, %s253
      %p255 = pneg %p80
      %p256 = pneg %p77
      %p257 = scmp.lt.s32.totalorder %s17, 1
      %s258 = scalar_select %p257, %s17, 1
      %s259 = smul.addr %s258, 2
      %s260 = smul.addr %s259, 4
      %s261 = scalar_lea.vmem %s3, %s260
      %p262 = pneg %p106
      %p263 = pneg %p103
      %p264 = scmp.lt.s32.totalorder %s17, 1
      %s265 = scalar_select %p264, %s17, 1
      %s266 = smul.addr %s265, 2
      %s267 = smul.addr %s266, 4
      %s268 = scalar_lea.vmem %s4, %s267
      %p269 = pneg %p132
      %p270 = pneg %p129
      %p271 = scmp.lt.s32.totalorder %s17, 1
      %s272 = scalar_select %p271, %s17, 1
      %s273 = scalar_lea.vmem %s5, %s272
      %p274 = pneg %p158
      %p275 = pneg %p155
      %p276 = pneg %p184
      %p277 = pneg %p181
      %p278 = scmp.lt.s32.totalorder %s17, 1
      %s279 = scalar_select %p278, %s17, 1
      %s280 = smul.addr %s279, 8
      %s281 = smul.addr %s280, 2
      %s282 = scalar_lea.vmem %s6, %s281
      %p283 = scmp.lt.s32.totalorder %s17, 1
      %s284 = scalar_select %p283, %s17, 1
      %s285 = smul.addr %s284, 2
      %s286 = smul.addr %s285, 4
      %s287 = scalar_lea.vmem %s2, %s286
      %p288 = scmp.lt.s32.totalorder %s17, 1
      %s289 = scalar_select %p288, %s17, 1
      %s290 = smul.addr %s289, 2
      %s291 = smul.addr %s290, 4
      %s292 = scalar_lea.vmem %s3, %s291
      %p293 = scmp.lt.s32.totalorder %s17, 1
      %s294 = scalar_select %p293, %s17, 1
      %s295 = smul.addr %s294, 2
      %s296 = smul.addr %s295, 4
      %s297 = scalar_lea.vmem %s4, %s296
      %p298 = scmp.lt.s32.totalorder %s17, 1
      %s299 = scalar_select %p298, %s17, 1
      %s300 = scalar_lea.vmem %s5, %s299
      %p301 = scmp.lt.s32.totalorder %s17, 1
      %s302 = scalar_select %p301, %s17, 1
      %s303 = smul.addr %s302, 8
      %s304 = smul.addr %s303, 2
      %s305 = scalar_lea.vmem %s6, %s304
      %v307 = vld [vmem:[%s297] sm:$0xf]
      %v308 = vld [vmem:[%s297 + $0x4] sm:$0xf]
      %v309 = vld [vmem:[%s300] sm:$0x1]
      %v310 = vld [vmem:[%s0] sm:$0xff]
      %v311 = vld [vmem:[%s0 + $0x8] sm:$0xff]
      %v312 = vpack.c.bf16 %v311, %v310
      %v313 = vld [vmem:[%s287] sm:$0xf]
      %v314 = vld [vmem:[%s287 + $0x4] sm:$0xf]
      %v317 = vunpack.c.l.b16 %v313
      %v318 = vunpack.c.l.b16 %v314
      %v319 = vpack.c.b16 %v318, %v317
      %vm321 = vcmask 130048
      %v323 = vsel %vm321, %v312, 0
      %325 = vmatprep.subr.bf16.mxu0 0
      %326 = vmatpush1.bf16.msra.mxu0 %v319
      %327 = vmatprep.subr.bf16.mxu0 0
      %328 = vmatpush1.bf16.msra.mxu0 0
      %329 = vmatprep.subr.bf16.mxu0 0
      %330 = vmatpush1.bf16.msra.mxu0 0
      %331 = vmatprep.subr.bf16.mxu0 0
      %332 = vmatpush1.bf16.msra.mxu0 0
      %333 = vmatprep.subr.bf16.mxu0 0
      %334 = vmatpush1.bf16.msra.mxu0 0
      %335 = vmatprep.subr.bf16.mxu0 0
      %336 = vmatpush1.bf16.msra.mxu0 0
      %337 = vmatprep.subr.bf16.mxu0 0
      %338 = vmatpush1.bf16.msra.mxu0 0
      %339 = vmatprep.subr.bf16.mxu0 0
      %340 = vmatpush1.bf16.msra.mxu0 0
      %341 = vmatprep.subr.bf16.mxu0 0
      %342 = vmatpush1.bf16.msra.mxu0 0
      %343 = vmatprep.subr.bf16.mxu0 0
      %344 = vmatpush1.bf16.msra.mxu0 0
      %345 = vmatprep.subr.bf16.mxu0 0
      %346 = vmatpush1.bf16.msra.mxu0 0
      %347 = vmatprep.subr.bf16.mxu0 0
      %348 = vmatpush1.bf16.msra.mxu0 0
      %349 = vmatprep.subr.bf16.mxu0 0
      %350 = vmatpush1.bf16.msra.mxu0 0
      %351 = vmatprep.subr.bf16.mxu0 0
      %352 = vmatpush1.bf16.msra.mxu0 0
      %353 = vmatprep.subr.bf16.mxu0 0
      %354 = vmatpush1.bf16.msra.mxu0 0
      %355 = vmatprep.subr.bf16.mxu0 0
      %356 = vmatpush1.bf16.msra.mxu0 0
      %357 = vmatprep.mubr.bf16.mxu0 0
      %358 = vmatmul.mubr.bf16.gmra.mrb[0].mxu0 %v323
      %v359 = vpop.f32.mrb[0].mxu0
      %v360 = vadd.f32 0.0, %v359
      %v361 = vpop.f32.mrb[0].mxu0
      %v362 = vpop.f32.mrb[0].mxu0
      %v363 = vadd.f32 0.0, %v362
      %v364 = vpop.f32.mrb[0].mxu0
      %365 = vdwg.mxu0
      %v367 = vlaneseq
      %v368 = vshrl.u32 %v367, 7
      %v369 = vsub.s32 0, %v368
      %v370 = vrot.slane %v309, %v369
      %v372 = vadd.f32 %v370, %v360
      %v373 = vadd.f32 %v370, %v363
      %v374 = vld [vmem:[%s1] sm:$0xff]
      %v375 = vld [vmem:[%s1 + $0x8] sm:$0xff]
      %v376 = vpack.c.bf16 %v375, %v374
      %v377 = vld [vmem:[%s292] sm:$0xf]
      %v378 = vld [vmem:[%s292 + $0x4] sm:$0xf]
      %v381 = vunpack.c.l.b16 %v377
      %v382 = vunpack.c.l.b16 %v378
      %v383 = vpack.c.b16 %v382, %v381
      %v386 = vsel %vm321, %v376, 0
      %388 = vmatprep.subr.bf16.mxu0 0
      %389 = vmatpush1.bf16.msra.mxu0 %v383
      %390 = vmatprep.subr.bf16.mxu0 0
      %391 = vmatpush1.bf16.msra.mxu0 0
      %392 = vmatprep.subr.bf16.mxu0 0
      %393 = vmatpush1.bf16.msra.mxu0 0
      %394 = vmatprep.subr.bf16.mxu0 0
      %395 = vmatpush1.bf16.msra.mxu0 0
      %396 = vmatprep.subr.bf16.mxu0 0
      %397 = vmatpush1.bf16.msra.mxu0 0
      %398 = vmatprep.subr.bf16.mxu0 0
      %399 = vmatpush1.bf16.msra.mxu0 0
      %400 = vmatprep.subr.bf16.mxu0 0
      %401 = vmatpush1.bf16.msra.mxu0 0
      %402 = vmatprep.subr.bf16.mxu0 0
      %403 = vmatpush1.bf16.msra.mxu0 0
      %404 = vmatprep.subr.bf16.mxu0 0
      %405 = vmatpush1.bf16.msra.mxu0 0
      %406 = vmatprep.subr.bf16.mxu0 0
      %407 = vmatpush1.bf16.msra.mxu0 0
      %408 = vmatprep.subr.bf16.mxu0 0
      %409 = vmatpush1.bf16.msra.mxu0 0
      %410 = vmatprep.subr.bf16.mxu0 0
      %411 = vmatpush1.bf16.msra.mxu0 0
      %412 = vmatprep.subr.bf16.mxu0 0
      %413 = vmatpush1.bf16.msra.mxu0 0
      %414 = vmatprep.subr.bf16.mxu0 0
      %415 = vmatpush1.bf16.msra.mxu0 0
      %416 = vmatprep.subr.bf16.mxu0 0
      %417 = vmatpush1.bf16.msra.mxu0 0
      %418 = vmatprep.subr.bf16.mxu0 0
      %419 = vmatpush1.bf16.msra.mxu0 0
      %420 = vmatprep.mubr.bf16.mxu0 0
      %421 = vmatmul.mubr.bf16.gmra.mrb[0].mxu0 %v386
      %v422 = vpop.f32.mrb[0].mxu0
      %v423 = vadd.f32 0.0, %v422
      %v424 = vpop.f32.mrb[0].mxu0
      %v425 = vpop.f32.mrb[0].mxu0
      %v426 = vadd.f32 0.0, %v425
      %v427 = vpop.f32.mrb[0].mxu0
      %428 = vdwg.mxu0
      %v429 = vadd.f32 %v372, %v423
      %v430 = vadd.f32 %v373, %v426
      %vm431 = vcmask 523264
      %432 = vst.msk [vmem:[#allocation2] sm:$0xff] %vm431, %v429
      %433 = vst.msk [vmem:[#allocation2 + $0x8] sm:$0xff] %vm431, %v430
      %s434 = smul.u32 %s17, 7
      %s435 = smul.u32 %s17, 14
      %s436 = scalar_lea.vmem [#allocation2], %s435
      %v437 = vld [vmem:[%s436] sm:$0x3]
      %v440 = vunpack.c.l.b16 %v307
      %v441 = vunpack.c.l.b16 %v308
      %v442 = vpack.c.b16 %v441, %v440
      %v445 = vsel %vm321, 0, 0
      %447 = vmatprep.subr.bf16.mxu0 0
      %448 = vmatpush1.bf16.msra.mxu0 %v442
      %449 = vmatprep.subr.bf16.mxu0 0
      %450 = vmatpush1.bf16.msra.mxu0 0
      %451 = vmatprep.subr.bf16.mxu0 0
      %452 = vmatpush1.bf16.msra.mxu0 0
      %453 = vmatprep.subr.bf16.mxu0 0
      %454 = vmatpush1.bf16.msra.mxu0 0
      %455 = vmatprep.subr.bf16.mxu0 0
      %456 = vmatpush1.bf16.msra.mxu0 0
      %457 = vmatprep.subr.bf16.mxu0 0
      %458 = vmatpush1.bf16.msra.mxu0 0
      %459 = vmatprep.subr.bf16.mxu0 0
      %460 = vmatpush1.bf16.msra.mxu0 0
      %461 = vmatprep.subr.bf16.mxu0 0
      %462 = vmatpush1.bf16.msra.mxu0 0
      %463 = vmatprep.subr.bf16.mxu0 0
      %464 = vmatpush1.bf16.msra.mxu0 0
      %465 = vmatprep.subr.bf16.mxu0 0
      %466 = vmatpush1.bf16.msra.mxu0 0
      %467 = vmatprep.subr.bf16.mxu0 0
      %468 = vmatpush1.bf16.msra.mxu0 0
      %469 = vmatprep.subr.bf16.mxu0 0
      %470 = vmatpush1.bf16.msra.mxu0 0
      %471 = vmatprep.subr.bf16.mxu0 0
      %472 = vmatpush1.bf16.msra.mxu0 0
      %473 = vmatprep.subr.bf16.mxu0 0
      %474 = vmatpush1.bf16.msra.mxu0 0
      %475 = vmatprep.subr.bf16.mxu0 0
      %476 = vmatpush1.bf16.msra.mxu0 0
      %477 = vmatprep.subr.bf16.mxu0 0
      %478 = vmatpush1.bf16.msra.mxu0 0
      %479 = vmatprep.mubr.bf16.mxu0 0
      %480 = vmatmul.mubr.bf16.gmra.mrb[0].mxu0 %v445
      %v481 = vpop.f32.mrb[0].mxu0
      %v482 = vadd.f32 0.0, %v481
      %v483 = vpop.f32.mrb[0].mxu0
      %v484 = vpop.f32.mrb[0].mxu0
      %v485 = vpop.f32.mrb[0].mxu0
      %486 = vdwg.mxu0
      %v487 = vadd.f32 %v437, %v482
      %v488 = vsub.f32 0.0, %v487
      %v489 = vmul.f32 %v488, 1.442695
      %v490 = vpow.pop %v489
      %v491 = vadd.f32 %v490, 1.0
      %v492 = vrcp.pop %v491
      %v493 = vmul.f32 1.0, %v492
      %v494 = vtanh.pop %v487
      %v495 = vmul.f32 %v493, 0.0
      %497 = vrot.lane.b32.xlu0 %v494, 96
      %v498 = vpop.permute.xlu0 %497
      %v500 = vmul.f32 %v493, %v498
      %502 = vrot.lane.b32.xlu0 %v500, 16
      %v503 = vpop.permute.xlu0 %502
      %v505 = vadd.f32 %v495, %v503
      %v506 = vtanh.pop %v505
      %508 = vrot.lane.b32.xlu0 %v506, 32
      %v509 = vpop.permute.xlu0 %508
      %v511 = vmul.f32 %v493, %v509
      %513 = vrot.lane.b32.xlu0 %v511, 80
      %v514 = vpop.permute.xlu0 %513
      %s516 = smul.u32 %s434, 2
      %s517 = scalar_lea.vmem %s305, %s516
      %vm518 = vcmask 123904
      %519 = vst.msk [vmem:[%s517] sm:$0x3] %vm518, %v514
      %s520 = smul.u32 %s17, 5
      %s521 = sadd.s32 %s520, 1
      %s522 = smul.u32 %s521, 2
      %s523 = scalar_lea.vmem [#allocation2], %s522
      %v524 = vld [vmem:[%s523] sm:$0x3]
      %v525 = vpack.c.bf16 %v511, %v511
      %527 = vrot.lane.b32.xlu0 %v525, 80
      %v528 = vpop.permute.xlu0 %527
      %v530 = vsel %vm321, %v528, 0
      %532 = vmatprep.subr.bf16.mxu0 0
      %533 = vmatpush1.bf16.msra.mxu0 %v442
      %534 = vmatprep.subr.bf16.mxu0 0
      %535 = vmatpush1.bf16.msra.mxu0 0
      %536 = vmatprep.subr.bf16.mxu0 0
      %537 = vmatpush1.bf16.msra.mxu0 0
      %538 = vmatprep.subr.bf16.mxu0 0
      %539 = vmatpush1.bf16.msra.mxu0 0
      %540 = vmatprep.subr.bf16.mxu0 0
      %541 = vmatpush1.bf16.msra.mxu0 0
      %542 = vmatprep.subr.bf16.mxu0 0
      %543 = vmatpush1.bf16.msra.mxu0 0
      %544 = vmatprep.subr.bf16.mxu0 0
      %545 = vmatpush1.bf16.msra.mxu0 0
      %546 = vmatprep.subr.bf16.mxu0 0
      %547 = vmatpush1.bf16.msra.mxu0 0
      %548 = vmatprep.subr.bf16.mxu0 0
      %549 = vmatpush1.bf16.msra.mxu0 0
      %550 = vmatprep.subr.bf16.mxu0 0
      %551 = vmatpush1.bf16.msra.mxu0 0
      %552 = vmatprep.subr.bf16.mxu0 0
      %553 = vmatpush1.bf16.msra.mxu0 0
      %554 = vmatprep.subr.bf16.mxu0 0
      %555 = vmatpush1.bf16.msra.mxu0 0
      %556 = vmatprep.subr.bf16.mxu0 0
      %557 = vmatpush1.bf16.msra.mxu0 0
      %558 = vmatprep.subr.bf16.mxu0 0
      %559 = vmatpush1.bf16.msra.mxu0 0
      %560 = vmatprep.subr.bf16.mxu0 0
      %561 = vmatpush1.bf16.msra.mxu0 0
      %562 = vmatprep.subr.bf16.mxu0 0
      %563 = vmatpush1.bf16.msra.mxu0 0
      %564 = vmatprep.mubr.bf16.mxu0 0
      %565 = vmatmul.mubr.bf16.gmra.mrb[0].mxu0 %v530
      %v566 = vpop.f32.mrb[0].mxu0
      %v567 = vadd.f32 0.0, %v566
      %v568 = vpop.f32.mrb[0].mxu0
      %v569 = vpop.f32.mrb[0].mxu0
      %v570 = vpop.f32.mrb[0].mxu0
      %571 = vdwg.mxu0
      %v572 = vadd.f32 %v524, %v567
      %v573 = vsub.f32 0.0, %v572
      %v574 = vmul.f32 %v573, 1.442695
      %v575 = vpow.pop %v574
      %v576 = vadd.f32 %v575, 1.0
      %v577 = vrcp.pop %v576
      %v578 = vmul.f32 1.0, %v577
      %v579 = vtanh.pop %v572
      %v580 = vmul.f32 %v578, %v505
      %582 = vrot.lane.b32.xlu0 %v579, 96
      %v583 = vpop.permute.xlu0 %582
      %v585 = vmul.f32 %v578, %v583
      %587 = vrot.lane.b32.xlu0 %v585, 16
      %v588 = vpop.permute.xlu0 %587
      %v590 = vadd.f32 %v580, %v588
      %v591 = vtanh.pop %v590
      %593 = vrot.lane.b32.xlu0 %v591, 32
      %v594 = vpop.permute.xlu0 %593
      %v596 = vmul.f32 %v578, %v594
      %598 = vrot.lane.b32.xlu0 %v596, 80
      %v599 = vpop.permute.xlu0 %598
      %s601 = scalar_lea.vmem %s305, %s522
      %602 = vst.msk [vmem:[%s601] sm:$0x3] %vm518, %v599
      %s603 = smul.u32 %s17, 3
      %s604 = sadd.s32 %s603, 2
      %s605 = smul.u32 %s604, 2
      %s606 = scalar_lea.vmem [#allocation2], %s605
      %v607 = vld [vmem:[%s606] sm:$0x3]
      %v608 = vpack.c.bf16 %v596, %v596
      %610 = vrot.lane.b32.xlu0 %v608, 80
      %v611 = vpop.permute.xlu0 %610
      %v613 = vsel %vm321, %v611, 0
      %615 = vmatprep.subr.bf16.mxu0 0
      %616 = vmatpush1.bf16.msra.mxu0 %v442
      %617 = vmatprep.subr.bf16.mxu0 0
      %618 = vmatpush1.bf16.msra.mxu0 0
      %619 = vmatprep.subr.bf16.mxu0 0
      %620 = vmatpush1.bf16.msra.mxu0 0
      %621 = vmatprep.subr.bf16.mxu0 0
      %622 = vmatpush1.bf16.msra.mxu0 0
      %623 = vmatprep.subr.bf16.mxu0 0
      %624 = vmatpush1.bf16.msra.mxu0 0
      %625 = vmatprep.subr.bf16.mxu0 0
      %626 = vmatpush1.bf16.msra.mxu0 0
      %627 = vmatprep.subr.bf16.mxu0 0
      %628 = vmatpush1.bf16.msra.mxu0 0
      %629 = vmatprep.subr.bf16.mxu0 0
      %630 = vmatpush1.bf16.msra.mxu0 0
      %631 = vmatprep.subr.bf16.mxu0 0
      %632 = vmatpush1.bf16.msra.mxu0 0
      %633 = vmatprep.subr.bf16.mxu0 0
      %634 = vmatpush1.bf16.msra.mxu0 0
      %635 = vmatprep.subr.bf16.mxu0 0
      %636 = vmatpush1.bf16.msra.mxu0 0
      %637 = vmatprep.subr.bf16.mxu0 0
      %638 = vmatpush1.bf16.msra.mxu0 0
      %639 = vmatprep.subr.bf16.mxu0 0
      %640 = vmatpush1.bf16.msra.mxu0 0
      %641 = vmatprep.subr.bf16.mxu0 0
      %642 = vmatpush1.bf16.msra.mxu0 0
      %643 = vmatprep.subr.bf16.mxu0 0
      %644 = vmatpush1.bf16.msra.mxu0 0
      %645 = vmatprep.subr.bf16.mxu0 0
      %646 = vmatpush1.bf16.msra.mxu0 0
      %647 = vmatprep.mubr.bf16.mxu0 0
      %648 = vmatmul.mubr.bf16.gmra.mrb[0].mxu0 %v613
      %v649 = vpop.f32.mrb[0].mxu0
      %v650 = vadd.f32 0.0, %v649
      %v651 = vpop.f32.mrb[0].mxu0
      %v652 = vpop.f32.mrb[0].mxu0
      %v653 = vpop.f32.mrb[0].mxu0
      %654 = vdwg.mxu0
      %v655 = vadd.f32 %v607, %v650
      %v656 = vsub.f32 0.0, %v655
      %v657 = vmul.f32 %v656, 1.442695
      %v658 = vpow.pop %v657
      %v659 = vadd.f32 %v658, 1.0
      %v660 = vrcp.pop %v659
      %v661 = vmul.f32 1.0, %v660
      %v662 = vtanh.pop %v655
      %v663 = vmul.f32 %v661, %v590
      %665 = vrot.lane.b32.xlu0 %v662, 96
      %v666 = vpop.permute.xlu0 %665
      %v668 = vmul.f32 %v661, %v666
      %670 = vrot.lane.b32.xlu0 %v668, 16
      %v671 = vpop.permute.xlu0 %670
      %v673 = vadd.f32 %v663, %v671
      %v674 = vtanh.pop %v673
      %676 = vrot.lane.b32.xlu0 %v674, 32
      %v677 = vpop.permute.xlu0 %676
      %v679 = vmul.f32 %v661, %v677
      %681 = vrot.lane.b32.xlu0 %v679, 80
      %v682 = vpop.permute.xlu0 %681
      %s684 = scalar_lea.vmem %s305, %s605
      %685 = vst.msk [vmem:[%s684] sm:$0x3] %vm518, %v682
      %s686 = sadd.s32 %s17, 3
      %s687 = smul.u32 %s686, 2
      %s688 = scalar_lea.vmem [#allocation2], %s687
      %v689 = vld [vmem:[%s688] sm:$0x3]
      %v690 = vpack.c.bf16 %v679, %v679
      %692 = vrot.lane.b32.xlu0 %v690, 80
      %v693 = vpop.permute.xlu0 %692
      %v695 = vsel %vm321, %v693, 0
      %697 = vmatprep.subr.bf16.mxu0 0
      %698 = vmatpush1.bf16.msra.mxu0 %v442
      %699 = vmatprep.subr.bf16.mxu0 0
      %700 = vmatpush1.bf16.msra.mxu0 0
      %701 = vmatprep.subr.bf16.mxu0 0
      %702 = vmatpush1.bf16.msra.mxu0 0
      %703 = vmatprep.subr.bf16.mxu0 0
      %704 = vmatpush1.bf16.msra.mxu0 0
      %705 = vmatprep.subr.bf16.mxu0 0
      %706 = vmatpush1.bf16.msra.mxu0 0
      %707 = vmatprep.subr.bf16.mxu0 0
      %708 = vmatpush1.bf16.msra.mxu0 0
      %709 = vmatprep.subr.bf16.mxu0 0
      %710 = vmatpush1.bf16.msra.mxu0 0
      %711 = vmatprep.subr.bf16.mxu0 0
      %712 = vmatpush1.bf16.msra.mxu0 0
      %713 = vmatprep.subr.bf16.mxu0 0
      %714 = vmatpush1.bf16.msra.mxu0 0
      %715 = vmatprep.subr.bf16.mxu0 0
      %716 = vmatpush1.bf16.msra.mxu0 0
      %717 = vmatprep.subr.bf16.mxu0 0
      %718 = vmatpush1.bf16.msra.mxu0 0
      %719 = vmatprep.subr.bf16.mxu0 0
      %720 = vmatpush1.bf16.msra.mxu0 0
      %721 = vmatprep.subr.bf16.mxu0 0
      %722 = vmatpush1.bf16.msra.mxu0 0
      %723 = vmatprep.subr.bf16.mxu0 0
      %724 = vmatpush1.bf16.msra.mxu0 0
      %725 = vmatprep.subr.bf16.mxu0 0
      %726 = vmatpush1.bf16.msra.mxu0 0
      %727 = vmatprep.subr.bf16.mxu0 0
      %728 = vmatpush1.bf16.msra.mxu0 0
      %729 = vmatprep.mubr.bf16.mxu0 0
      %730 = vmatmul.mubr.bf16.gmra.mrb[0].mxu0 %v695
      %v731 = vpop.f32.mrb[0].mxu0
      %v732 = vadd.f32 0.0, %v731
      %v733 = vpop.f32.mrb[0].mxu0
      %v734 = vpop.f32.mrb[0].mxu0
      %v735 = vpop.f32.mrb[0].mxu0
      %736 = vdwg.mxu0
      %v737 = vadd.f32 %v689, %v732
      %v738 = vsub.f32 0.0, %v737
      %v739 = vmul.f32 %v738, 1.442695
      %v740 = vpow.pop %v739
      %v741 = vadd.f32 %v740, 1.0
      %v742 = vrcp.pop %v741
      %v743 = vmul.f32 1.0, %v742
      %v744 = vtanh.pop %v737
      %v745 = vmul.f32 %v743, %v673
      %747 = vrot.lane.b32.xlu0 %v744, 96
      %v748 = vpop.permute.xlu0 %747
      %v750 = vmul.f32 %v743, %v748
      %752 = vrot.lane.b32.xlu0 %v750, 16
      %v753 = vpop.permute.xlu0 %752
      %v755 = vadd.f32 %v745, %v753
      %v756 = vtanh.pop %v755
      %758 = vrot.lane.b32.xlu0 %v756, 32
      %v759 = vpop.permute.xlu0 %758
      %v761 = vmul.f32 %v743, %v759
      %763 = vrot.lane.b32.xlu0 %v761, 80
      %v764 = vpop.permute.xlu0 %763
      %s766 = scalar_lea.vmem %s305, %s687
      %767 = vst.msk [vmem:[%s766] sm:$0x3] %vm518, %v764
      %s768 = ssub.s32 4, %s17
      %s769 = smul.u32 %s768, 2
      %s770 = scalar_lea.vmem [#allocation2], %s769
      %v771 = vld [vmem:[%s770] sm:$0x3]
      %v772 = vpack.c.bf16 %v761, %v761
      %774 = vrot.lane.b32.xlu0 %v772, 80
      %v775 = vpop.permute.xlu0 %774
      %v777 = vsel %vm321, %v775, 0
      %779 = vmatprep.subr.bf16.mxu0 0
      %780 = vmatpush1.bf16.msra.mxu0 %v442
      %781 = vmatprep.subr.bf16.mxu0 0
      %782 = vmatpush1.bf16.msra.mxu0 0
      %783 = vmatprep.subr.bf16.mxu0 0
      %784 = vmatpush1.bf16.msra.mxu0 0
      %785 = vmatprep.subr.bf16.mxu0 0
      %786 = vmatpush1.bf16.msra.mxu0 0
      %787 = vmatprep.subr.bf16.mxu0 0
      %788 = vmatpush1.bf16.msra.mxu0 0
      %789 = vmatprep.subr.bf16.mxu0 0
      %790 = vmatpush1.bf16.msra.mxu0 0
      %791 = vmatprep.subr.bf16.mxu0 0
      %792 = vmatpush1.bf16.msra.mxu0 0
      %793 = vmatprep.subr.bf16.mxu0 0
      %794 = vmatpush1.bf16.msra.mxu0 0
      %795 = vmatprep.subr.bf16.mxu0 0
      %796 = vmatpush1.bf16.msra.mxu0 0
      %797 = vmatprep.subr.bf16.mxu0 0
      %798 = vmatpush1.bf16.msra.mxu0 0
      %799 = vmatprep.subr.bf16.mxu0 0
      %800 = vmatpush1.bf16.msra.mxu0 0
      %801 = vmatprep.subr.bf16.mxu0 0
      %802 = vmatpush1.bf16.msra.mxu0 0
      %803 = vmatprep.subr.bf16.mxu0 0
      %804 = vmatpush1.bf16.msra.mxu0 0
      %805 = vmatprep.subr.bf16.mxu0 0
      %806 = vmatpush1.bf16.msra.mxu0 0
      %807 = vmatprep.subr.bf16.mxu0 0
      %808 = vmatpush1.bf16.msra.mxu0 0
      %809 = vmatprep.subr.bf16.mxu0 0
      %810 = vmatpush1.bf16.msra.mxu0 0
      %811 = vmatprep.mubr.bf16.mxu0 0
      %812 = vmatmul.mubr.bf16.gmra.mrb[0].mxu0 %v777
      %v813 = vpop.f32.mrb[0].mxu0
      %v814 = vadd.f32 0.0, %v813
      %v815 = vpop.f32.mrb[0].mxu0
      %v816 = vpop.f32.mrb[0].mxu0
      %v817 = vpop.f32.mrb[0].mxu0
      %818 = vdwg.mxu0
      %v819 = vadd.f32 %v771, %v814
      %v820 = vsub.f32 0.0, %v819
      %v821 = vmul.f32 %v820, 1.442695
      %v822 = vpow.pop %v821
      %v823 = vadd.f32 %v822, 1.0
      %v824 = vrcp.pop %v823
      %v825 = vmul.f32 1.0, %v824
      %v826 = vtanh.pop %v819
      %v827 = vmul.f32 %v825, %v755
      %829 = vrot.lane.b32.xlu0 %v826, 96
      %v830 = vpop.permute.xlu0 %829
      %v832 = vmul.f32 %v825, %v830
      %834 = vrot.lane.b32.xlu0 %v832, 16
      %v835 = vpop.permute.xlu0 %834
      %v837 = vadd.f32 %v827, %v835
      %v838 = vtanh.pop %v837
      %840 = vrot.lane.b32.xlu0 %v838, 32
      %v841 = vpop.permute.xlu0 %840
      %v843 = vmul.f32 %v825, %v841
      %845 = vrot.lane.b32.xlu0 %v843, 80
      %v846 = vpop.permute.xlu0 %845
      %s848 = scalar_lea.vmem %s305, %s769
      %849 = vst.msk [vmem:[%s848] sm:$0x3] %vm518, %v846
      %s850 = smul.u32 %s17, 4294967293
      %s851 = sadd.s32 %s850, 5
      %s852 = smul.u32 %s851, 2
      %s853 = scalar_lea.vmem [#allocation2], %s852
      %v854 = vld [vmem:[%s853] sm:$0x3]
      %v855 = vpack.c.bf16 %v843, %v843
      %857 = vrot.lane.b32.xlu0 %v855, 80
      %v858 = vpop.permute.xlu0 %857
      %v860 = vsel %vm321, %v858, 0
      %862 = vmatprep.subr.bf16.mxu0 0
      %863 = vmatpush1.bf16.msra.mxu0 %v442
      %864 = vmatprep.subr.bf16.mxu0 0
      %865 = vmatpush1.bf16.msra.mxu0 0
      %866 = vmatprep.subr.bf16.mxu0 0
      %867 = vmatpush1.bf16.msra.mxu0 0
      %868 = vmatprep.subr.bf16.mxu0 0
      %869 = vmatpush1.bf16.msra.mxu0 0
      %870 = vmatprep.subr.bf16.mxu0 0
      %871 = vmatpush1.bf16.msra.mxu0 0
      %872 = vmatprep.subr.bf16.mxu0 0
      %873 = vmatpush1.bf16.msra.mxu0 0
      %874 = vmatprep.subr.bf16.mxu0 0
      %875 = vmatpush1.bf16.msra.mxu0 0
      %876 = vmatprep.subr.bf16.mxu0 0
      %877 = vmatpush1.bf16.msra.mxu0 0
      %878 = vmatprep.subr.bf16.mxu0 0
      %879 = vmatpush1.bf16.msra.mxu0 0
      %880 = vmatprep.subr.bf16.mxu0 0
      %881 = vmatpush1.bf16.msra.mxu0 0
      %882 = vmatprep.subr.bf16.mxu0 0
      %883 = vmatpush1.bf16.msra.mxu0 0
      %884 = vmatprep.subr.bf16.mxu0 0
      %885 = vmatpush1.bf16.msra.mxu0 0
      %886 = vmatprep.subr.bf16.mxu0 0
      %887 = vmatpush1.bf16.msra.mxu0 0
      %888 = vmatprep.subr.bf16.mxu0 0
      %889 = vmatpush1.bf16.msra.mxu0 0
      %890 = vmatprep.subr.bf16.mxu0 0
      %891 = vmatpush1.bf16.msra.mxu0 0
      %892 = vmatprep.subr.bf16.mxu0 0
      %893 = vmatpush1.bf16.msra.mxu0 0
      %894 = vmatprep.mubr.bf16.mxu0 0
      %895 = vmatmul.mubr.bf16.gmra.mrb[0].mxu0 %v860
      %v896 = vpop.f32.mrb[0].mxu0
      %v897 = vadd.f32 0.0, %v896
      %v898 = vpop.f32.mrb[0].mxu0
      %v899 = vpop.f32.mrb[0].mxu0
      %v900 = vpop.f32.mrb[0].mxu0
      %901 = vdwg.mxu0
      %v902 = vadd.f32 %v854, %v897
      %v903 = vsub.f32 0.0, %v902
      %v904 = vmul.f32 %v903, 1.442695
      %v905 = vpow.pop %v904
      %v906 = vadd.f32 %v905, 1.0
      %v907 = vrcp.pop %v906
      %v908 = vmul.f32 1.0, %v907
      %v909 = vtanh.pop %v902
      %v910 = vmul.f32 %v908, %v837
      %912 = vrot.lane.b32.xlu0 %v909, 96
      %v913 = vpop.permute.xlu0 %912
      %v915 = vmul.f32 %v908, %v913
      %917 = vrot.lane.b32.xlu0 %v915, 16
      %v918 = vpop.permute.xlu0 %917
      %v920 = vadd.f32 %v910, %v918
      %v921 = vtanh.pop %v920
      %923 = vrot.lane.b32.xlu0 %v921, 32
      %v924 = vpop.permute.xlu0 %923
      %v926 = vmul.f32 %v908, %v924
      %928 = vrot.lane.b32.xlu0 %v926, 80
      %v929 = vpop.permute.xlu0 %928
      %s931 = scalar_lea.vmem %s305, %s852
      %932 = vst.msk [vmem:[%s931] sm:$0x3] %vm518, %v929
      %s933 = smul.u32 %s17, 4294967291
      %s934 = sadd.s32 %s933, 6
      %s935 = smul.u32 %s934, 2
      %s936 = scalar_lea.vmem [#allocation2], %s935
      %v937 = vld [vmem:[%s936] sm:$0x3]
      %v938 = vpack.c.bf16 %v926, %v926
      %940 = vrot.lane.b32.xlu0 %v938, 80
      %v941 = vpop.permute.xlu0 %940
      %v943 = vsel %vm321, %v941, 0
      %945 = vmatprep.subr.bf16.mxu0 0
      %946 = vmatpush1.bf16.msra.mxu0 %v442
      %947 = vmatprep.subr.bf16.mxu0 0
      %948 = vmatpush1.bf16.msra.mxu0 0
      %949 = vmatprep.subr.bf16.mxu0 0
      %950 = vmatpush1.bf16.msra.mxu0 0
      %951 = vmatprep.subr.bf16.mxu0 0
      %952 = vmatpush1.bf16.msra.mxu0 0
      %953 = vmatprep.subr.bf16.mxu0 0
      %954 = vmatpush1.bf16.msra.mxu0 0
      %955 = vmatprep.subr.bf16.mxu0 0
      %956 = vmatpush1.bf16.msra.mxu0 0
      %957 = vmatprep.subr.bf16.mxu0 0
      %958 = vmatpush1.bf16.msra.mxu0 0
      %959 = vmatprep.subr.bf16.mxu0 0
      %960 = vmatpush1.bf16.msra.mxu0 0
      %961 = vmatprep.subr.bf16.mxu0 0
      %962 = vmatpush1.bf16.msra.mxu0 0
      %963 = vmatprep.subr.bf16.mxu0 0
      %964 = vmatpush1.bf16.msra.mxu0 0
      %965 = vmatprep.subr.bf16.mxu0 0
      %966 = vmatpush1.bf16.msra.mxu0 0
      %967 = vmatprep.subr.bf16.mxu0 0
      %968 = vmatpush1.bf16.msra.mxu0 0
      %969 = vmatprep.subr.bf16.mxu0 0
      %970 = vmatpush1.bf16.msra.mxu0 0
      %971 = vmatprep.subr.bf16.mxu0 0
      %972 = vmatpush1.bf16.msra.mxu0 0
      %973 = vmatprep.subr.bf16.mxu0 0
      %974 = vmatpush1.bf16.msra.mxu0 0
      %975 = vmatprep.subr.bf16.mxu0 0
      %976 = vmatpush1.bf16.msra.mxu0 0
      %977 = vmatprep.mubr.bf16.mxu0 0
      %978 = vmatmul.mubr.bf16.gmra.mrb[0].mxu0 %v943
      %v979 = vpop.f32.mrb[0].mxu0
      %v980 = vadd.f32 0.0, %v979
      %v981 = vpop.f32.mrb[0].mxu0
      %v982 = vpop.f32.mrb[0].mxu0
      %v983 = vpop.f32.mrb[0].mxu0
      %984 = vdwg.mxu0
      %v985 = vadd.f32 %v937, %v980
      %v986 = vsub.f32 0.0, %v985
      %v987 = vmul.f32 %v986, 1.442695
      %v988 = vpow.pop %v987
      %v989 = vadd.f32 %v988, 1.0
      %v990 = vrcp.pop %v989
      %v991 = vmul.f32 1.0, %v990
      %v992 = vtanh.pop %v985
      %v993 = vmul.f32 %v991, %v920
      %995 = vrot.lane.b32.xlu0 %v992, 96
      %v996 = vpop.permute.xlu0 %995
      %v998 = vmul.f32 %v991, %v996
      %1000 = vrot.lane.b32.xlu0 %v998, 16
      %v1001 = vpop.permute.xlu0 %1000
      %v1003 = vadd.f32 %v993, %v1001
      %v1004 = vtanh.pop %v1003
      %1006 = vrot.lane.b32.xlu0 %v1004, 32
      %v1007 = vpop.permute.xlu0 %1006
      %v1009 = vmul.f32 %v991, %v1007
      %1011 = vrot.lane.b32.xlu0 %v1009, 80
      %v1012 = vpop.permute.xlu0 %1011
      %s1014 = scalar_lea.vmem %s305, %s935
      %1015 = vst.msk [vmem:[%s1014] sm:$0x3] %vm518, %v1012
      %s1016 = smul.u32 %s17, 4294967289
      %s1017 = sadd.s32 %s1016, 7
      %s1018 = smul.u32 %s1017, 2
      %s1019 = scalar_lea.vmem [#allocation2], %s1018
      %v1020 = vld [vmem:[%s1019] sm:$0x3]
      %v1021 = vpack.c.bf16 %v1009, %v1009
      %1023 = vrot.lane.b32.xlu0 %v1021, 80
      %v1024 = vpop.permute.xlu0 %1023
      %v1026 = vsel %vm321, %v1024, 0
      %1028 = vmatprep.subr.bf16.mxu0 0
      %1029 = vmatpush1.bf16.msra.mxu0 %v442
      %1030 = vmatprep.subr.bf16.mxu0 0
      %1031 = vmatpush1.bf16.msra.mxu0 0
      %1032 = vmatprep.subr.bf16.mxu0 0
      %1033 = vmatpush1.bf16.msra.mxu0 0
      %1034 = vmatprep.subr.bf16.mxu0 0
      %1035 = vmatpush1.bf16.msra.mxu0 0
      %1036 = vmatprep.subr.bf16.mxu0 0
      %1037 = vmatpush1.bf16.msra.mxu0 0
      %1038 = vmatprep.subr.bf16.mxu0 0
      %1039 = vmatpush1.bf16.msra.mxu0 0
      %1040 = vmatprep.subr.bf16.mxu0 0
      %1041 = vmatpush1.bf16.msra.mxu0 0
      %1042 = vmatprep.subr.bf16.mxu0 0
      %1043 = vmatpush1.bf16.msra.mxu0 0
      %1044 = vmatprep.subr.bf16.mxu0 0
      %1045 = vmatpush1.bf16.msra.mxu0 0
      %1046 = vmatprep.subr.bf16.mxu0 0
      %1047 = vmatpush1.bf16.msra.mxu0 0
      %1048 = vmatprep.subr.bf16.mxu0 0
      %1049 = vmatpush1.bf16.msra.mxu0 0
      %1050 = vmatprep.subr.bf16.mxu0 0
      %1051 = vmatpush1.bf16.msra.mxu0 0
      %1052 = vmatprep.subr.bf16.mxu0 0
      %1053 = vmatpush1.bf16.msra.mxu0 0
      %1054 = vmatprep.subr.bf16.mxu0 0
      %1055 = vmatpush1.bf16.msra.mxu0 0
      %1056 = vmatprep.subr.bf16.mxu0 0
      %1057 = vmatpush1.bf16.msra.mxu0 0
      %1058 = vmatprep.subr.bf16.mxu0 0
      %1059 = vmatpush1.bf16.msra.mxu0 0
      %1060 = vmatprep.mubr.bf16.mxu0 0
      %1061 = vmatmul.mubr.bf16.gmra.mrb[0].mxu0 %v1026
      %v1062 = vpop.f32.mrb[0].mxu0
      %v1063 = vadd.f32 0.0, %v1062
      %v1064 = vpop.f32.mrb[0].mxu0
      %v1065 = vpop.f32.mrb[0].mxu0
      %v1066 = vpop.f32.mrb[0].mxu0
      %1067 = vdwg.mxu0
      %v1068 = vadd.f32 %v1020, %v1063
      %v1069 = vsub.f32 0.0, %v1068
      %v1070 = vmul.f32 %v1069, 1.442695
      %v1071 = vpow.pop %v1070
      %v1072 = vadd.f32 %v1071, 1.0
      %v1073 = vrcp.pop %v1072
      %v1074 = vmul.f32 1.0, %v1073
      %v1075 = vtanh.pop %v1068
      %v1076 = vmul.f32 %v1074, %v1003
      %1078 = vrot.lane.b32.xlu0 %v1075, 96
      %v1079 = vpop.permute.xlu0 %1078
      %v1081 = vmul.f32 %v1074, %v1079
      %1083 = vrot.lane.b32.xlu0 %v1081, 16
      %v1084 = vpop.permute.xlu0 %1083
      %v1086 = vadd.f32 %v1076, %v1084
      %v1087 = vtanh.pop %v1086
      %1089 = vrot.lane.b32.xlu0 %v1087, 32
      %v1090 = vpop.permute.xlu0 %1089
      %v1092 = vmul.f32 %v1074, %v1090
      %1094 = vrot.lane.b32.xlu0 %v1092, 80
      %v1095 = vpop.permute.xlu0 %1094
      %s1097 = scalar_lea.vmem %s305, %s1018
      %1098 = vst.msk [vmem:[%s1097] sm:$0x3] %vm518, %v1095
      %p1099 = scmp.lt.s32.totalorder %s17, 1
      %s1100 = scalar_select %p1099, %s17, 1
      %s1101 = smul.addr %s1100, 8
      %s1102 = smul.addr %s1101, 2
      %s1103 = scalar_lea.vmem %s6, %s1102
      // Predicated region
      $region45: #{cnn_lstm_forward.6} parent=43 // pred_check
        %p1104 = pneg %p181
      $region46: #{cnn_lstm_forward.6} parent=43 // pred_check_branch
        %1106 = sbr.rel (%p1104) target = $region48
      $region47: #{cnn_lstm_forward.6} parent=43 // pred_region
        _
      $region48: #{cnn_lstm_forward.6} parent=43 // pred_fallthru
        _
    $region44: #{cnn_lstm_forward.6} parent=5 // pred_fallthru
      _
    %p1107 = scmp.le.s32.totalorder 2, %s12
    // Predicated region
    $region49: #{cnn_lstm_forward.6} parent=5 // pred_check
      %p1108 = pneg %p1107
    $region50: #{cnn_lstm_forward.6} parent=5 // pred_check_branch
      %1110 = sbr.rel (%p1108) target = $region52
    $region51: #{cnn_lstm_forward.6} parent=5 // pred_region
      %s1111 = ssub.s32 %s12, 2
      // Predicated region
      $region53: #{cnn_lstm_forward.6} parent=51 // pred_check
        %p1112 = pneg %p187
      $region54: #{cnn_lstm_forward.6} parent=51 // pred_check_branch
        %1114 = sbr.rel (%p1112) target = $region56
      $region55: #{cnn_lstm_forward.6} parent=51 // pred_region
        %p1115 = scmp.lt.s32.totalorder %s18, 1
        %s1116 = scalar_select %p1115, %s18, 1
        %s1117 = smul.addr %s1116, 8
        %s1118 = smul.addr %s1117, 2
        %s1119 = scalar_lea.vmem %s6, %s1118
      $region56: #{cnn_lstm_forward.6} parent=51 // pred_fallthru
        _
    $region52: #{cnn_lstm_forward.6} parent=5 // pred_fallthru
      _
  $region6: #{cnn_lstm_forward.6} parent=0 // loop_footer
    %s16 = sadd.s32 1, %s12
  $region7: #{cnn_lstm_forward.6} parent=0 // loop_footer_branch
    %11 = sbr.rel target = $region3
  $region8: #{cnn_lstm_forward.6} parent=0 // loop_exit
    _

</llo_original>
